<compile_context>
chip_gen: v5e
topology: v5e:2x2
jax: 0.10.0
libtpu: 0.0.40
codegen_flags: <defaults>
</compile_context>

<pallas_src>
import functools

import numpy as np
import jax
import jax.numpy as jnp
from jax import lax
from jax.experimental import pallas as pl
from jax.experimental.pallas import tpu as pltpu


_VMEM_TILE_BUDGET = 40 * 1024 * 1024        # per-step budget; leaves headroom on v7x (64 MiB/TC)


def _round_up(v, m):
    return ((v + m - 1) // m) * m


# ---------------------------------------------------------------------------
# Host-side constant construction.
# ---------------------------------------------------------------------------
def _rfft_matrices(n, km):
    """Mode-truncated, ortho-normalized rfft / irfft as stacked-real matmul operands.

    f: (2*km, n)  rows [Re_0..Re_{km-1}, Im_0..Im_{km-1}] of the forward DFT
       (XR_k = sum_n f[k, n]   * x[n],  XI_k = sum_n f[km+k, n] * x[n]).
    g: (2*km, n)  Hermitian-weighted inverse rows, same block ordering
       (x[n] = sum_k XR_k * g[k, n] + XI_k * g[km+k, n]).
    """
    k = np.arange(km)
    ang = 2.0 * np.pi * np.outer(k, np.arange(n)) / n
    s = 1.0 / np.sqrt(n)
    fr, fi = np.cos(ang) * s, -np.sin(ang) * s
    w = np.where((k == 0) | ((n % 2 == 0) & (k == n // 2)), 1.0, 2.0)[:, None]
    gr, gi = w * np.cos(ang) * s, -w * np.sin(ang) * s
    f = np.concatenate([fr, fi], axis=0).astype(np.float32)
    g = np.concatenate([gr, gi], axis=0).astype(np.float32)
    return f, g


def _build_mix_weight(w_r, w_i):
    """(Ci, Co, Km) complex mix weights -> (2Km, 2Co, Ci) mode-batched matmul operand.

    Batch k < Km multiplies the Re spectra block, k >= Km the Im block; output rows
    [0:Co] accumulate the real mixed spectrum, [Co:2Co] the imaginary one.
    """
    wr = jnp.transpose(w_r.astype(jnp.float32), (2, 1, 0))     # (Km, Co, Ci)
    wi = jnp.transpose(w_i.astype(jnp.float32), (2, 1, 0))
    top = jnp.concatenate([wr, wi], axis=1)                    # acts on Re spectra
    bot = jnp.concatenate([-wi, wr], axis=1)                   # acts on Im spectra
    return jnp.concatenate([top, bot], axis=0)                 # (2Km, 2Co, Ci)


def _const_spec(block_shape, index_map, single_buffer=True):
    """BlockSpec for a grid-invariant operand; single-buffered when supported."""
    if single_buffer:
        try:
            return pl.BlockSpec(block_shape, index_map, pipeline_mode=pl.Buffered(1))
        except Exception:  # pragma: no cover - older/newer Pallas without pipeline_mode
            pass
    return pl.BlockSpec(block_shape, index_map)


# ---------------------------------------------------------------------------
# VMEM-budget driven tiling.
# ---------------------------------------------------------------------------
def _vmem_limit(est_bytes):
    return int(min(100 * 2**20, max(32 * 2**20, int(est_bytes * 1.3))))


def _choose_tile(extent, batch, step, est_fn, budget):
    """Largest tile (multiple of `step` dividing `extent`, or full extent) that fits
    the VMEM budget, preferring choices that yield >=2 grid steps (v7x has 2 TCs)."""
    cands = sorted({d for d in range(step, extent + 1, step) if extent % d == 0}
                   | {extent}, reverse=True)
    fitting = [t for t in cands if est_fn(t) <= budget] or [cands[-1]]
    for t in fitting:
        if batch * (extent // t) >= 2:
            return t
    return fitting[0]


def _w_step_bytes(tm, ci, co, n, km):
    lane = lambda d: _round_up(max(d, 1), 128)
    km2 = 2 * km
    blocks = (ci + co) * tm * lane(n) * 4 * 2                         # in/out, double buffered
    consts = (2 * km2 * lane(n) + km2 * 2 * co * lane(ci)) * 4 * 2    # f, g, wmix (worst case x2)
    interm = (km2 * ci * lane(tm) + 3 * km2 * 2 * co * lane(tm)
              + tm * lane(km2) + tm * lane(n)) * 4                    # spectra / mix / y
    return blocks + consts + interm


def _h_step_bytes(tw, ci, co, h, km):
    lane = lambda d: _round_up(max(d, 1), 128)
    km2 = 2 * km
    blocks = (ci + co) * h * lane(tw) * 4 * 2
    consts = (km2 * lane(h) + h * lane(km2) + km2 * 2 * co * lane(ci)) * 4 * 2
    interm = (km2 * ci * lane(tw) + 3 * km2 * 2 * co * lane(tw) + h * lane(tw)) * 4
    return blocks + consts + interm


# ---------------------------------------------------------------------------
# Kernel 1: spectral transform + channel mix along the LAST (lane) axis (W path).
# x block: (Ci, TM, N) -> output block (Co, TM, N).
# ---------------------------------------------------------------------------
def _ffno_w_kernel(x_ref, f_ref, w_ref, g_ref, *rest, ci, co, km, mm_dtype):
    o_ref = rest[-1]                       # rest[:-1] = ignored aliased dst ref (if any)
    f = f_ref[...].astype(mm_dtype)        # (2Km, N)
    g = g_ref[...].astype(mm_dtype)        # (2Km, N)

    # 1) Forward rfft along the lane axis; Re/Im stacked on the sublane (mode) axis.
    parts = []
    for i in range(ci):
        xi = x_ref[i].astype(mm_dtype)                                       # (TM, N)
        parts.append(lax.dot_general(f, xi, (((1,), (1,)), ((), ())),
                                     preferred_element_type=jnp.float32))    # (2Km, TM)
    xft = jnp.stack(parts, axis=1)                                            # (2Km, Ci, TM)

    # 2) Complex per-mode channel mix: ONE mode-batched matmul on the MXU (f32 acc).
    res = lax.dot_general(w_ref[...], xft, (((2,), (1,)), ((0,), (0,))),
                          preferred_element_type=jnp.float32)                 # (2Km, 2Co, TM)
    acc = res[:km] + res[km:]                                                 # (Km, 2Co, TM)

    # 3) Inverse rfft back onto the spatial lane axis (Re/Im stacked on contraction).
    for o in range(co):
        acc_o = jnp.concatenate([acc[:, o, :], acc[:, co + o, :]], axis=0)    # (2Km, TM)
        y_o = jnp.dot(jnp.transpose(acc_o).astype(mm_dtype), g,
                      preferred_element_type=jnp.float32)                     # (TM, N)
        o_ref[o] = y_o.astype(o_ref.dtype)


# ---------------------------------------------------------------------------
# Kernel 2: spectral transform + channel mix along axis -2 (H path).
# x block: (Ci, H, TW) -> output block (Co, H, TW).  W stays the lane axis throughout.
# ---------------------------------------------------------------------------
def _ffno_h_kernel(x_ref, f_ref, w_ref, g_ref, *rest, ci, co, km, mm_dtype):
    o_ref = rest[-1]
    f = f_ref[...].astype(mm_dtype)        # (2Km, H)
    g = g_ref[...].astype(mm_dtype)        # (H, 2Km)

    parts = []
    for i in range(ci):
        xi = x_ref[i].astype(mm_dtype)                                        # (H, TW)
        parts.append(jnp.dot(f, xi, preferred_element_type=jnp.float32))      # (2Km, TW)
    xft = jnp.stack(parts, axis=1)                                            # (2Km, Ci, TW)

    res = lax.dot_general(w_ref[...], xft, (((2,), (1,)), ((0,), (0,))),
                          preferred_element_type=jnp.float32)                 # (2Km, 2Co, TW)
    acc = res[:km] + res[km:]                                                 # (Km, 2Co, TW)

    for o in range(co):
        acc_o = jnp.concatenate([acc[:, o, :], acc[:, co + o, :]], axis=0)    # (2Km, TW)
        y_o = jnp.dot(g, acc_o.astype(mm_dtype),
                      preferred_element_type=jnp.float32)                     # (H, TW)
        o_ref[o] = y_o.astype(o_ref.dtype)


# ---------------------------------------------------------------------------
# Wrappers.
# ---------------------------------------------------------------------------
def ffno_spectral_last(x, w_r, w_i, n_mode, *, in_offset=0, out_channels=None,
                       out_offset=0, dst=None, use_bf16_matmul=False,
                       single_buffer_consts=True, vmem_budget_bytes=_VMEM_TILE_BUDGET):
    """Spectral transform + mix along the last axis (W).  Consumes x channels
    [in_offset : in_offset+Ci]; writes channels [out_offset : out_offset+Co] of a
    (B, out_channels, M, N) f32 output.  If `dst` is given it is aliased into the
    output so untouched channels keep dst's values (no concat pass needed)."""
    B, C, M, N = x.shape
    Ci, Co, Km = w_r.shape
    out_channels = Co if out_channels is None else out_channels
    assert n_mode == Km and Km <= N // 2 + 1
    assert in_offset % Ci == 0 and out_offset % Co == 0
    in_blk, out_blk = in_offset // Ci, out_offset // Co

    f_np, g_np = _rfft_matrices(N, Km)
    f, g = jnp.asarray(f_np), jnp.asarray(g_np)          # (2Km, N), (2Km, N)
    wmix = _build_mix_weight(w_r, w_i)                    # (2Km, 2Co, Ci)

    est_fn = lambda t: _w_step_bytes(t, Ci, Co, N, Km)
    tm = _choose_tile(M, B, 8, est_fn, vmem_budget_bytes)
    mm_dtype = jnp.bfloat16 if use_bf16_matmul else jnp.float32
    kernel = functools.partial(_ffno_w_kernel, ci=Ci, co=Co, km=Km, mm_dtype=mm_dtype)

    in_specs = [
        pl.BlockSpec((None, Ci, tm, N), lambda b, t: (b, in_blk, t, 0)),
        _const_spec((2 * Km, N), lambda b, t: (0, 0), single_buffer_consts),
        _const_spec((2 * Km, 2 * Co, Ci), lambda b, t: (0, 0, 0), single_buffer_consts),
        _const_spec((2 * Km, N), lambda b, t: (0, 0), single_buffer_consts),
    ]
    out_spec = pl.BlockSpec((None, Co, tm, N), lambda b, t: (b, out_blk, t, 0))
    operands = [x, f, wmix, g]
    io_aliases = {}
    if dst is not None:
        in_specs.append(pl.BlockSpec((None, Co, tm, N), lambda b, t: (b, out_blk, t, 0)))
        operands.append(dst)
        io_aliases = {len(operands) - 1: 0}

    return pl.pallas_call(
        kernel,
        out_shape=jax.ShapeDtypeStruct((B, out_channels, M, N), jnp.float32),
        grid=(B, M // tm),
        in_specs=in_specs,
        out_specs=out_spec,
        input_output_aliases=io_aliases,
        compiler_params=pltpu.CompilerParams(
            dimension_semantics=("parallel", "parallel"),
            vmem_limit_bytes=_vmem_limit(est_fn(tm))),
    )(*operands)


def ffno_spectral_secondlast(x, w_r, w_i, n_mode, *, in_offset=0, out_channels=None,
                             out_offset=0, dst=None, use_bf16_matmul=False,
                             single_buffer_consts=True,
                             vmem_budget_bytes=_VMEM_TILE_BUDGET):
    """Spectral transform + mix along axis -2 (H).  Same contract as ffno_spectral_last."""
    B, C, H, W = x.shape
    Ci, Co, Km = w_r.shape
    out_channels = Co if out_channels is None else out_channels
    assert n_mode == Km and Km <= H // 2 + 1
    assert in_offset % Ci == 0 and out_offset % Co == 0
    in_blk, out_blk = in_offset // Ci, out_offset // Co

    f_np, g_np = _rfft_matrices(H, Km)
    f = jnp.asarray(f_np)                                  # (2Km, H)
    g = jnp.asarray(np.ascontiguousarray(g_np.T))          # (H, 2Km)
    wmix = _build_mix_weight(w_r, w_i)                     # (2Km, 2Co, Ci)

    est_fn = lambda t: _h_step_bytes(t, Ci, Co, H, Km)
    tw = _choose_tile(W, B, 128, est_fn, vmem_budget_bytes)   # lane dim: 128-multiples or full W
    mm_dtype = jnp.bfloat16 if use_bf16_matmul else jnp.float32
    kernel = functools.partial(_ffno_h_kernel, ci=Ci, co=Co, km=Km, mm_dtype=mm_dtype)

    in_specs = [
        pl.BlockSpec((None, Ci, H, tw), lambda b, t: (b, in_blk, 0, t)),
        _const_spec((2 * Km, H), lambda b, t: (0, 0), single_buffer_consts),
        _const_spec((2 * Km, 2 * Co, Ci), lambda b, t: (0, 0, 0), single_buffer_consts),
        _const_spec((H, 2 * Km), lambda b, t: (0, 0), single_buffer_consts),
    ]
    out_spec = pl.BlockSpec((None, Co, H, tw), lambda b, t: (b, out_blk, 0, t))
    operands = [x, f, wmix, g]
    io_aliases = {}
    if dst is not None:
        in_specs.append(pl.BlockSpec((None, Co, H, tw), lambda b, t: (b, out_blk, 0, t)))
        operands.append(dst)
        io_aliases = {len(operands) - 1: 0}

    return pl.pallas_call(
        kernel,
        out_shape=jax.ShapeDtypeStruct((B, out_channels, H, W), jnp.float32),
        grid=(B, W // tw),
        in_specs=in_specs,
        out_specs=out_spec,
        input_output_aliases=io_aliases,
        compiler_params=pltpu.CompilerParams(
            dimension_semantics=("parallel", "parallel"),
            vmem_limit_bytes=_vmem_limit(est_fn(tw))),
    )(*operands)


# ---------------------------------------------------------------------------
# FFNOConv2d forward (matches the torch module semantics).
# ---------------------------------------------------------------------------
@functools.partial(jax.jit, static_argnames=("n_modes", "use_bf16_matmul", "conservative"))
def ffno_conv2d_forward(x, w1_r, w1_i, w2_r, w2_i, n_modes, use_bf16_matmul=False,
                        conservative=False):
    B, C, H, W = x.shape
    n_mode_1, n_mode_2 = n_modes
    ci1, co1 = w1_r.shape[0], w1_r.shape[1]      # H-path (weight_1, second chunk)
    ci2, co2 = w2_r.shape[0], w2_r.shape[1]      # W-path (weight_2, first chunk)
    c_split = C - C // 2                          # torch.chunk(2): first chunk = ceil(C/2)
    assert ci2 == c_split and ci1 == C // 2
    c_out = co1 + co2
    sb = not conservative

    can_fuse = (not conservative and co1 > 0 and ci1 > 0
                and co2 % co1 == 0 and c_split % ci1 == 0)
    if can_fuse:
        # W-path writes channels [0:co2] of the shared (B, c_out, H, W) buffer ...
        part = ffno_spectral_last(x, w2_r, w2_i, n_mode_2, in_offset=0,
                                  out_channels=c_out, out_offset=0,
                                  use_bf16_matmul=use_bf16_matmul,
                                  single_buffer_consts=sb)
        # ... and the H-path fills channels [co2:] in place via input_output_aliases.
        return ffno_spectral_secondlast(x, w1_r, w1_i, n_mode_1, in_offset=c_split,
                                        out_channels=c_out, out_offset=co2, dst=part,
                                        use_bf16_matmul=use_bf16_matmul,
                                        single_buffer_consts=sb)

    # Fallback (odd channel splits / conservative mode): separate halves + concat.
    xx = ffno_spectral_last(x[:, :c_split], w2_r, w2_i, n_mode_2,
                            use_bf16_matmul=use_bf16_matmul, single_buffer_consts=sb)
    xy = ffno_spectral_secondlast(x[:, c_split:], w1_r, w1_i, n_mode_1,
                                  use_bf16_matmul=use_bf16_matmul, single_buffer_consts=sb)
    return jnp.concatenate([xx, xy], axis=1)


# ---------------------------------------------------------------------------
# Pure-JAX reference (jnp.fft based) for validation.
# ---------------------------------------------------------------------------
def reference_forward(x, w1, w2, n_modes):
    B, C, H, W = x.shape
    c_split = C - C // 2
    xx, xy = x[:, :c_split], x[:, c_split:]
    n1, n2 = n_modes

    x_ft = jnp.fft.rfft(xx, norm='ortho', axis=-1)
    Kw = x_ft.shape[-1]
    out_ft = jnp.zeros((B, w2.shape[1], H, Kw), dtype=jnp.complex64)
    out_ft = out_ft.at[..., :n2].set(jnp.einsum('bixy,ioy->boxy', x_ft[..., :n2], w2))
    xx_out = jnp.fft.irfft(out_ft, n=W, axis=-1, norm='ortho')

    y_ft = jnp.fft.rfft(xy, norm='ortho', axis=-2)
    Kh = y_ft.shape[-2]
    out_ft2 = jnp.zeros((B, w1.shape[1], Kh, W), dtype=jnp.complex64)
    out_ft2 = out_ft2.at[..., :n1, :].set(
        jnp.einsum('bixy,iox->boxy', y_ft[..., :n1, :], w1))
    xy_out = jnp.fft.irfft(out_ft2, n=H, axis=-2, norm='ortho')

    return jnp.concatenate([xx_out, xy_out], axis=1)


if __name__ == "__main__":
    key = jax.random.PRNGKey(0)
    B, C_in, C_out, H, W = 2, 4, 4, 16, 16
    n_modes = (5, 6)                       # (H-axis modes, W-axis modes); <= N//2+1 = 9

    k1, k2, k3, k4, k5 = jax.random.split(key, 5)
    x = jax.random.normal(k1, (B, C_in, H, W), jnp.float32)

    ci1, co1 = C_in // 2, C_out // 2
    ci2, co2 = C_in - C_in // 2, C_out - C_out // 2
    w1_r = jax.random.normal(k2, (ci1, co1, n_modes[0]), jnp.float32) * np.sqrt(2.0 / (co1 * n_modes[0]))
    w2_r = jax.random.normal(k3, (ci2, co2, n_modes[1]), jnp.float32) * np.sqrt(2.0 / (co2 * n_modes[1]))
    w1_i = jax.random.normal(k4, (ci1, co1, n_modes[0]), jnp.float32) * 0.1
    w2_i = jax.random.normal(k5, (ci2, co2, n_modes[1]), jnp.float32) * 0.1

    ref = reference_forward(x, w1_r + 1j * w1_i, w2_r + 1j * w2_i, n_modes)

    def _run(conservative):
        o = ffno_conv2d_forward(x, w1_r, w1_i, w2_r, w2_i, n_modes=n_modes,
                                conservative=conservative)
        o_bf16 = ffno_conv2d_forward(x, w1_r, w1_i, w2_r, w2_i, n_modes=n_modes,
                                     use_bf16_matmul=True, conservative=conservative)
        return jax.block_until_ready(o), jax.block_until_ready(o_bf16)

    try:
        out, out_bf16 = _run(False)
        conservative_mode = False
    except Exception:
        # Portability fallback: disable pl.Buffered(1) single-buffering and the aliased
        # direct-write output assembly if the local Pallas build rejects them.
        out, out_bf16 = _run(True)
        conservative_mode = True

    assert out.shape == (B, C_out, H, W)
    np.testing.assert_allclose(np.asarray(out), np.asarray(ref), atol=2e-4, rtol=2e-4)
    # bf16 is used only for the DFT matmuls (mix stays f32), f32 accumulation.
    np.testing.assert_allclose(np.asarray(out_bf16), np.asarray(ref), atol=5e-2, rtol=5e-2)

    # Odd channel split exercises the concatenate fallback path.
    k6, k7, k8, k9, k10 = jax.random.split(jax.random.PRNGKey(1), 5)
    C2, nm2 = 5, (4, 3)
    x2 = jax.random.normal(k6, (1, C2, 16, 16), jnp.float32)
    c1i, c1o = C2 // 2, C2 // 2
    c2i, c2o = C2 - C2 // 2, C2 - C2 // 2
    v1_r = jax.random.normal(k7, (c1i, c1o, nm2[0]), jnp.float32) * 0.3
    v1_i = jax.random.normal(k8, (c1i, c1o, nm2[0]), jnp.float32) * 0.1
    v2_r = jax.random.normal(k9, (c2i, c2o, nm2[1]), jnp.float32) * 0.3
    v2_i = jax.random.normal(k10, (c2i, c2o, nm2[1]), jnp.float32) * 0.1
    ref2 = reference_forward(x2, v1_r + 1j * v1_i, v2_r + 1j * v2_i, nm2)
    out2 = jax.block_until_ready(
        ffno_conv2d_forward(x2, v1_r, v1_i, v2_r, v2_i, n_modes=nm2,
                            conservative=conservative_mode))
    np.testing.assert_allclose(np.asarray(out2), np.asarray(ref2), atol=2e-4, rtol=2e-4)

    print("KERNEL_OK")
</pallas_src>

<mosaic_0001>
module attributes {stable_mosaic.version = 11 : i64} {
  func.func @_ffno_h_kernel(%arg0: i32, %arg1: i32, %arg2: memref<1x2x16x16xf32, #tpu.memory_space<vmem>>, %arg3: memref<10x16xf32, #tpu.memory_space<vmem>>, %arg4: memref<10x4x2xf32, #tpu.memory_space<vmem>>, %arg5: memref<16x10xf32, #tpu.memory_space<vmem>>, %arg6: memref<1x2x16x16xf32, #tpu.memory_space<vmem>>, %arg7: memref<1x2x16x16xf32, #tpu.memory_space<vmem>>) attributes {dimension_semantics = [#tpu.dimension_semantics<parallel>, #tpu.dimension_semantics<parallel>], iteration_bounds = array<i64: 2, 1>, scalar_prefetch = 0 : i64, scratch_operands = 0 : i64, tpu.core_type = #tpu.core_type<tc>, window_params = [{transform_indices = @transform_0, window_bounds = array<i64: 1, 2, 16, 16>}, {pipeline_mode = #tpu.pipeline_mode<synchronous>, transform_indices = @transform_1, window_bounds = array<i64: 10, 16>}, {pipeline_mode = #tpu.pipeline_mode<synchronous>, transform_indices = @transform_2, window_bounds = array<i64: 10, 4, 2>}, {pipeline_mode = #tpu.pipeline_mode<synchronous>, transform_indices = @transform_3, window_bounds = array<i64: 16, 10>}, {transform_indices = @transform_4, window_bounds = array<i64: 1, 2, 16, 16>}, {transform_indices = @transform_5, window_bounds = array<i64: 1, 2, 16, 16>}]} {
    %c0 = arith.constant 0 : index
    %c0_0 = arith.constant 0 : index
    %0 = vector.load %arg3[%c0, %c0_0] : memref<10x16xf32, #tpu.memory_space<vmem>>, vector<10x16xf32>
    %c0_1 = arith.constant 0 : index
    %c0_2 = arith.constant 0 : index
    %1 = vector.load %arg5[%c0_1, %c0_2] : memref<16x10xf32, #tpu.memory_space<vmem>>, vector<16x10xf32>
    %c0_3 = arith.constant 0 : index
    %c0_4 = arith.constant 0 : index
    %c0_5 = arith.constant 0 : index
    %c0_6 = arith.constant 0 : index
    %2 = vector.load %arg2[%c0_3, %c0_4, %c0_5, %c0_6] : memref<1x2x16x16xf32, #tpu.memory_space<vmem>>, vector<1x1x16x16xf32>
    %3 = vector.shape_cast %2 : vector<1x1x16x16xf32> to vector<16x16xf32>
    %cst = arith.constant dense<0.000000e+00> : vector<10x16xf32>
    %4 = tpu.matmul %0, %3, %cst {dimension_numbers = #tpu.dot_dimension_numbers<[1], [0], [0], [1], [0, 0, 1, 1], [], []>} : vector<10x16xf32>, vector<16x16xf32>, vector<10x16xf32> -> vector<10x16xf32>
    %c0_7 = arith.constant 0 : index
    %c1 = arith.constant 1 : index
    %c0_8 = arith.constant 0 : index
    %c0_9 = arith.constant 0 : index
    %5 = vector.load %arg2[%c0_7, %c1, %c0_8, %c0_9] : memref<1x2x16x16xf32, #tpu.memory_space<vmem>>, vector<1x1x16x16xf32>
    %6 = vector.shape_cast %5 : vector<1x1x16x16xf32> to vector<16x16xf32>
    %cst_10 = arith.constant dense<0.000000e+00> : vector<10x16xf32>
    %7 = tpu.matmul %0, %6, %cst_10 {dimension_numbers = #tpu.dot_dimension_numbers<[1], [0], [0], [1], [0, 0, 1, 1], [], []>} : vector<10x16xf32>, vector<16x16xf32>, vector<10x16xf32> -> vector<10x16xf32>
    %8 = vector.shape_cast %4 : vector<10x16xf32> to vector<10x1x16xf32>
    %9 = vector.shape_cast %7 : vector<10x16xf32> to vector<10x1x16xf32>
    %10 = tpu.concatenate %8, %9 in 1 : vector<10x1x16xf32>, vector<10x1x16xf32> -> vector<10x2x16xf32>
    %c0_11 = arith.constant 0 : index
    %c0_12 = arith.constant 0 : index
    %c0_13 = arith.constant 0 : index
    %11 = vector.load %arg4[%c0_11, %c0_12, %c0_13] : memref<10x4x2xf32, #tpu.memory_space<vmem>>, vector<10x4x2xf32>
    %cst_14 = arith.constant dense<0.000000e+00> : vector<10x4x16xf32>
    %12 = tpu.matmul %11, %10, %cst_14 {dimension_numbers = #tpu.dot_dimension_numbers<[2], [1], [1], [2], [0, 0, 0, 1, 1, 2], [0], [0]>} : vector<10x4x2xf32>, vector<10x2x16xf32>, vector<10x4x16xf32> -> vector<10x4x16xf32>
    %13 = vector.extract_strided_slice %12 {offsets = [0, 0, 0], sizes = [5, 4, 16], strides = [1, 1, 1]} : vector<10x4x16xf32> to vector<5x4x16xf32>
    %14 = vector.extract_strided_slice %12 {offsets = [5, 0, 0], sizes = [5, 4, 16], strides = [1, 1, 1]} : vector<10x4x16xf32> to vector<5x4x16xf32>
    %15 = arith.addf %13, %14 : vector<5x4x16xf32>
    %16 = vector.extract_strided_slice %15 {offsets = [0, 0, 0], sizes = [5, 1, 16], strides = [1, 1, 1]} : vector<5x4x16xf32> to vector<5x1x16xf32>
    %17 = vector.shape_cast %16 : vector<5x1x16xf32> to vector<5x16xf32>
    %18 = vector.extract_strided_slice %15 {offsets = [0, 2, 0], sizes = [5, 1, 16], strides = [1, 1, 1]} : vector<5x4x16xf32> to vector<5x1x16xf32>
    %19 = vector.shape_cast %18 : vector<5x1x16xf32> to vector<5x16xf32>
    %20 = tpu.concatenate %17, %19 in 0 : vector<5x16xf32>, vector<5x16xf32> -> vector<10x16xf32>
    %cst_15 = arith.constant dense<0.000000e+00> : vector<16x16xf32>
    %21 = tpu.matmul %1, %20, %cst_15 {dimension_numbers = #tpu.dot_dimension_numbers<[1], [0], [0], [1], [0, 0, 1, 1], [], []>} : vector<16x10xf32>, vector<10x16xf32>, vector<16x16xf32> -> vector<16x16xf32>
    %c0_16 = arith.constant 0 : index
    %c0_17 = arith.constant 0 : index
    %c0_18 = arith.constant 0 : index
    %c0_19 = arith.constant 0 : index
    %22 = vector.load %arg7[%c0_16, %c0_17, %c0_18, %c0_19] : memref<1x2x16x16xf32, #tpu.memory_space<vmem>>, vector<1x1x16x16xf32>
    %23 = vector.shape_cast %22 : vector<1x1x16x16xf32> to vector<16x16xf32>
    %24 = vector.shape_cast %21 : vector<16x16xf32> to vector<1x1x16x16xf32>
    tpu.vector_store %arg7[%c0_16, %c0_17, %c0_18, %c0_19], %24 {strides = array<i32>} : memref<1x2x16x16xf32, #tpu.memory_space<vmem>>, vector<1x1x16x16xf32>,
    %25 = vector.extract_strided_slice %15 {offsets = [0, 1, 0], sizes = [5, 1, 16], strides = [1, 1, 1]} : vector<5x4x16xf32> to vector<5x1x16xf32>
    %26 = vector.shape_cast %25 : vector<5x1x16xf32> to vector<5x16xf32>
    %27 = vector.extract_strided_slice %15 {offsets = [0, 3, 0], sizes = [5, 1, 16], strides = [1, 1, 1]} : vector<5x4x16xf32> to vector<5x1x16xf32>
    %28 = vector.shape_cast %27 : vector<5x1x16xf32> to vector<5x16xf32>
    %29 = tpu.concatenate %26, %28 in 0 : vector<5x16xf32>, vector<5x16xf32> -> vector<10x16xf32>
    %cst_20 = arith.constant dense<0.000000e+00> : vector<16x16xf32>
    %30 = tpu.matmul %1, %29, %cst_20 {dimension_numbers = #tpu.dot_dimension_numbers<[1], [0], [0], [1], [0, 0, 1, 1], [], []>} : vector<16x10xf32>, vector<10x16xf32>, vector<16x16xf32> -> vector<16x16xf32>
    %c0_21 = arith.constant 0 : index
    %c1_22 = arith.constant 1 : index
    %c0_23 = arith.constant 0 : index
    %c0_24 = arith.constant 0 : index
    %31 = vector.load %arg7[%c0_21, %c1_22, %c0_23, %c0_24] : memref<1x2x16x16xf32, #tpu.memory_space<vmem>>, vector<1x1x16x16xf32>
    %32 = vector.shape_cast %31 : vector<1x1x16x16xf32> to vector<16x16xf32>
    %33 = vector.shape_cast %30 : vector<16x16xf32> to vector<1x1x16x16xf32>
    tpu.vector_store %arg7[%c0_21, %c1_22, %c0_23, %c0_24], %33 {strides = array<i32>} : memref<1x2x16x16xf32, #tpu.memory_space<vmem>>, vector<1x1x16x16xf32>,
    return
  }
  func.func @transform_0(%arg0: i32, %arg1: i32) -> (i32, i32, i32, i32) {
    %c1_i32 = arith.constant 1 : i32
    %c0_i32 = arith.constant 0 : i32
    %c0_i32_0 = arith.constant 0 : i32
    return %arg0, %c1_i32, %c0_i32, %arg1 : i32, i32, i32, i32
  }
  func.func @transform_1(%arg0: i32, %arg1: i32) -> (i32, i32) {
    %c0_i32 = arith.constant 0 : i32
    %c0_i32_0 = arith.constant 0 : i32
    %c0_i32_1 = arith.constant 0 : i32
    return %c0_i32, %c0_i32_0 : i32, i32
  }
  func.func @transform_2(%arg0: i32, %arg1: i32) -> (i32, i32, i32) {
    %c0_i32 = arith.constant 0 : i32
    %c0_i32_0 = arith.constant 0 : i32
    %c0_i32_1 = arith.constant 0 : i32
    %c0_i32_2 = arith.constant 0 : i32
    return %c0_i32, %c0_i32_0, %c0_i32_1 : i32, i32, i32
  }
  func.func @transform_3(%arg0: i32, %arg1: i32) -> (i32, i32) {
    %c0_i32 = arith.constant 0 : i32
    %c0_i32_0 = arith.constant 0 : i32
    %c0_i32_1 = arith.constant 0 : i32
    return %c0_i32, %c0_i32_0 : i32, i32
  }
  func.func @transform_4(%arg0: i32, %arg1: i32) -> (i32, i32, i32, i32) {
    %c1_i32 = arith.constant 1 : i32
    %c0_i32 = arith.constant 0 : i32
    %c0_i32_0 = arith.constant 0 : i32
    return %arg0, %c1_i32, %c0_i32, %arg1 : i32, i32, i32, i32
  }
  func.func @transform_5(%arg0: i32, %arg1: i32) -> (i32, i32, i32, i32) {
    %c1_i32 = arith.constant 1 : i32
    %c0_i32 = arith.constant 0 : i32
    %c0_i32_0 = arith.constant 0 : i32
    return %arg0, %c1_i32, %c0_i32, %arg1 : i32, i32, i32, i32
  }
}

module attributes {stable_mosaic.version = 11 : i64} {
  func.func @_ffno_w_kernel(%arg0: i32, %arg1: i32, %arg2: memref<1x2x16x16xf32, #tpu.memory_space<vmem>>, %arg3: memref<12x16xf32, #tpu.memory_space<vmem>>, %arg4: memref<12x4x2xf32, #tpu.memory_space<vmem>>, %arg5: memref<12x16xf32, #tpu.memory_space<vmem>>, %arg6: memref<1x2x16x16xf32, #tpu.memory_space<vmem>>) attributes {dimension_semantics = [#tpu.dimension_semantics<parallel>, #tpu.dimension_semantics<parallel>], iteration_bounds = array<i64: 2, 1>, scalar_prefetch = 0 : i64, scratch_operands = 0 : i64, tpu.core_type = #tpu.core_type<tc>, window_params = [{transform_indices = @transform_0, window_bounds = array<i64: 1, 2, 16, 16>}, {pipeline_mode = #tpu.pipeline_mode<synchronous>, transform_indices = @transform_1, window_bounds = array<i64: 12, 16>}, {pipeline_mode = #tpu.pipeline_mode<synchronous>, transform_indices = @transform_2, window_bounds = array<i64: 12, 4, 2>}, {pipeline_mode = #tpu.pipeline_mode<synchronous>, transform_indices = @transform_3, window_bounds = array<i64: 12, 16>}, {transform_indices = @transform_4, window_bounds = array<i64: 1, 2, 16, 16>}]} {
    %c0 = arith.constant 0 : index
    %c0_0 = arith.constant 0 : index
    %0 = vector.load %arg3[%c0, %c0_0] : memref<12x16xf32, #tpu.memory_space<vmem>>, vector<12x16xf32>
    %c0_1 = arith.constant 0 : index
    %c0_2 = arith.constant 0 : index
    %1 = vector.load %arg5[%c0_1, %c0_2] : memref<12x16xf32, #tpu.memory_space<vmem>>, vector<12x16xf32>
    %c0_3 = arith.constant 0 : index
    %c0_4 = arith.constant 0 : index
    %c0_5 = arith.constant 0 : index
    %c0_6 = arith.constant 0 : index
    %2 = vector.load %arg2[%c0_3, %c0_4, %c0_5, %c0_6] : memref<1x2x16x16xf32, #tpu.memory_space<vmem>>, vector<1x1x16x16xf32>
    %3 = vector.shape_cast %2 : vector<1x1x16x16xf32> to vector<16x16xf32>
    %cst = arith.constant dense<0.000000e+00> : vector<12x16xf32>
    %4 = tpu.matmul %0, %3, %cst {dimension_numbers = #tpu.dot_dimension_numbers<[1], [1], [0], [0], [0, 0, 1, 0], [], []>} : vector<12x16xf32>, vector<16x16xf32>, vector<12x16xf32> -> vector<12x16xf32>
    %c0_7 = arith.constant 0 : index
    %c1 = arith.constant 1 : index
    %c0_8 = arith.constant 0 : index
    %c0_9 = arith.constant 0 : index
    %5 = vector.load %arg2[%c0_7, %c1, %c0_8, %c0_9] : memref<1x2x16x16xf32, #tpu.memory_space<vmem>>, vector<1x1x16x16xf32>
    %6 = vector.shape_cast %5 : vector<1x1x16x16xf32> to vector<16x16xf32>
    %cst_10 = arith.constant dense<0.000000e+00> : vector<12x16xf32>
    %7 = tpu.matmul %0, %6, %cst_10 {dimension_numbers = #tpu.dot_dimension_numbers<[1], [1], [0], [0], [0, 0, 1, 0], [], []>} : vector<12x16xf32>, vector<16x16xf32>, vector<12x16xf32> -> vector<12x16xf32>
    %8 = vector.shape_cast %4 : vector<12x16xf32> to vector<12x1x16xf32>
    %9 = vector.shape_cast %7 : vector<12x16xf32> to vector<12x1x16xf32>
    %10 = tpu.concatenate %8, %9 in 1 : vector<12x1x16xf32>, vector<12x1x16xf32> -> vector<12x2x16xf32>
    %c0_11 = arith.constant 0 : index
    %c0_12 = arith.constant 0 : index
    %c0_13 = arith.constant 0 : index
    %11 = vector.load %arg4[%c0_11, %c0_12, %c0_13] : memref<12x4x2xf32, #tpu.memory_space<vmem>>, vector<12x4x2xf32>
    %cst_14 = arith.constant dense<0.000000e+00> : vector<12x4x16xf32>
    %12 = tpu.matmul %11, %10, %cst_14 {dimension_numbers = #tpu.dot_dimension_numbers<[2], [1], [1], [2], [0, 0, 0, 1, 1, 2], [0], [0]>} : vector<12x4x2xf32>, vector<12x2x16xf32>, vector<12x4x16xf32> -> vector<12x4x16xf32>
    %13 = vector.extract_strided_slice %12 {offsets = [0, 0, 0], sizes = [6, 4, 16], strides = [1, 1, 1]} : vector<12x4x16xf32> to vector<6x4x16xf32>
    %14 = vector.extract_strided_slice %12 {offsets = [6, 0, 0], sizes = [6, 4, 16], strides = [1, 1, 1]} : vector<12x4x16xf32> to vector<6x4x16xf32>
    %15 = arith.addf %13, %14 : vector<6x4x16xf32>
    %16 = vector.extract_strided_slice %15 {offsets = [0, 0, 0], sizes = [6, 1, 16], strides = [1, 1, 1]} : vector<6x4x16xf32> to vector<6x1x16xf32>
    %17 = vector.shape_cast %16 : vector<6x1x16xf32> to vector<6x16xf32>
    %18 = vector.extract_strided_slice %15 {offsets = [0, 2, 0], sizes = [6, 1, 16], strides = [1, 1, 1]} : vector<6x4x16xf32> to vector<6x1x16xf32>
    %19 = vector.shape_cast %18 : vector<6x1x16xf32> to vector<6x16xf32>
    %20 = tpu.concatenate %17, %19 in 0 : vector<6x16xf32>, vector<6x16xf32> -> vector<12x16xf32>
    %21 = tpu.transpose %20, [1, 0] : vector<12x16xf32> -> vector<16x12xf32>
    %cst_15 = arith.constant dense<0.000000e+00> : vector<16x16xf32>
    %22 = tpu.matmul %21, %1, %cst_15 {dimension_numbers = #tpu.dot_dimension_numbers<[1], [0], [0], [1], [0, 0, 1, 1], [], []>} : vector<16x12xf32>, vector<12x16xf32>, vector<16x16xf32> -> vector<16x16xf32>
    %c0_16 = arith.constant 0 : index
    %c0_17 = arith.constant 0 : index
    %c0_18 = arith.constant 0 : index
    %c0_19 = arith.constant 0 : index
    %23 = vector.load %arg6[%c0_16, %c0_17, %c0_18, %c0_19] : memref<1x2x16x16xf32, #tpu.memory_space<vmem>>, vector<1x1x16x16xf32>
    %24 = vector.shape_cast %23 : vector<1x1x16x16xf32> to vector<16x16xf32>
    %25 = vector.shape_cast %22 : vector<16x16xf32> to vector<1x1x16x16xf32>
    tpu.vector_store %arg6[%c0_16, %c0_17, %c0_18, %c0_19], %25 {strides = array<i32>} : memref<1x2x16x16xf32, #tpu.memory_space<vmem>>, vector<1x1x16x16xf32>,
    %26 = vector.extract_strided_slice %15 {offsets = [0, 1, 0], sizes = [6, 1, 16], strides = [1, 1, 1]} : vector<6x4x16xf32> to vector<6x1x16xf32>
    %27 = vector.shape_cast %26 : vector<6x1x16xf32> to vector<6x16xf32>
    %28 = vector.extract_strided_slice %15 {offsets = [0, 3, 0], sizes = [6, 1, 16], strides = [1, 1, 1]} : vector<6x4x16xf32> to vector<6x1x16xf32>
    %29 = vector.shape_cast %28 : vector<6x1x16xf32> to vector<6x16xf32>
    %30 = tpu.concatenate %27, %29 in 0 : vector<6x16xf32>, vector<6x16xf32> -> vector<12x16xf32>
    %31 = tpu.transpose %30, [1, 0] : vector<12x16xf32> -> vector<16x12xf32>
    %cst_20 = arith.constant dense<0.000000e+00> : vector<16x16xf32>
    %32 = tpu.matmul %31, %1, %cst_20 {dimension_numbers = #tpu.dot_dimension_numbers<[1], [0], [0], [1], [0, 0, 1, 1], [], []>} : vector<16x12xf32>, vector<12x16xf32>, vector<16x16xf32> -> vector<16x16xf32>
    %c0_21 = arith.constant 0 : index
    %c1_22 = arith.constant 1 : index
    %c0_23 = arith.constant 0 : index
    %c0_24 = arith.constant 0 : index
    %33 = vector.load %arg6[%c0_21, %c1_22, %c0_23, %c0_24] : memref<1x2x16x16xf32, #tpu.memory_space<vmem>>, vector<1x1x16x16xf32>
    %34 = vector.shape_cast %33 : vector<1x1x16x16xf32> to vector<16x16xf32>
    %35 = vector.shape_cast %32 : vector<16x16xf32> to vector<1x1x16x16xf32>
    tpu.vector_store %arg6[%c0_21, %c1_22, %c0_23, %c0_24], %35 {strides = array<i32>} : memref<1x2x16x16xf32, #tpu.memory_space<vmem>>, vector<1x1x16x16xf32>,
    return
  }
  func.func @transform_0(%arg0: i32, %arg1: i32) -> (i32, i32, i32, i32) {
    %c0_i32 = arith.constant 0 : i32
    %c0_i32_0 = arith.constant 0 : i32
    %c0_i32_1 = arith.constant 0 : i32
    return %arg0, %c0_i32, %arg1, %c0_i32_0 : i32, i32, i32, i32
  }
  func.func @transform_1(%arg0: i32, %arg1: i32) -> (i32, i32) {
    %c0_i32 = arith.constant 0 : i32
    %c0_i32_0 = arith.constant 0 : i32
    %c0_i32_1 = arith.constant 0 : i32
    return %c0_i32, %c0_i32_0 : i32, i32
  }
  func.func @transform_2(%arg0: i32, %arg1: i32) -> (i32, i32, i32) {
    %c0_i32 = arith.constant 0 : i32
    %c0_i32_0 = arith.constant 0 : i32
    %c0_i32_1 = arith.constant 0 : i32
    %c0_i32_2 = arith.constant 0 : i32
    return %c0_i32, %c0_i32_0, %c0_i32_1 : i32, i32, i32
  }
  func.func @transform_3(%arg0: i32, %arg1: i32) -> (i32, i32) {
    %c0_i32 = arith.constant 0 : i32
    %c0_i32_0 = arith.constant 0 : i32
    %c0_i32_1 = arith.constant 0 : i32
    return %c0_i32, %c0_i32_0 : i32, i32
  }
  func.func @transform_4(%arg0: i32, %arg1: i32) -> (i32, i32, i32, i32) {
    %c0_i32 = arith.constant 0 : i32
    %c0_i32_0 = arith.constant 0 : i32
    %c0_i32_1 = arith.constant 0 : i32
    return %arg0, %c0_i32, %arg1, %c0_i32_0 : i32, i32, i32, i32
  }
}

module attributes {stable_mosaic.version = 11 : i64} {
  func.func @_ffno_h_kernel(%arg0: i32, %arg1: i32, %arg2: memref<1x2x16x16xf32, #tpu.memory_space<vmem>>, %arg3: memref<10x16xf32, #tpu.memory_space<vmem>>, %arg4: memref<10x4x2xf32, #tpu.memory_space<vmem>>, %arg5: memref<16x10xf32, #tpu.memory_space<vmem>>, %arg6: memref<1x2x16x16xf32, #tpu.memory_space<vmem>>) attributes {dimension_semantics = [#tpu.dimension_semantics<parallel>, #tpu.dimension_semantics<parallel>], iteration_bounds = array<i64: 2, 1>, scalar_prefetch = 0 : i64, scratch_operands = 0 : i64, tpu.core_type = #tpu.core_type<tc>, window_params = [{transform_indices = @transform_0, window_bounds = array<i64: 1, 2, 16, 16>}, {pipeline_mode = #tpu.pipeline_mode<synchronous>, transform_indices = @transform_1, window_bounds = array<i64: 10, 16>}, {pipeline_mode = #tpu.pipeline_mode<synchronous>, transform_indices = @transform_2, window_bounds = array<i64: 10, 4, 2>}, {pipeline_mode = #tpu.pipeline_mode<synchronous>, transform_indices = @transform_3, window_bounds = array<i64: 16, 10>}, {transform_indices = @transform_4, window_bounds = array<i64: 1, 2, 16, 16>}]} {
    %c0 = arith.constant 0 : index
    %c0_0 = arith.constant 0 : index
    %0 = vector.load %arg3[%c0, %c0_0] : memref<10x16xf32, #tpu.memory_space<vmem>>, vector<10x16xf32>
    %c0_1 = arith.constant 0 : index
    %c0_2 = arith.constant 0 : index
    %1 = vector.load %arg5[%c0_1, %c0_2] : memref<16x10xf32, #tpu.memory_space<vmem>>, vector<16x10xf32>
    %c0_3 = arith.constant 0 : index
    %c0_4 = arith.constant 0 : index
    %c0_5 = arith.constant 0 : index
    %c0_6 = arith.constant 0 : index
    %2 = vector.load %arg2[%c0_3, %c0_4, %c0_5, %c0_6] : memref<1x2x16x16xf32, #tpu.memory_space<vmem>>, vector<1x1x16x16xf32>
    %3 = vector.shape_cast %2 : vector<1x1x16x16xf32> to vector<16x16xf32>
    %cst = arith.constant dense<0.000000e+00> : vector<10x16xf32>
    %4 = tpu.matmul %0, %3, %cst {dimension_numbers = #tpu.dot_dimension_numbers<[1], [0], [0], [1], [0, 0, 1, 1], [], []>} : vector<10x16xf32>, vector<16x16xf32>, vector<10x16xf32> -> vector<10x16xf32>
    %c0_7 = arith.constant 0 : index
    %c1 = arith.constant 1 : index
    %c0_8 = arith.constant 0 : index
    %c0_9 = arith.constant 0 : index
    %5 = vector.load %arg2[%c0_7, %c1, %c0_8, %c0_9] : memref<1x2x16x16xf32, #tpu.memory_space<vmem>>, vector<1x1x16x16xf32>
    %6 = vector.shape_cast %5 : vector<1x1x16x16xf32> to vector<16x16xf32>
    %cst_10 = arith.constant dense<0.000000e+00> : vector<10x16xf32>
    %7 = tpu.matmul %0, %6, %cst_10 {dimension_numbers = #tpu.dot_dimension_numbers<[1], [0], [0], [1], [0, 0, 1, 1], [], []>} : vector<10x16xf32>, vector<16x16xf32>, vector<10x16xf32> -> vector<10x16xf32>
    %8 = vector.shape_cast %4 : vector<10x16xf32> to vector<10x1x16xf32>
    %9 = vector.shape_cast %7 : vector<10x16xf32> to vector<10x1x16xf32>
    %10 = tpu.concatenate %8, %9 in 1 : vector<10x1x16xf32>, vector<10x1x16xf32> -> vector<10x2x16xf32>
    %c0_11 = arith.constant 0 : index
    %c0_12 = arith.constant 0 : index
    %c0_13 = arith.constant 0 : index
    %11 = vector.load %arg4[%c0_11, %c0_12, %c0_13] : memref<10x4x2xf32, #tpu.memory_space<vmem>>, vector<10x4x2xf32>
    %cst_14 = arith.constant dense<0.000000e+00> : vector<10x4x16xf32>
    %12 = tpu.matmul %11, %10, %cst_14 {dimension_numbers = #tpu.dot_dimension_numbers<[2], [1], [1], [2], [0, 0, 0, 1, 1, 2], [0], [0]>} : vector<10x4x2xf32>, vector<10x2x16xf32>, vector<10x4x16xf32> -> vector<10x4x16xf32>
    %13 = vector.extract_strided_slice %12 {offsets = [0, 0, 0], sizes = [5, 4, 16], strides = [1, 1, 1]} : vector<10x4x16xf32> to vector<5x4x16xf32>
    %14 = vector.extract_strided_slice %12 {offsets = [5, 0, 0], sizes = [5, 4, 16], strides = [1, 1, 1]} : vector<10x4x16xf32> to vector<5x4x16xf32>
    %15 = arith.addf %13, %14 : vector<5x4x16xf32>
    %16 = vector.extract_strided_slice %15 {offsets = [0, 0, 0], sizes = [5, 1, 16], strides = [1, 1, 1]} : vector<5x4x16xf32> to vector<5x1x16xf32>
    %17 = vector.shape_cast %16 : vector<5x1x16xf32> to vector<5x16xf32>
    %18 = vector.extract_strided_slice %15 {offsets = [0, 2, 0], sizes = [5, 1, 16], strides = [1, 1, 1]} : vector<5x4x16xf32> to vector<5x1x16xf32>
    %19 = vector.shape_cast %18 : vector<5x1x16xf32> to vector<5x16xf32>
    %20 = tpu.concatenate %17, %19 in 0 : vector<5x16xf32>, vector<5x16xf32> -> vector<10x16xf32>
    %cst_15 = arith.constant dense<0.000000e+00> : vector<16x16xf32>
    %21 = tpu.matmul %1, %20, %cst_15 {dimension_numbers = #tpu.dot_dimension_numbers<[1], [0], [0], [1], [0, 0, 1, 1], [], []>} : vector<16x10xf32>, vector<10x16xf32>, vector<16x16xf32> -> vector<16x16xf32>
    %c0_16 = arith.constant 0 : index
    %c0_17 = arith.constant 0 : index
    %c0_18 = arith.constant 0 : index
    %c0_19 = arith.constant 0 : index
    %22 = vector.load %arg6[%c0_16, %c0_17, %c0_18, %c0_19] : memref<1x2x16x16xf32, #tpu.memory_space<vmem>>, vector<1x1x16x16xf32>
    %23 = vector.shape_cast %22 : vector<1x1x16x16xf32> to vector<16x16xf32>
    %24 = vector.shape_cast %21 : vector<16x16xf32> to vector<1x1x16x16xf32>
    tpu.vector_store %arg6[%c0_16, %c0_17, %c0_18, %c0_19], %24 {strides = array<i32>} : memref<1x2x16x16xf32, #tpu.memory_space<vmem>>, vector<1x1x16x16xf32>,
    %25 = vector.extract_strided_slice %15 {offsets = [0, 1, 0], sizes = [5, 1, 16], strides = [1, 1, 1]} : vector<5x4x16xf32> to vector<5x1x16xf32>
    %26 = vector.shape_cast %25 : vector<5x1x16xf32> to vector<5x16xf32>
    %27 = vector.extract_strided_slice %15 {offsets = [0, 3, 0], sizes = [5, 1, 16], strides = [1, 1, 1]} : vector<5x4x16xf32> to vector<5x1x16xf32>
    %28 = vector.shape_cast %27 : vector<5x1x16xf32> to vector<5x16xf32>
    %29 = tpu.concatenate %26, %28 in 0 : vector<5x16xf32>, vector<5x16xf32> -> vector<10x16xf32>
    %cst_20 = arith.constant dense<0.000000e+00> : vector<16x16xf32>
    %30 = tpu.matmul %1, %29, %cst_20 {dimension_numbers = #tpu.dot_dimension_numbers<[1], [0], [0], [1], [0, 0, 1, 1], [], []>} : vector<16x10xf32>, vector<10x16xf32>, vector<16x16xf32> -> vector<16x16xf32>
    %c0_21 = arith.constant 0 : index
    %c1_22 = arith.constant 1 : index
    %c0_23 = arith.constant 0 : index
    %c0_24 = arith.constant 0 : index
    %31 = vector.load %arg6[%c0_21, %c1_22, %c0_23, %c0_24] : memref<1x2x16x16xf32, #tpu.memory_space<vmem>>, vector<1x1x16x16xf32>
    %32 = vector.shape_cast %31 : vector<1x1x16x16xf32> to vector<16x16xf32>
    %33 = vector.shape_cast %30 : vector<16x16xf32> to vector<1x1x16x16xf32>
    tpu.vector_store %arg6[%c0_21, %c1_22, %c0_23, %c0_24], %33 {strides = array<i32>} : memref<1x2x16x16xf32, #tpu.memory_space<vmem>>, vector<1x1x16x16xf32>,
    return
  }
  func.func @transform_0(%arg0: i32, %arg1: i32) -> (i32, i32, i32, i32) {
    %c0_i32 = arith.constant 0 : i32
    %c0_i32_0 = arith.constant 0 : i32
    %c0_i32_1 = arith.constant 0 : i32
    return %arg0, %c0_i32, %c0_i32_0, %arg1 : i32, i32, i32, i32
  }
  func.func @transform_1(%arg0: i32, %arg1: i32) -> (i32, i32) {
    %c0_i32 = arith.constant 0 : i32
    %c0_i32_0 = arith.constant 0 : i32
    %c0_i32_1 = arith.constant 0 : i32
    return %c0_i32, %c0_i32_0 : i32, i32
  }
  func.func @transform_2(%arg0: i32, %arg1: i32) -> (i32, i32, i32) {
    %c0_i32 = arith.constant 0 : i32
    %c0_i32_0 = arith.constant 0 : i32
    %c0_i32_1 = arith.constant 0 : i32
    %c0_i32_2 = arith.constant 0 : i32
    return %c0_i32, %c0_i32_0, %c0_i32_1 : i32, i32, i32
  }
  func.func @transform_3(%arg0: i32, %arg1: i32) -> (i32, i32) {
    %c0_i32 = arith.constant 0 : i32
    %c0_i32_0 = arith.constant 0 : i32
    %c0_i32_1 = arith.constant 0 : i32
    return %c0_i32, %c0_i32_0 : i32, i32
  }
  func.func @transform_4(%arg0: i32, %arg1: i32) -> (i32, i32, i32, i32) {
    %c0_i32 = arith.constant 0 : i32
    %c0_i32_0 = arith.constant 0 : i32
    %c0_i32_1 = arith.constant 0 : i32
    return %arg0, %c0_i32, %c0_i32_0, %arg1 : i32, i32, i32, i32
  }
}

module attributes {stable_mosaic.version = 11 : i64} {
  func.func @_ffno_w_kernel(%arg0: i32, %arg1: i32, %arg2: memref<1x2x16x16xf32, #tpu.memory_space<vmem>>, %arg3: memref<12x16xf32, #tpu.memory_space<vmem>>, %arg4: memref<12x4x2xf32, #tpu.memory_space<vmem>>, %arg5: memref<12x16xf32, #tpu.memory_space<vmem>>, %arg6: memref<1x2x16x16xf32, #tpu.memory_space<vmem>>) attributes {dimension_semantics = [#tpu.dimension_semantics<parallel>, #tpu.dimension_semantics<parallel>], iteration_bounds = array<i64: 2, 1>, scalar_prefetch = 0 : i64, scratch_operands = 0 : i64, tpu.core_type = #tpu.core_type<tc>, window_params = [{transform_indices = @transform_0, window_bounds = array<i64: 1, 2, 16, 16>}, {pipeline_mode = #tpu.pipeline_mode<synchronous>, transform_indices = @transform_1, window_bounds = array<i64: 12, 16>}, {pipeline_mode = #tpu.pipeline_mode<synchronous>, transform_indices = @transform_2, window_bounds = array<i64: 12, 4, 2>}, {pipeline_mode = #tpu.pipeline_mode<synchronous>, transform_indices = @transform_3, window_bounds = array<i64: 12, 16>}, {transform_indices = @transform_4, window_bounds = array<i64: 1, 2, 16, 16>}]} {
    %c0 = arith.constant 0 : index
    %c0_0 = arith.constant 0 : index
    %0 = vector.load %arg3[%c0, %c0_0] : memref<12x16xf32, #tpu.memory_space<vmem>>, vector<12x16xf32>
    %c0_1 = arith.constant 0 : index
    %c0_2 = arith.constant 0 : index
    %1 = vector.load %arg5[%c0_1, %c0_2] : memref<12x16xf32, #tpu.memory_space<vmem>>, vector<12x16xf32>
    %c0_3 = arith.constant 0 : index
    %c0_4 = arith.constant 0 : index
    %c0_5 = arith.constant 0 : index
    %c0_6 = arith.constant 0 : index
    %2 = vector.load %arg2[%c0_3, %c0_4, %c0_5, %c0_6] : memref<1x2x16x16xf32, #tpu.memory_space<vmem>>, vector<1x1x16x16xf32>
    %3 = vector.shape_cast %2 : vector<1x1x16x16xf32> to vector<16x16xf32>
    %cst = arith.constant dense<0.000000e+00> : vector<12x16xf32>
    %4 = tpu.matmul %0, %3, %cst {dimension_numbers = #tpu.dot_dimension_numbers<[1], [1], [0], [0], [0, 0, 1, 0], [], []>} : vector<12x16xf32>, vector<16x16xf32>, vector<12x16xf32> -> vector<12x16xf32>
    %c0_7 = arith.constant 0 : index
    %c1 = arith.constant 1 : index
    %c0_8 = arith.constant 0 : index
    %c0_9 = arith.constant 0 : index
    %5 = vector.load %arg2[%c0_7, %c1, %c0_8, %c0_9] : memref<1x2x16x16xf32, #tpu.memory_space<vmem>>, vector<1x1x16x16xf32>
    %6 = vector.shape_cast %5 : vector<1x1x16x16xf32> to vector<16x16xf32>
    %cst_10 = arith.constant dense<0.000000e+00> : vector<12x16xf32>
    %7 = tpu.matmul %0, %6, %cst_10 {dimension_numbers = #tpu.dot_dimension_numbers<[1], [1], [0], [0], [0, 0, 1, 0], [], []>} : vector<12x16xf32>, vector<16x16xf32>, vector<12x16xf32> -> vector<12x16xf32>
    %8 = vector.shape_cast %4 : vector<12x16xf32> to vector<12x1x16xf32>
    %9 = vector.shape_cast %7 : vector<12x16xf32> to vector<12x1x16xf32>
    %10 = tpu.concatenate %8, %9 in 1 : vector<12x1x16xf32>, vector<12x1x16xf32> -> vector<12x2x16xf32>
    %c0_11 = arith.constant 0 : index
    %c0_12 = arith.constant 0 : index
    %c0_13 = arith.constant 0 : index
    %11 = vector.load %arg4[%c0_11, %c0_12, %c0_13] : memref<12x4x2xf32, #tpu.memory_space<vmem>>, vector<12x4x2xf32>
    %cst_14 = arith.constant dense<0.000000e+00> : vector<12x4x16xf32>
    %12 = tpu.matmul %11, %10, %cst_14 {dimension_numbers = #tpu.dot_dimension_numbers<[2], [1], [1], [2], [0, 0, 0, 1, 1, 2], [0], [0]>} : vector<12x4x2xf32>, vector<12x2x16xf32>, vector<12x4x16xf32> -> vector<12x4x16xf32>
    %13 = vector.extract_strided_slice %12 {offsets = [0, 0, 0], sizes = [6, 4, 16], strides = [1, 1, 1]} : vector<12x4x16xf32> to vector<6x4x16xf32>
    %14 = vector.extract_strided_slice %12 {offsets = [6, 0, 0], sizes = [6, 4, 16], strides = [1, 1, 1]} : vector<12x4x16xf32> to vector<6x4x16xf32>
    %15 = arith.addf %13, %14 : vector<6x4x16xf32>
    %16 = vector.extract_strided_slice %15 {offsets = [0, 0, 0], sizes = [6, 1, 16], strides = [1, 1, 1]} : vector<6x4x16xf32> to vector<6x1x16xf32>
    %17 = vector.shape_cast %16 : vector<6x1x16xf32> to vector<6x16xf32>
    %18 = vector.extract_strided_slice %15 {offsets = [0, 2, 0], sizes = [6, 1, 16], strides = [1, 1, 1]} : vector<6x4x16xf32> to vector<6x1x16xf32>
    %19 = vector.shape_cast %18 : vector<6x1x16xf32> to vector<6x16xf32>
    %20 = tpu.concatenate %17, %19 in 0 : vector<6x16xf32>, vector<6x16xf32> -> vector<12x16xf32>
    %21 = tpu.transpose %20, [1, 0] : vector<12x16xf32> -> vector<16x12xf32>
    %cst_15 = arith.constant dense<0.000000e+00> : vector<16x16xf32>
    %22 = tpu.matmul %21, %1, %cst_15 {dimension_numbers = #tpu.dot_dimension_numbers<[1], [0], [0], [1], [0, 0, 1, 1], [], []>} : vector<16x12xf32>, vector<12x16xf32>, vector<16x16xf32> -> vector<16x16xf32>
    %c0_16 = arith.constant 0 : index
    %c0_17 = arith.constant 0 : index
    %c0_18 = arith.constant 0 : index
    %c0_19 = arith.constant 0 : index
    %23 = vector.load %arg6[%c0_16, %c0_17, %c0_18, %c0_19] : memref<1x2x16x16xf32, #tpu.memory_space<vmem>>, vector<1x1x16x16xf32>
    %24 = vector.shape_cast %23 : vector<1x1x16x16xf32> to vector<16x16xf32>
    %25 = vector.shape_cast %22 : vector<16x16xf32> to vector<1x1x16x16xf32>
    tpu.vector_store %arg6[%c0_16, %c0_17, %c0_18, %c0_19], %25 {strides = array<i32>} : memref<1x2x16x16xf32, #tpu.memory_space<vmem>>, vector<1x1x16x16xf32>,
    %26 = vector.extract_strided_slice %15 {offsets = [0, 1, 0], sizes = [6, 1, 16], strides = [1, 1, 1]} : vector<6x4x16xf32> to vector<6x1x16xf32>
    %27 = vector.shape_cast %26 : vector<6x1x16xf32> to vector<6x16xf32>
    %28 = vector.extract_strided_slice %15 {offsets = [0, 3, 0], sizes = [6, 1, 16], strides = [1, 1, 1]} : vector<6x4x16xf32> to vector<6x1x16xf32>
    %29 = vector.shape_cast %28 : vector<6x1x16xf32> to vector<6x16xf32>
    %30 = tpu.concatenate %27, %29 in 0 : vector<6x16xf32>, vector<6x16xf32> -> vector<12x16xf32>
    %31 = tpu.transpose %30, [1, 0] : vector<12x16xf32> -> vector<16x12xf32>
    %cst_20 = arith.constant dense<0.000000e+00> : vector<16x16xf32>
    %32 = tpu.matmul %31, %1, %cst_20 {dimension_numbers = #tpu.dot_dimension_numbers<[1], [0], [0], [1], [0, 0, 1, 1], [], []>} : vector<16x12xf32>, vector<12x16xf32>, vector<16x16xf32> -> vector<16x16xf32>
    %c0_21 = arith.constant 0 : index
    %c1_22 = arith.constant 1 : index
    %c0_23 = arith.constant 0 : index
    %c0_24 = arith.constant 0 : index
    %33 = vector.load %arg6[%c0_21, %c1_22, %c0_23, %c0_24] : memref<1x2x16x16xf32, #tpu.memory_space<vmem>>, vector<1x1x16x16xf32>
    %34 = vector.shape_cast %33 : vector<1x1x16x16xf32> to vector<16x16xf32>
    %35 = vector.shape_cast %32 : vector<16x16xf32> to vector<1x1x16x16xf32>
    tpu.vector_store %arg6[%c0_21, %c1_22, %c0_23, %c0_24], %35 {strides = array<i32>} : memref<1x2x16x16xf32, #tpu.memory_space<vmem>>, vector<1x1x16x16xf32>,
    return
  }
  func.func @transform_0(%arg0: i32, %arg1: i32) -> (i32, i32, i32, i32) {
    %c0_i32 = arith.constant 0 : i32
    %c0_i32_0 = arith.constant 0 : i32
    %c0_i32_1 = arith.constant 0 : i32
    return %arg0, %c0_i32, %arg1, %c0_i32_0 : i32, i32, i32, i32
  }
  func.func @transform_1(%arg0: i32, %arg1: i32) -> (i32, i32) {
    %c0_i32 = arith.constant 0 : i32
    %c0_i32_0 = arith.constant 0 : i32
    %c0_i32_1 = arith.constant 0 : i32
    return %c0_i32, %c0_i32_0 : i32, i32
  }
  func.func @transform_2(%arg0: i32, %arg1: i32) -> (i32, i32, i32) {
    %c0_i32 = arith.constant 0 : i32
    %c0_i32_0 = arith.constant 0 : i32
    %c0_i32_1 = arith.constant 0 : i32
    %c0_i32_2 = arith.constant 0 : i32
    return %c0_i32, %c0_i32_0, %c0_i32_1 : i32, i32, i32
  }
  func.func @transform_3(%arg0: i32, %arg1: i32) -> (i32, i32) {
    %c0_i32 = arith.constant 0 : i32
    %c0_i32_0 = arith.constant 0 : i32
    %c0_i32_1 = arith.constant 0 : i32
    return %c0_i32, %c0_i32_0 : i32, i32
  }
  func.func @transform_4(%arg0: i32, %arg1: i32) -> (i32, i32, i32, i32) {
    %c0_i32 = arith.constant 0 : i32
    %c0_i32_0 = arith.constant 0 : i32
    %c0_i32_1 = arith.constant 0 : i32
    return %arg0, %c0_i32, %arg1, %c0_i32_0 : i32, i32, i32, i32
  }
}

</mosaic_0001>

<llo_original>
// kernel: ffno_conv2d_forward.3
$region0: #{ffno_conv2d_forward.3}
  #allocation0 [shape = 'u32[]', space=smem, size = 0x4, offset = 0x4, fixed_abs, tag = 'smem constant byte address 0x4 - core index']
  #allocation1 [shape = 'u32[72,128]{1,0:T(1,128)}', space=vmem, size = 0x9000, scoped, tag = 'internal scratch']
  %s0 = inlined_call_operand.vmem [shape: f32[2,4,16,16], index: 0, kind: input, shape index: {}]
  %s1 = inlined_call_operand.hbm [shape: f32[10,16], index: 1, kind: input, shape index: {}]
  %s2 = inlined_call_operand.vmem [shape: f32[10,4,2], index: 2, kind: input, shape index: {}]
  %s3 = inlined_call_operand.hbm [shape: f32[16,10], index: 3, kind: input, shape index: {}]
  %s4 = inlined_call_operand.hbm [shape: f32[2,4,16,16], index: 4, kind: input, shape index: {}, may-alias: {4,5}]
  %s5 = inlined_call_operand.hbm [shape: f32[2,4,16,16], index: 5, kind: output, shape index: {}, may-alias: {4,5}]
  %s6 = sld [smem:[#allocation0]]
  $region65: #{ffno_conv2d_forward.3} parent=0
    _
  %s8 = ssub.s32 1, %s6
  %s9 = scalar_select 0, %s8, %s6
  $region1: #{ffno_conv2d_forward.3} parent=0
    #allocation2 [shape = 'u8[8192]{0}', space=vmem, size = 0x2000, scoped, tag = 'input window, operand 1, single buffered']
    #allocation3 [shape = 's32[2]{0}', space=sflag, size = 0x8, scoped, tag = 'scoped memory for ffno_conv2d_forward.3']
    #allocation4 [shape = 's32[2]{0}', space=sflag, size = 0x8, scoped, tag = 'scoped memory for ffno_conv2d_forward.3']
    #allocation5 [shape = 'u8[8192]{0}', space=vmem, size = 0x2000, scoped, tag = 'input window, operand 3, single buffered']
    #allocation6 [shape = 's32[1]{0}', space=sflag, size = 0x4, scoped, tag = 'scoped memory for ffno_conv2d_forward.3']
    #allocation7 [shape = 'u8[32768]{0}', space=vmem, size = 0x8000, scoped, tag = 'input window, operand 4']
    #allocation8 [shape = 'u8[32768]{0}', space=vmem, size = 0x8000, scoped, tag = 'output window, operand 0']
    %10 = vsyncpa [#allocation3], 0
    %11 = vsyncpa [#allocation6], 0
    %12 = vsyncpa [#allocation4], 0
    %s13 = scalar_lea.sflag [#allocation4], 1
    %14 = vsyncpa %s13, 0
    loop: start=0, step=1, limit=4
    $region2: #{ffno_conv2d_forward.3} parent=1 // loop_pre_header
      _
    $region3: #{ffno_conv2d_forward.3} parent=1 // loop_header
      %s16 = sphi 0, %s20
      %p17 = scmp.ge.s32.totalorder %s16, 4
      %s23 = sphi 0, %s35
      %s24 = sphi 0, %s31
      %s25 = sphi 0, %s23
      %s26 = sphi 0, %s24
      %s27 = sphi 0, %s25
      %s28 = sphi 0, %s26
      %s40 = sphi 0, %s42
      %s43 = sphi 0, %s40
      %s44 = sphi 0, %s43
      %s60 = sphi 0, %s44
      %s64 = sphi 0, %s64
      %s66 = sphi 0, %s64
      %s67 = sphi 0, %s66
      %s81 = sphi 0, %s67
      %s85 = sphi 0, %s85
      %s87 = sphi 0, %s85
      %s88 = sphi 0, %s87
      %s102 = sphi 0, %s88
      %s106 = sphi 0, %s106
      %s108 = sphi 0, %s106
      %s109 = sphi 0, %s108
      %s123 = sphi 0, %s109
      %s131 = sphi 0, %s133
      %s134 = sphi 0, %s131
      %s135 = sphi 0, %s134
      %s151 = sphi 0, %s135
      %s159 = sphi 0, %s161
      %s162 = sphi 0, %s159
      %s163 = sphi 0, %s162
      %s179 = sphi 0, %s163
    $region4: #{ffno_conv2d_forward.3} parent=1 // loop_header_branch
      %19 = sbr.rel (%p17) target = $region8
    $region5: #{ffno_conv2d_forward.3} parent=1 // loop_body
      %s21 = ssub.s32 %s16, 1
      %s22 = ssub.s32 %s16, 2
      %s29 = sadd.s32 1, %s24
      %p30 = scmp.ge.s32.totalorder %s29, 1
      %s31 = scalar_select %p30, 0, %s29
      %s32 = sadd.s32 1, %s23
      %s33 = scalar_select %p30, %s32, %s23
      %p34 = scmp.ge.s32.totalorder %s33, 2
      %s35 = scalar_select %p34, 0, %s33
      %s36 = ssub.s32 %s23, %s35
      %s37 = ssub.s32 %s24, %s31
      %s38 = sor.u32 %s36, %s37
      %p39 = scmp.eq.s32.totalorder %s38, 0
      %s41 = sadd.s32 %s40, 1
      %s42 = scalar_select %p39, %s40, %s41
      %p45 = pneg %p39
      %p46 = scmp.eq.s32.totalorder %s16, 1
      %p47 = por %p45, %p46
      %p48 = scmp.ne.s32.totalorder %s40, %s43
      %p49 = scmp.eq.s32.totalorder %s16, 0
      %p50 = por %p48, %p49
      %p51 = scmp.ne.s32.totalorder %s40, %s43
      %p52 = scmp.eq.s32.totalorder %s21, 1
      %p53 = por %p51, %p52
      %p54 = scmp.ne.s32.totalorder %s43, %s44
      %p55 = scmp.eq.s32.totalorder %s21, 0
      %p56 = por %p54, %p55
      %p57 = scmp.ne.s32.totalorder %s43, %s44
      %p58 = scmp.eq.s32.totalorder %s22, 1
      %p59 = por %p57, %p58
      %p61 = scmp.ne.s32.totalorder %s44, %s60
      %p62 = scmp.eq.s32.totalorder %s22, 0
      %p63 = por %p61, %p62
      %s65 = sadd.s32 %s64, 1
      %p68 = scmp.eq.s32.totalorder %s16, 1
      %p69 = scmp.ne.s32.totalorder %s64, %s66
      %p70 = scmp.eq.s32.totalorder %s16, 0
      %p71 = por %p69, %p70
      %p72 = scmp.ne.s32.totalorder %s64, %s66
      %p73 = scmp.eq.s32.totalorder %s21, 1
      %p74 = por %p72, %p73
      %p75 = scmp.ne.s32.totalorder %s66, %s67
      %p76 = scmp.eq.s32.totalorder %s21, 0
      %p77 = por %p75, %p76
      %p78 = scmp.ne.s32.totalorder %s66, %s67
      %p79 = scmp.eq.s32.totalorder %s22, 1
      %p80 = por %p78, %p79
      %p82 = scmp.ne.s32.totalorder %s67, %s81
      %p83 = scmp.eq.s32.totalorder %s22, 0
      %p84 = por %p82, %p83
      %s86 = sadd.s32 %s85, 1
      %p89 = scmp.eq.s32.totalorder %s16, 1
      %p90 = scmp.ne.s32.totalorder %s85, %s87
      %p91 = scmp.eq.s32.totalorder %s16, 0
      %p92 = por %p90, %p91
      %p93 = scmp.ne.s32.totalorder %s85, %s87
      %p94 = scmp.eq.s32.totalorder %s21, 1
      %p95 = por %p93, %p94
      %p96 = scmp.ne.s32.totalorder %s87, %s88
      %p97 = scmp.eq.s32.totalorder %s21, 0
      %p98 = por %p96, %p97
      %p99 = scmp.ne.s32.totalorder %s87, %s88
      %p100 = scmp.eq.s32.totalorder %s22, 1
      %p101 = por %p99, %p100
      %p103 = scmp.ne.s32.totalorder %s88, %s102
      %p104 = scmp.eq.s32.totalorder %s22, 0
      %p105 = por %p103, %p104
      %s107 = sadd.s32 %s106, 1
      %p110 = scmp.eq.s32.totalorder %s16, 1
      %p111 = scmp.ne.s32.totalorder %s106, %s108
      %p112 = scmp.eq.s32.totalorder %s16, 0
      %p113 = por %p111, %p112
      %p114 = scmp.ne.s32.totalorder %s106, %s108
      %p115 = scmp.eq.s32.totalorder %s21, 1
      %p116 = por %p114, %p115
      %p117 = scmp.ne.s32.totalorder %s108, %s109
      %p118 = scmp.eq.s32.totalorder %s21, 0
      %p119 = por %p117, %p118
      %p120 = scmp.ne.s32.totalorder %s108, %s109
      %p121 = scmp.eq.s32.totalorder %s22, 1
      %p122 = por %p120, %p121
      %p124 = scmp.ne.s32.totalorder %s109, %s123
      %p125 = scmp.eq.s32.totalorder %s22, 0
      %p126 = por %p124, %p125
      %s127 = ssub.s32 %s23, %s35
      %s128 = ssub.s32 %s24, %s31
      %s129 = sor.u32 %s127, %s128
      %p130 = scmp.eq.s32.totalorder %s129, 0
      %s132 = sadd.s32 %s131, 1
      %s133 = scalar_select %p130, %s131, %s132
      %p136 = pneg %p130
      %p137 = scmp.eq.s32.totalorder %s16, 1
      %p138 = por %p136, %p137
      %p139 = scmp.ne.s32.totalorder %s131, %s134
      %p140 = scmp.eq.s32.totalorder %s16, 0
      %p141 = por %p139, %p140
      %p142 = scmp.ne.s32.totalorder %s131, %s134
      %p143 = scmp.eq.s32.totalorder %s21, 1
      %p144 = por %p142, %p143
      %p145 = scmp.ne.s32.totalorder %s134, %s135
      %p146 = scmp.eq.s32.totalorder %s21, 0
      %p147 = por %p145, %p146
      %p148 = scmp.ne.s32.totalorder %s134, %s135
      %p149 = scmp.eq.s32.totalorder %s22, 1
      %p150 = por %p148, %p149
      %p152 = scmp.ne.s32.totalorder %s135, %s151
      %p153 = scmp.eq.s32.totalorder %s22, 0
      %p154 = por %p152, %p153
      %s155 = ssub.s32 %s23, %s35
      %s156 = ssub.s32 %s24, %s31
      %s157 = sor.u32 %s155, %s156
      %p158 = scmp.eq.s32.totalorder %s157, 0
      %s160 = sadd.s32 %s159, 1
      %s161 = scalar_select %p158, %s159, %s160
      %p164 = pneg %p158
      %p165 = scmp.eq.s32.totalorder %s16, 1
      %p166 = por %p164, %p165
      %p167 = scmp.ne.s32.totalorder %s159, %s162
      %p168 = scmp.eq.s32.totalorder %s16, 0
      %p169 = por %p167, %p168
      %p170 = scmp.ne.s32.totalorder %s159, %s162
      %p171 = scmp.eq.s32.totalorder %s21, 1
      %p172 = por %p170, %p171
      %p173 = scmp.ne.s32.totalorder %s162, %s163
      %p174 = scmp.eq.s32.totalorder %s21, 0
      %p175 = por %p173, %p174
      %p176 = scmp.ne.s32.totalorder %s162, %s163
      %p177 = scmp.eq.s32.totalorder %s22, 1
      %p178 = por %p176, %p177
      %p180 = scmp.ne.s32.totalorder %s163, %s179
      %p181 = scmp.eq.s32.totalorder %s22, 0
      %p182 = por %p180, %p181
      %p183 = scmp.le.s32.totalorder 1, %s16
      %p184 = scmp.lt.s32.totalorder %s16, 3
      %p185 = pnand %p183, %p184
      %p186 = pneg %p185
      // Predicated region
      $region9: #{ffno_conv2d_forward.3} parent=5 // pred_check
        _
      $region10: #{ffno_conv2d_forward.3} parent=5 // pred_check_branch
        %188 = sbr.rel (%p185) target = $region12
      $region11: #{ffno_conv2d_forward.3} parent=5 // pred_region
        %s189 = ssub.s32 %s16, 1
        // Predicated region
        $region13: #{ffno_conv2d_forward.3} parent=11 // pred_check
          %p190 = pneg %p77
        $region14: #{ffno_conv2d_forward.3} parent=11 // pred_check_branch
          %192 = sbr.rel (%p190) target = $region16
        $region15: #{ffno_conv2d_forward.3} parent=11 // pred_region
          %194 = vsyncadd [#allocation3], 0
          %s195 = sshll.u32 %s1, 4
          %s196 = int_to_ptr.hbm [resolvable:$true] %s195
          %s197 = sshll.u32 [#allocation2], 4
          %s198 = int_to_ptr.vmem [resolvable:$true] %s197
          %203 = dma.hbm_to_vmem [thread:$0]  %s196, 256, %s198, [#allocation3], 128, 128, 8
        $region16: #{ffno_conv2d_forward.3} parent=11 // pred_fallthru
          _
        // Predicated region
        $region17: #{ffno_conv2d_forward.3} parent=11 // pred_check
          %p204 = pneg %p98
        $region18: #{ffno_conv2d_forward.3} parent=11 // pred_check_branch
          %206 = sbr.rel (%p204) target = $region20
        $region19: #{ffno_conv2d_forward.3} parent=11 // pred_region
          _
        $region20: #{ffno_conv2d_forward.3} parent=11 // pred_fallthru
          _
        // Predicated region
        $region21: #{ffno_conv2d_forward.3} parent=11 // pred_check
          %p207 = pneg %p119
        $region22: #{ffno_conv2d_forward.3} parent=11 // pred_check_branch
          %209 = sbr.rel (%p207) target = $region24
        $region23: #{ffno_conv2d_forward.3} parent=11 // pred_region
          %211 = vsyncadd [#allocation6], 0
          %s212 = sshll.u32 %s3, 4
          %s213 = int_to_ptr.hbm [resolvable:$true] %s212
          %s214 = sshll.u32 [#allocation5], 4
          %s215 = int_to_ptr.vmem [resolvable:$true] %s214
          %220 = dma.hbm_to_vmem [thread:$0]  %s213, 256, %s215, [#allocation6], 128, 128, 8
        $region24: #{ffno_conv2d_forward.3} parent=11 // pred_fallthru
          _
      $region12: #{ffno_conv2d_forward.3} parent=5 // pred_fallthru
        _
      %p221 = scmp.lt.s32.totalorder %s16, 2
      // Predicated region
      $region25: #{ffno_conv2d_forward.3} parent=5 // pred_check
        %p222 = pneg %p221
      $region26: #{ffno_conv2d_forward.3} parent=5 // pred_check_branch
        %224 = sbr.rel (%p222) target = $region28
      $region27: #{ffno_conv2d_forward.3} parent=5 // pred_region
        // Predicated region
        $region29: #{ffno_conv2d_forward.3} parent=27 // pred_check
          %p225 = pneg %p50
        $region30: #{ffno_conv2d_forward.3} parent=27 // pred_check_branch
          %227 = sbr.rel (%p225) target = $region32
        $region31: #{ffno_conv2d_forward.3} parent=27 // pred_region
          %p228 = scmp.lt.s32.totalorder %s23, 1
          %s229 = scalar_select %p228, %s23, 1
          %p230 = scmp.lt.s32.totalorder %s24, 0
          %s231 = scalar_select %p230, %s24, 0
          %s232 = sadd.s32 %s231, 4
          %s233 = smul.addr %s229, 8
          %s234 = sadd.s32 %s232, %s233
          %s235 = smul.addr %s234, 8
          %s236 = scalar_lea.vmem %s0, %s235
        $region32: #{ffno_conv2d_forward.3} parent=27 // pred_fallthru
          _
        // Predicated region
        $region33: #{ffno_conv2d_forward.3} parent=27 // pred_check
          %p237 = pneg %p141
        $region34: #{ffno_conv2d_forward.3} parent=27 // pred_check_branch
          %239 = sbr.rel (%p237) target = $region36
        $region35: #{ffno_conv2d_forward.3} parent=27 // pred_region
          %s240 = sand.u32 %s16, 1
          %s241 = scalar_lea.sflag [#allocation3], %s240
          %s242 = sand.u32 %s131, 1
          %s243 = smul.addr %s242, 32
          %s244 = scalar_lea.vmem [#allocation7], %s243
          %246 = vsyncadd %s241, 0
          %s247 = sadd.s32 %s24, 4
          %s248 = smul.addr %s23, 8
          %s249 = sadd.s32 %s247, %s248
          %s250 = smul.addr %s249, 8
          %s251 = scalar_lea.hbm %s4, %s250
          %s252 = sshll.u32 %s251, 4
          %s253 = int_to_ptr.hbm [resolvable:$true] %s252
          %s254 = sshll.u32 %s244, 4
          %s255 = int_to_ptr.vmem [resolvable:$true] %s254
          %260 = dma.hbm_to_vmem [thread:$0]  %s253, 512, %s255, %s241, 128, 128, 8
        $region36: #{ffno_conv2d_forward.3} parent=27 // pred_fallthru
          _
      $region28: #{ffno_conv2d_forward.3} parent=5 // pred_fallthru
        _
      %p261 = scmp.le.s32.totalorder 1, %s16
      %p262 = scmp.lt.s32.totalorder %s16, 3
      %p263 = pnand %p261, %p262
      %p264 = pneg %p263
      // Predicated region
      $region37: #{ffno_conv2d_forward.3} parent=5 // pred_check
        _
      $region38: #{ffno_conv2d_forward.3} parent=5 // pred_check_branch
        %266 = sbr.rel (%p263) target = $region40
      $region39: #{ffno_conv2d_forward.3} parent=5 // pred_region
        %s267 = ssub.s32 %s16, 1
        // Predicated region
        $region41: #{ffno_conv2d_forward.3} parent=39 // pred_check
          %p268 = pneg %p77
        $region42: #{ffno_conv2d_forward.3} parent=39 // pred_check_branch
          %270 = sbr.rel (%p268) target = $region44
        $region43: #{ffno_conv2d_forward.3} parent=39 // pred_region
          %272 = dma.done [#allocation3], 256
        $region44: #{ffno_conv2d_forward.3} parent=39 // pred_fallthru
          _
        // Predicated region
        $region45: #{ffno_conv2d_forward.3} parent=39 // pred_check
          %p273 = pneg %p119
        $region46: #{ffno_conv2d_forward.3} parent=39 // pred_check_branch
          %275 = sbr.rel (%p273) target = $region48
        $region47: #{ffno_conv2d_forward.3} parent=39 // pred_region
          %277 = dma.done [#allocation6], 256
        $region48: #{ffno_conv2d_forward.3} parent=39 // pred_fallthru
          _
        %s278 = sand.u32 %s21, 1
        %s279 = scalar_lea.sflag [#allocation3], %s278
        %s280 = sand.u32 %s134, 1
        %s281 = smul.addr %s280, 32
        %s282 = scalar_lea.vmem [#allocation7], %s281
        // Predicated region
        $region49: #{ffno_conv2d_forward.3} parent=39 // pred_check
          %p283 = pneg %p147
        $region50: #{ffno_conv2d_forward.3} parent=39 // pred_check_branch
          %285 = sbr.rel (%p283) target = $region52
        $region51: #{ffno_conv2d_forward.3} parent=39 // pred_region
          %287 = dma.done %s279, 512
        $region52: #{ffno_conv2d_forward.3} parent=39 // pred_fallthru
          _
        %p288 = scmp.lt.s32.totalorder %s25, 1
        %s289 = scalar_select %p288, %s25, 1
        %p290 = scmp.lt.s32.totalorder %s26, 0
        %s291 = scalar_select %p290, %s26, 0
        %s292 = sadd.s32 %s291, 4
        %s293 = smul.addr %s289, 8
        %s294 = sadd.s32 %s292, %s293
        %s295 = smul.addr %s294, 8
        %s296 = scalar_lea.vmem %s0, %s295
        %p297 = pneg %p56
        %p298 = pneg %p53
        %p299 = pneg %p77
        %p300 = pneg %p74
        %p301 = pneg %p98
        %p302 = pneg %p95
        %p303 = pneg %p119
        %p304 = pneg %p116
        %s305 = sand.u32 %s21, 1
        %s306 = scalar_lea.sflag [#allocation3], %s305
        %s307 = sand.u32 %s134, 1
        %s308 = smul.addr %s307, 32
        %s309 = scalar_lea.vmem [#allocation7], %s308
        %p310 = pneg %p147
        %p311 = pneg %p144
        %p312 = pneg %p175
        %p313 = pneg %p172
        %s314 = sand.u32 %s162, 1
        %s315 = scalar_lea.sflag [#allocation4], %s314
        %s316 = sand.u32 %s162, 1
        %s317 = smul.addr %s316, 32
        %s318 = scalar_lea.vmem [#allocation8], %s317
        %p319 = scmp.lt.s32.totalorder %s25, 1
        %s320 = scalar_select %p319, %s25, 1
        %p321 = scmp.lt.s32.totalorder %s26, 0
        %s322 = scalar_select %p321, %s26, 0
        %s323 = sadd.s32 %s322, 4
        %s324 = smul.addr %s320, 8
        %s325 = sadd.s32 %s323, %s324
        %s326 = smul.addr %s325, 8
        %s327 = scalar_lea.vmem %s0, %s326
        %v328 = vld [vmem:[#allocation2] sm:$0xff]
        %v329 = vld [vmem:[#allocation2 + $0x8] sm:$0x3]
        %v330 = vld [vmem:[#allocation5] sm:$0xff]
        %v331 = vld [vmem:[#allocation5 + $0x8] sm:$0xff]
        %v332 = vld [vmem:[%s327] sm:$0xff]
        %v333 = vld [vmem:[%s327 + $0x8] sm:$0xff]
        %vm334 = vcmask 130048
        %v336 = vsel %vm334, %v328, 0
        %v339 = vsel %vm334, %v329, 0
        %341 = vmatpush.msra.mxu0 0.0
        %342 = vmatpush.msra.mxu0 0.0
        %343 = vmatpush.msra.mxu0 0.0
        %344 = vmatpush.msra.mxu0 0.0
        %345 = vmatpush.msra.mxu0 0.0
        %346 = vmatpush.msra.mxu0 0.0
        %347 = vmatpush.msra.mxu0 0.0
        %348 = vmatpush.msra.mxu0 0.0
        %349 = vmatpush.msra.mxu0 0.0
        %350 = vmatpush.msra.mxu0 0.0
        %351 = vmatpush.msra.mxu0 0.0
        %352 = vmatpush.msra.mxu0 0.0
        %353 = vmatpush.msra.mxu0 0.0
        %354 = vmatpush.msra.mxu0 0.0
        %355 = vmatpush.msra.mxu0 %v333
        %356 = vmatpush.msra.mxu0 %v332
        %357 = vmatmul.f32.gmra.mxu0 %v336
        %v358 = vpop.f32.mrf.mxu0
        %v359 = vadd.f32 0.0, %v358
        %360 = vmatmul.f32.gmra.mxu0 %v339
        %v361 = vpop.f32.mrf.mxu0
        %v362 = vadd.f32 0.0, %v361
        %363 = vdwg.mxu0
        %s364 = scalar_lea.vmem %s327, 16
        %v365 = vld [vmem:[%s364] sm:$0xff]
        %v366 = vld [vmem:[%s364 + $0x8] sm:$0xff]
        %367 = vmatpush.msra.mxu0 0.0
        %368 = vmatpush.msra.mxu0 0.0
        %369 = vmatpush.msra.mxu0 0.0
        %370 = vmatpush.msra.mxu0 0.0
        %371 = vmatpush.msra.mxu0 0.0
        %372 = vmatpush.msra.mxu0 0.0
        %373 = vmatpush.msra.mxu0 0.0
        %374 = vmatpush.msra.mxu0 0.0
        %375 = vmatpush.msra.mxu0 0.0
        %376 = vmatpush.msra.mxu0 0.0
        %377 = vmatpush.msra.mxu0 0.0
        %378 = vmatpush.msra.mxu0 0.0
        %379 = vmatpush.msra.mxu0 0.0
        %380 = vmatpush.msra.mxu0 0.0
        %381 = vmatpush.msra.mxu0 %v366
        %382 = vmatpush.msra.mxu0 %v365
        %383 = vmatmul.f32.gmra.mxu0 %v336
        %v384 = vpop.f32.mrf.mxu0
        %v385 = vadd.f32 0.0, %v384
        %386 = vmatmul.f32.gmra.mxu0 %v339
        %v387 = vpop.f32.mrf.mxu0
        %v388 = vadd.f32 0.0, %v387
        %389 = vdwg.mxu0
        %v392 = vrot.slane %v359, 1
        %v393 = vrot.slane %v359, 2
        %v394 = vrot.slane %v359, 3
        %v395 = vrot.slane %v359, 4
        %v396 = vrot.slane %v359, 5
        %v397 = vrot.slane %v359, 6
        %v398 = vrot.slane %v359, 7
        %v399 = vrot.slane %v362, 1
        %v410 = vrot.slane %v385, 1
        %v411 = vrot.slane %v385, 2
        %v412 = vrot.slane %v385, 3
        %v413 = vrot.slane %v385, 4
        %v414 = vrot.slane %v385, 5
        %v415 = vrot.slane %v385, 6
        %v416 = vrot.slane %v385, 7
        %v417 = vrot.slane %v388, 1
        %v418 = vperm.slane %v385, 0
        %v419 = vperm.slane %v410, 0
        %v420 = vperm.slane %v411, 0
        %v421 = vperm.slane %v412, 0
        %v422 = vperm.slane %v413, 0
        %v423 = vperm.slane %v414, 0
        %v424 = vperm.slane %v415, 0
        %v425 = vperm.slane %v416, 0
        %v426 = vperm.slane %v388, 0
        %v427 = vperm.slane %v417, 0
        %vm438 = vcmask 1040384
        %v439 = vsel %vm438, %v359, %v418
        %v440 = vsel %vm438, %v392, %v419
        %v441 = vsel %vm438, %v393, %v420
        %v442 = vsel %vm438, %v394, %v421
        %v443 = vsel %vm438, %v395, %v422
        %v444 = vsel %vm438, %v396, %v423
        %v445 = vsel %vm438, %v397, %v424
        %v446 = vsel %vm438, %v398, %v425
        %v447 = vsel %vm438, %v362, %v426
        %v448 = vsel %vm438, %v399, %v427
        %v449 = vld [vmem:[%s2] sm:$0xf]
        %v450 = vld [vmem:[%s2 + $0x4] sm:$0xf]
        %v451 = vld [vmem:[%s2 + $0x8] sm:$0xf]
        %v452 = vld [vmem:[%s2 + $0xc] sm:$0xf]
        %v453 = vld [vmem:[%s2 + $0x10] sm:$0xf]
        %v454 = vld [vmem:[%s2 + $0x14] sm:$0xf]
        %v455 = vld [vmem:[%s2 + $0x18] sm:$0xf]
        %v456 = vld [vmem:[%s2 + $0x1c] sm:$0xf]
        %v457 = vld [vmem:[%s2 + $0x20] sm:$0xf]
        %v458 = vld [vmem:[%s2 + $0x24] sm:$0xf]
        %vm459 = vcmask 15360
        %v461 = vsel %vm459, %v449, 0
        %vm463 = vcmask 1041408
        %v465 = vsel %vm463, %v439, 0
        %467 = vmatpush.msra.mxu0 0.0
        %468 = vmatpush.msra.mxu0 0.0
        %469 = vmatpush.msra.mxu0 0.0
        %470 = vmatpush.msra.mxu0 0.0
        %471 = vmatpush.msra.mxu0 0.0
        %472 = vmatpush.msra.mxu0 0.0
        %473 = vmatpush.msra.mxu0 0.0
        %474 = vmatpush.msra.mxu0 0.0
        %475 = vmatpush.msra.mxu0 0.0
        %476 = vmatpush.msra.mxu0 0.0
        %477 = vmatpush.msra.mxu0 0.0
        %478 = vmatpush.msra.mxu0 0.0
        %479 = vmatpush.msra.mxu0 0.0
        %480 = vmatpush.msra.mxu0 0.0
        %481 = vmatpush.msra.mxu0 0.0
        %482 = vmatpush.msra.mxu0 %v465
        %483 = vmatmul.f32.gmra.mxu0 %v461
        %v484 = vpop.f32.mrf.mxu0
        %v485 = vadd.f32 0.0, %v484
        %486 = vdwg.mxu0
        %v488 = vsel %vm459, %v450, 0
        %v491 = vsel %vm463, %v440, 0
        %493 = vmatpush.msra.mxu0 0.0
        %494 = vmatpush.msra.mxu0 0.0
        %495 = vmatpush.msra.mxu0 0.0
        %496 = vmatpush.msra.mxu0 0.0
        %497 = vmatpush.msra.mxu0 0.0
        %498 = vmatpush.msra.mxu0 0.0
        %499 = vmatpush.msra.mxu0 0.0
        %500 = vmatpush.msra.mxu0 0.0
        %501 = vmatpush.msra.mxu0 0.0
        %502 = vmatpush.msra.mxu0 0.0
        %503 = vmatpush.msra.mxu0 0.0
        %504 = vmatpush.msra.mxu0 0.0
        %505 = vmatpush.msra.mxu0 0.0
        %506 = vmatpush.msra.mxu0 0.0
        %507 = vmatpush.msra.mxu0 0.0
        %508 = vmatpush.msra.mxu0 %v491
        %509 = vmatmul.f32.gmra.mxu0 %v488
        %v510 = vpop.f32.mrf.mxu0
        %v511 = vadd.f32 0.0, %v510
        %512 = vdwg.mxu0
        %v514 = vsel %vm459, %v451, 0
        %v517 = vsel %vm463, %v441, 0
        %519 = vmatpush.msra.mxu0 0.0
        %520 = vmatpush.msra.mxu0 0.0
        %521 = vmatpush.msra.mxu0 0.0
        %522 = vmatpush.msra.mxu0 0.0
        %523 = vmatpush.msra.mxu0 0.0
        %524 = vmatpush.msra.mxu0 0.0
        %525 = vmatpush.msra.mxu0 0.0
        %526 = vmatpush.msra.mxu0 0.0
        %527 = vmatpush.msra.mxu0 0.0
        %528 = vmatpush.msra.mxu0 0.0
        %529 = vmatpush.msra.mxu0 0.0
        %530 = vmatpush.msra.mxu0 0.0
        %531 = vmatpush.msra.mxu0 0.0
        %532 = vmatpush.msra.mxu0 0.0
        %533 = vmatpush.msra.mxu0 0.0
        %534 = vmatpush.msra.mxu0 %v517
        %535 = vmatmul.f32.gmra.mxu0 %v514
        %v536 = vpop.f32.mrf.mxu0
        %v537 = vadd.f32 0.0, %v536
        %538 = vdwg.mxu0
        %v540 = vsel %vm459, %v452, 0
        %v543 = vsel %vm463, %v442, 0
        %545 = vmatpush.msra.mxu0 0.0
        %546 = vmatpush.msra.mxu0 0.0
        %547 = vmatpush.msra.mxu0 0.0
        %548 = vmatpush.msra.mxu0 0.0
        %549 = vmatpush.msra.mxu0 0.0
        %550 = vmatpush.msra.mxu0 0.0
        %551 = vmatpush.msra.mxu0 0.0
        %552 = vmatpush.msra.mxu0 0.0
        %553 = vmatpush.msra.mxu0 0.0
        %554 = vmatpush.msra.mxu0 0.0
        %555 = vmatpush.msra.mxu0 0.0
        %556 = vmatpush.msra.mxu0 0.0
        %557 = vmatpush.msra.mxu0 0.0
        %558 = vmatpush.msra.mxu0 0.0
        %559 = vmatpush.msra.mxu0 0.0
        %560 = vmatpush.msra.mxu0 %v543
        %561 = vmatmul.f32.gmra.mxu0 %v540
        %v562 = vpop.f32.mrf.mxu0
        %v563 = vadd.f32 0.0, %v562
        %564 = vdwg.mxu0
        %v566 = vsel %vm459, %v453, 0
        %v569 = vsel %vm463, %v443, 0
        %571 = vmatpush.msra.mxu0 0.0
        %572 = vmatpush.msra.mxu0 0.0
        %573 = vmatpush.msra.mxu0 0.0
        %574 = vmatpush.msra.mxu0 0.0
        %575 = vmatpush.msra.mxu0 0.0
        %576 = vmatpush.msra.mxu0 0.0
        %577 = vmatpush.msra.mxu0 0.0
        %578 = vmatpush.msra.mxu0 0.0
        %579 = vmatpush.msra.mxu0 0.0
        %580 = vmatpush.msra.mxu0 0.0
        %581 = vmatpush.msra.mxu0 0.0
        %582 = vmatpush.msra.mxu0 0.0
        %583 = vmatpush.msra.mxu0 0.0
        %584 = vmatpush.msra.mxu0 0.0
        %585 = vmatpush.msra.mxu0 0.0
        %586 = vmatpush.msra.mxu0 %v569
        %587 = vmatmul.f32.gmra.mxu0 %v566
        %v588 = vpop.f32.mrf.mxu0
        %v589 = vadd.f32 0.0, %v588
        %590 = vdwg.mxu0
        %v592 = vsel %vm459, %v454, 0
        %v595 = vsel %vm463, %v444, 0
        %597 = vmatpush.msra.mxu0 0.0
        %598 = vmatpush.msra.mxu0 0.0
        %599 = vmatpush.msra.mxu0 0.0
        %600 = vmatpush.msra.mxu0 0.0
        %601 = vmatpush.msra.mxu0 0.0
        %602 = vmatpush.msra.mxu0 0.0
        %603 = vmatpush.msra.mxu0 0.0
        %604 = vmatpush.msra.mxu0 0.0
        %605 = vmatpush.msra.mxu0 0.0
        %606 = vmatpush.msra.mxu0 0.0
        %607 = vmatpush.msra.mxu0 0.0
        %608 = vmatpush.msra.mxu0 0.0
        %609 = vmatpush.msra.mxu0 0.0
        %610 = vmatpush.msra.mxu0 0.0
        %611 = vmatpush.msra.mxu0 0.0
        %612 = vmatpush.msra.mxu0 %v595
        %613 = vmatmul.f32.gmra.mxu0 %v592
        %v614 = vpop.f32.mrf.mxu0
        %v615 = vadd.f32 0.0, %v614
        %616 = vdwg.mxu0
        %v618 = vsel %vm459, %v455, 0
        %v621 = vsel %vm463, %v445, 0
        %623 = vmatpush.msra.mxu0 0.0
        %624 = vmatpush.msra.mxu0 0.0
        %625 = vmatpush.msra.mxu0 0.0
        %626 = vmatpush.msra.mxu0 0.0
        %627 = vmatpush.msra.mxu0 0.0
        %628 = vmatpush.msra.mxu0 0.0
        %629 = vmatpush.msra.mxu0 0.0
        %630 = vmatpush.msra.mxu0 0.0
        %631 = vmatpush.msra.mxu0 0.0
        %632 = vmatpush.msra.mxu0 0.0
        %633 = vmatpush.msra.mxu0 0.0
        %634 = vmatpush.msra.mxu0 0.0
        %635 = vmatpush.msra.mxu0 0.0
        %636 = vmatpush.msra.mxu0 0.0
        %637 = vmatpush.msra.mxu0 0.0
        %638 = vmatpush.msra.mxu0 %v621
        %639 = vmatmul.f32.gmra.mxu0 %v618
        %v640 = vpop.f32.mrf.mxu0
        %v641 = vadd.f32 0.0, %v640
        %642 = vdwg.mxu0
        %v644 = vsel %vm459, %v456, 0
        %v647 = vsel %vm463, %v446, 0
        %649 = vmatpush.msra.mxu0 0.0
        %650 = vmatpush.msra.mxu0 0.0
        %651 = vmatpush.msra.mxu0 0.0
        %652 = vmatpush.msra.mxu0 0.0
        %653 = vmatpush.msra.mxu0 0.0
        %654 = vmatpush.msra.mxu0 0.0
        %655 = vmatpush.msra.mxu0 0.0
        %656 = vmatpush.msra.mxu0 0.0
        %657 = vmatpush.msra.mxu0 0.0
        %658 = vmatpush.msra.mxu0 0.0
        %659 = vmatpush.msra.mxu0 0.0
        %660 = vmatpush.msra.mxu0 0.0
        %661 = vmatpush.msra.mxu0 0.0
        %662 = vmatpush.msra.mxu0 0.0
        %663 = vmatpush.msra.mxu0 0.0
        %664 = vmatpush.msra.mxu0 %v647
        %665 = vmatmul.f32.gmra.mxu0 %v644
        %v666 = vpop.f32.mrf.mxu0
        %v667 = vadd.f32 0.0, %v666
        %668 = vdwg.mxu0
        %v670 = vsel %vm459, %v457, 0
        %v673 = vsel %vm463, %v447, 0
        %675 = vmatpush.msra.mxu0 0.0
        %676 = vmatpush.msra.mxu0 0.0
        %677 = vmatpush.msra.mxu0 0.0
        %678 = vmatpush.msra.mxu0 0.0
        %679 = vmatpush.msra.mxu0 0.0
        %680 = vmatpush.msra.mxu0 0.0
        %681 = vmatpush.msra.mxu0 0.0
        %682 = vmatpush.msra.mxu0 0.0
        %683 = vmatpush.msra.mxu0 0.0
        %684 = vmatpush.msra.mxu0 0.0
        %685 = vmatpush.msra.mxu0 0.0
        %686 = vmatpush.msra.mxu0 0.0
        %687 = vmatpush.msra.mxu0 0.0
        %688 = vmatpush.msra.mxu0 0.0
        %689 = vmatpush.msra.mxu0 0.0
        %690 = vmatpush.msra.mxu0 %v673
        %691 = vmatmul.f32.gmra.mxu0 %v670
        %v692 = vpop.f32.mrf.mxu0
        %v693 = vadd.f32 0.0, %v692
        %694 = vdwg.mxu0
        %v696 = vsel %vm459, %v458, 0
        %v699 = vsel %vm463, %v448, 0
        %701 = vmatpush.msra.mxu0 0.0
        %702 = vmatpush.msra.mxu0 0.0
        %703 = vmatpush.msra.mxu0 0.0
        %704 = vmatpush.msra.mxu0 0.0
        %705 = vmatpush.msra.mxu0 0.0
        %706 = vmatpush.msra.mxu0 0.0
        %707 = vmatpush.msra.mxu0 0.0
        %708 = vmatpush.msra.mxu0 0.0
        %709 = vmatpush.msra.mxu0 0.0
        %710 = vmatpush.msra.mxu0 0.0
        %711 = vmatpush.msra.mxu0 0.0
        %712 = vmatpush.msra.mxu0 0.0
        %713 = vmatpush.msra.mxu0 0.0
        %714 = vmatpush.msra.mxu0 0.0
        %715 = vmatpush.msra.mxu0 0.0
        %716 = vmatpush.msra.mxu0 %v699
        %717 = vmatmul.f32.gmra.mxu0 %v696
        %v718 = vpop.f32.mrf.mxu0
        %v719 = vadd.f32 0.0, %v718
        %720 = vdwg.mxu0
        %v721 = vadd.f32 %v485, %v615
        %v722 = vadd.f32 %v511, %v641
        %v723 = vadd.f32 %v537, %v667
        %v724 = vadd.f32 %v563, %v693
        %v725 = vadd.f32 %v589, %v719
        %v731 = vrot.slane %v722, 7
        %vm732 = vcmask 1041409
        %v733 = vsel %vm732, %v731, %v721
        %v734 = vrot.slane %v723, 6
        %vm735 = vcmask 1042434
        %v736 = vsel %vm735, %v734, %v733
        %v737 = vrot.slane %v724, 5
        %vm738 = vcmask 1043459
        %v739 = vsel %vm738, %v737, %v736
        %v740 = vrot.slane %v725, 4
        %vm741 = vcmask 1044484
        %v742 = vsel %vm741, %v740, %v739
        %v744 = vrot.slane %v721, 5
        %v745 = vrot.slane %v722, 4
        %vm746 = vcmask 1046534
        %v747 = vsel %vm746, %v745, %v744
        %v748 = vrot.slane %v723, 3
        %vm749 = vcmask 1047559
        %v750 = vsel %vm749, %v748, %v747
        %v751 = vrot.slane %v724, 2
        %v752 = vrot.slane %v725, 1
        %v753 = vsel %vm732, %v752, %v751
        %vm755 = vcmask 1044480
        %v756 = vsel %vm755, %v742, %v750
        %vm757 = vcmask 80896
        %v759 = vsel %vm757, %v330, 0
        %v762 = vsel %vm757, %v331, 0
        %v764 = vsel %vm463, %v753, 0
        %766 = vmatpush.msra.mxu0 0.0
        %767 = vmatpush.msra.mxu0 0.0
        %768 = vmatpush.msra.mxu0 0.0
        %769 = vmatpush.msra.mxu0 0.0
        %770 = vmatpush.msra.mxu0 0.0
        %771 = vmatpush.msra.mxu0 0.0
        %772 = vmatpush.msra.mxu0 0.0
        %773 = vmatpush.msra.mxu0 0.0
        %774 = vmatpush.msra.mxu0 0.0
        %775 = vmatpush.msra.mxu0 0.0
        %776 = vmatpush.msra.mxu0 0.0
        %777 = vmatpush.msra.mxu0 0.0
        %778 = vmatpush.msra.mxu0 0.0
        %779 = vmatpush.msra.mxu0 0.0
        %780 = vmatpush.msra.mxu0 %v764
        %781 = vmatpush.msra.mxu0 %v756
        %782 = vmatmul.f32.gmra.mxu0 %v759
        %v783 = vpop.f32.mrf.mxu0
        %v784 = vadd.f32 0.0, %v783
        %785 = vmatmul.f32.gmra.mxu0 %v762
        %v786 = vpop.f32.mrf.mxu0
        %v787 = vadd.f32 0.0, %v786
        %788 = vdwg.mxu0
        %789 = vst.msk [vmem:[%s318] sm:$0xff] %vm334, %v784
        %790 = vst.msk [vmem:[%s318 + $0x8] sm:$0xff] %vm334, %v787
        %v791 = vrot.slane %v721, 1
        %v792 = vsel %vm732, %v722, %v791
        %v793 = vrot.slane %v723, 7
        %v794 = vsel %vm735, %v793, %v792
        %v795 = vrot.slane %v724, 6
        %v796 = vsel %vm738, %v795, %v794
        %v797 = vrot.slane %v725, 5
        %v798 = vsel %vm741, %v797, %v796
        %v800 = vrot.slane %v721, 6
        %v801 = vrot.slane %v722, 5
        %v802 = vsel %vm746, %v801, %v800
        %v803 = vrot.slane %v723, 4
        %v804 = vsel %vm749, %v803, %v802
        %v805 = vrot.slane %v724, 3
        %v806 = vrot.slane %v725, 2
        %v807 = vsel %vm732, %v806, %v805
        %v809 = vsel %vm755, %v798, %v804
        %v810 = vsel %vm463, %v807, 0
        %812 = vmatpush.msra.mxu0 0.0
        %813 = vmatpush.msra.mxu0 0.0
        %814 = vmatpush.msra.mxu0 0.0
        %815 = vmatpush.msra.mxu0 0.0
        %816 = vmatpush.msra.mxu0 0.0
        %817 = vmatpush.msra.mxu0 0.0
        %818 = vmatpush.msra.mxu0 0.0
        %819 = vmatpush.msra.mxu0 0.0
        %820 = vmatpush.msra.mxu0 0.0
        %821 = vmatpush.msra.mxu0 0.0
        %822 = vmatpush.msra.mxu0 0.0
        %823 = vmatpush.msra.mxu0 0.0
        %824 = vmatpush.msra.mxu0 0.0
        %825 = vmatpush.msra.mxu0 0.0
        %826 = vmatpush.msra.mxu0 %v810
        %827 = vmatpush.msra.mxu0 %v809
        %828 = vmatmul.f32.gmra.mxu0 %v759
        %v829 = vpop.f32.mrf.mxu0
        %v830 = vadd.f32 0.0, %v829
        %831 = vmatmul.f32.gmra.mxu0 %v762
        %v832 = vpop.f32.mrf.mxu0
        %v833 = vadd.f32 0.0, %v832
        %834 = vdwg.mxu0
        %s835 = scalar_lea.vmem %s318, 16 [#allocation8]
        %836 = vst.msk [vmem:[%s835] sm:$0xff] %vm334, %v830
        %837 = vst.msk [vmem:[%s835 + $0x8] sm:$0xff] %vm334, %v833
        %s838 = sand.u32 %s162, 1
        %s839 = scalar_lea.sflag [#allocation4], %s838
        %s840 = sand.u32 %s162, 1
        %s841 = smul.addr %s840, 32
        %s842 = scalar_lea.vmem [#allocation8], %s841
        // Predicated region
        $region53: #{ffno_conv2d_forward.3} parent=39 // pred_check
          %p843 = pneg %p172
        $region54: #{ffno_conv2d_forward.3} parent=39 // pred_check_branch
          %845 = sbr.rel (%p843) target = $region56
        $region55: #{ffno_conv2d_forward.3} parent=39 // pred_region
          %847 = vsyncadd %s839, 0
          %s848 = sadd.s32 %s26, 4
          %s849 = smul.addr %s25, 8
          %s850 = sadd.s32 %s848, %s849
          %s851 = smul.addr %s850, 8
          %s852 = scalar_lea.hbm %s5, %s851
          %s853 = sshll.u32 %s842, 4
          %s854 = int_to_ptr.vmem [resolvable:$true] %s853
          %s855 = sshll.u32 %s852, 4
          %s856 = int_to_ptr.hbm [resolvable:$true] %s855
          %861 = dma.vmem_to_hbm [thread:$0]  %s854, 512, %s856, %s839, 128, 128, 8
        $region56: #{ffno_conv2d_forward.3} parent=39 // pred_fallthru
          _
      $region40: #{ffno_conv2d_forward.3} parent=5 // pred_fallthru
        _
      %p862 = scmp.le.s32.totalorder 2, %s16
      // Predicated region
      $region57: #{ffno_conv2d_forward.3} parent=5 // pred_check
        %p863 = pneg %p862
      $region58: #{ffno_conv2d_forward.3} parent=5 // pred_check_branch
        %865 = sbr.rel (%p863) target = $region60
      $region59: #{ffno_conv2d_forward.3} parent=5 // pred_region
        %s866 = ssub.s32 %s16, 2
        // Predicated region
        $region61: #{ffno_conv2d_forward.3} parent=59 // pred_check
          %p867 = pneg %p178
        $region62: #{ffno_conv2d_forward.3} parent=59 // pred_check_branch
          %869 = sbr.rel (%p867) target = $region64
        $region63: #{ffno_conv2d_forward.3} parent=59 // pred_region
          %s870 = sand.u32 %s163, 1
          %s871 = scalar_lea.sflag [#allocation4], %s870
          %s872 = sand.u32 %s163, 1
          %s873 = smul.addr %s872, 32
          %s874 = scalar_lea.vmem [#allocation8], %s873
          %876 = dma.done %s871, 512
        $region64: #{ffno_conv2d_forward.3} parent=59 // pred_fallthru
          _
      $region60: #{ffno_conv2d_forward.3} parent=5 // pred_fallthru
        _
    $region6: #{ffno_conv2d_forward.3} parent=1 // loop_footer
      %s20 = sadd.s32 1, %s16
    $region7: #{ffno_conv2d_forward.3} parent=1 // loop_footer_branch
      %15 = sbr.rel target = $region3
    $region8: #{ffno_conv2d_forward.3} parent=1 // loop_exit
      _
    %877 = vsyncpa [#allocation3], 1
    %s878 = scalar_lea.sflag [#allocation3], 1
    %879 = vsyncpa %s878, 1
    %880 = vsyncpa [#allocation6], 1
    %881 = vsyncpa [#allocation4], 1
    %s882 = scalar_lea.sflag [#allocation4], 1
    %883 = vsyncpa %s882, 1

// kernel: ffno_conv2d_forward.2
$region0: #{ffno_conv2d_forward.2}
  #allocation0 [shape = 'u32[]', space=smem, size = 0x4, offset = 0x4, fixed_abs, tag = 'smem constant byte address 0x4 - core index']
  #allocation1 [shape = 'u32[72,128]{1,0:T(1,128)}', space=vmem, size = 0x9000, scoped, tag = 'internal scratch']
  %s0 = inlined_call_operand.vmem [shape: f32[2,4,16,16], index: 0, kind: input, shape index: {}]
  %s1 = inlined_call_operand.hbm [shape: f32[12,16], index: 1, kind: input, shape index: {}]
  %s2 = inlined_call_operand.vmem [shape: f32[12,4,2], index: 2, kind: input, shape index: {}]
  %s3 = inlined_call_operand.vmem [shape: f32[12,16], index: 3, kind: input, shape index: {}]
  %s4 = inlined_call_operand.hbm [shape: f32[2,4,16,16], index: 4, kind: output, shape index: {}]
  %s5 = sld [smem:[#allocation0]]
  $region53: #{ffno_conv2d_forward.2} parent=0
    _
  %s7 = ssub.s32 1, %s5
  %s8 = scalar_select 0, %s7, %s5
  $region1: #{ffno_conv2d_forward.2} parent=0
    #allocation2 [shape = 'u8[8192]{0}', space=vmem, size = 0x2000, scoped, tag = 'input window, operand 1, single buffered']
    #allocation3 [shape = 's32[2]{0}', space=sflag, size = 0x8, scoped, tag = 'scoped memory for ffno_conv2d_forward.2']
    #allocation4 [shape = 's32[2]{0}', space=sflag, size = 0x8, scoped, tag = 'scoped memory for ffno_conv2d_forward.2']
    #allocation5 [shape = 'u8[32768]{0}', space=vmem, size = 0x8000, scoped, tag = 'output window, operand 0']
    %9 = vsyncpa [#allocation3], 0
    %10 = vsyncpa [#allocation4], 0
    %s11 = scalar_lea.sflag [#allocation4], 1
    %12 = vsyncpa %s11, 0
    loop: start=0, step=1, limit=4
    $region2: #{ffno_conv2d_forward.2} parent=1 // loop_pre_header
      _
    $region3: #{ffno_conv2d_forward.2} parent=1 // loop_header
      %s14 = sphi 0, %s18
      %p15 = scmp.ge.s32.totalorder %s14, 4
      %s21 = sphi 0, %s33
      %s22 = sphi 0, %s29
      %s23 = sphi 0, %s21
      %s24 = sphi 0, %s22
      %s25 = sphi 0, %s23
      %s26 = sphi 0, %s24
      %s38 = sphi 0, %s40
      %s41 = sphi 0, %s38
      %s42 = sphi 0, %s41
      %s58 = sphi 0, %s42
      %s62 = sphi 0, %s62
      %s64 = sphi 0, %s62
      %s65 = sphi 0, %s64
      %s79 = sphi 0, %s65
      %s83 = sphi 0, %s83
      %s85 = sphi 0, %s83
      %s86 = sphi 0, %s85
      %s100 = sphi 0, %s86
      %s104 = sphi 0, %s104
      %s106 = sphi 0, %s104
      %s107 = sphi 0, %s106
      %s121 = sphi 0, %s107
      %s129 = sphi 0, %s131
      %s132 = sphi 0, %s129
      %s133 = sphi 0, %s132
      %s149 = sphi 0, %s133
    $region4: #{ffno_conv2d_forward.2} parent=1 // loop_header_branch
      %17 = sbr.rel (%p15) target = $region8
    $region5: #{ffno_conv2d_forward.2} parent=1 // loop_body
      %s19 = ssub.s32 %s14, 1
      %s20 = ssub.s32 %s14, 2
      %s27 = sadd.s32 1, %s22
      %p28 = scmp.ge.s32.totalorder %s27, 1
      %s29 = scalar_select %p28, 0, %s27
      %s30 = sadd.s32 1, %s21
      %s31 = scalar_select %p28, %s30, %s21
      %p32 = scmp.ge.s32.totalorder %s31, 2
      %s33 = scalar_select %p32, 0, %s31
      %s34 = ssub.s32 %s21, %s33
      %s35 = ssub.s32 %s22, %s29
      %s36 = sor.u32 %s34, %s35
      %p37 = scmp.eq.s32.totalorder %s36, 0
      %s39 = sadd.s32 %s38, 1
      %s40 = scalar_select %p37, %s38, %s39
      %p43 = pneg %p37
      %p44 = scmp.eq.s32.totalorder %s14, 1
      %p45 = por %p43, %p44
      %p46 = scmp.ne.s32.totalorder %s38, %s41
      %p47 = scmp.eq.s32.totalorder %s14, 0
      %p48 = por %p46, %p47
      %p49 = scmp.ne.s32.totalorder %s38, %s41
      %p50 = scmp.eq.s32.totalorder %s19, 1
      %p51 = por %p49, %p50
      %p52 = scmp.ne.s32.totalorder %s41, %s42
      %p53 = scmp.eq.s32.totalorder %s19, 0
      %p54 = por %p52, %p53
      %p55 = scmp.ne.s32.totalorder %s41, %s42
      %p56 = scmp.eq.s32.totalorder %s20, 1
      %p57 = por %p55, %p56
      %p59 = scmp.ne.s32.totalorder %s42, %s58
      %p60 = scmp.eq.s32.totalorder %s20, 0
      %p61 = por %p59, %p60
      %s63 = sadd.s32 %s62, 1
      %p66 = scmp.eq.s32.totalorder %s14, 1
      %p67 = scmp.ne.s32.totalorder %s62, %s64
      %p68 = scmp.eq.s32.totalorder %s14, 0
      %p69 = por %p67, %p68
      %p70 = scmp.ne.s32.totalorder %s62, %s64
      %p71 = scmp.eq.s32.totalorder %s19, 1
      %p72 = por %p70, %p71
      %p73 = scmp.ne.s32.totalorder %s64, %s65
      %p74 = scmp.eq.s32.totalorder %s19, 0
      %p75 = por %p73, %p74
      %p76 = scmp.ne.s32.totalorder %s64, %s65
      %p77 = scmp.eq.s32.totalorder %s20, 1
      %p78 = por %p76, %p77
      %p80 = scmp.ne.s32.totalorder %s65, %s79
      %p81 = scmp.eq.s32.totalorder %s20, 0
      %p82 = por %p80, %p81
      %s84 = sadd.s32 %s83, 1
      %p87 = scmp.eq.s32.totalorder %s14, 1
      %p88 = scmp.ne.s32.totalorder %s83, %s85
      %p89 = scmp.eq.s32.totalorder %s14, 0
      %p90 = por %p88, %p89
      %p91 = scmp.ne.s32.totalorder %s83, %s85
      %p92 = scmp.eq.s32.totalorder %s19, 1
      %p93 = por %p91, %p92
      %p94 = scmp.ne.s32.totalorder %s85, %s86
      %p95 = scmp.eq.s32.totalorder %s19, 0
      %p96 = por %p94, %p95
      %p97 = scmp.ne.s32.totalorder %s85, %s86
      %p98 = scmp.eq.s32.totalorder %s20, 1
      %p99 = por %p97, %p98
      %p101 = scmp.ne.s32.totalorder %s86, %s100
      %p102 = scmp.eq.s32.totalorder %s20, 0
      %p103 = por %p101, %p102
      %s105 = sadd.s32 %s104, 1
      %p108 = scmp.eq.s32.totalorder %s14, 1
      %p109 = scmp.ne.s32.totalorder %s104, %s106
      %p110 = scmp.eq.s32.totalorder %s14, 0
      %p111 = por %p109, %p110
      %p112 = scmp.ne.s32.totalorder %s104, %s106
      %p113 = scmp.eq.s32.totalorder %s19, 1
      %p114 = por %p112, %p113
      %p115 = scmp.ne.s32.totalorder %s106, %s107
      %p116 = scmp.eq.s32.totalorder %s19, 0
      %p117 = por %p115, %p116
      %p118 = scmp.ne.s32.totalorder %s106, %s107
      %p119 = scmp.eq.s32.totalorder %s20, 1
      %p120 = por %p118, %p119
      %p122 = scmp.ne.s32.totalorder %s107, %s121
      %p123 = scmp.eq.s32.totalorder %s20, 0
      %p124 = por %p122, %p123
      %s125 = ssub.s32 %s21, %s33
      %s126 = ssub.s32 %s22, %s29
      %s127 = sor.u32 %s125, %s126
      %p128 = scmp.eq.s32.totalorder %s127, 0
      %s130 = sadd.s32 %s129, 1
      %s131 = scalar_select %p128, %s129, %s130
      %p134 = pneg %p128
      %p135 = scmp.eq.s32.totalorder %s14, 1
      %p136 = por %p134, %p135
      %p137 = scmp.ne.s32.totalorder %s129, %s132
      %p138 = scmp.eq.s32.totalorder %s14, 0
      %p139 = por %p137, %p138
      %p140 = scmp.ne.s32.totalorder %s129, %s132
      %p141 = scmp.eq.s32.totalorder %s19, 1
      %p142 = por %p140, %p141
      %p143 = scmp.ne.s32.totalorder %s132, %s133
      %p144 = scmp.eq.s32.totalorder %s19, 0
      %p145 = por %p143, %p144
      %p146 = scmp.ne.s32.totalorder %s132, %s133
      %p147 = scmp.eq.s32.totalorder %s20, 1
      %p148 = por %p146, %p147
      %p150 = scmp.ne.s32.totalorder %s133, %s149
      %p151 = scmp.eq.s32.totalorder %s20, 0
      %p152 = por %p150, %p151
      %p153 = scmp.le.s32.totalorder 1, %s14
      %p154 = scmp.lt.s32.totalorder %s14, 3
      %p155 = pnand %p153, %p154
      %p156 = pneg %p155
      // Predicated region
      $region9: #{ffno_conv2d_forward.2} parent=5 // pred_check
        _
      $region10: #{ffno_conv2d_forward.2} parent=5 // pred_check_branch
        %158 = sbr.rel (%p155) target = $region12
      $region11: #{ffno_conv2d_forward.2} parent=5 // pred_region
        %s159 = ssub.s32 %s14, 1
        // Predicated region
        $region13: #{ffno_conv2d_forward.2} parent=11 // pred_check
          %p160 = pneg %p75
        $region14: #{ffno_conv2d_forward.2} parent=11 // pred_check_branch
          %162 = sbr.rel (%p160) target = $region16
        $region15: #{ffno_conv2d_forward.2} parent=11 // pred_region
          %164 = vsyncadd [#allocation3], 0
          %s165 = sshll.u32 %s1, 4
          %s166 = int_to_ptr.hbm [resolvable:$true] %s165
          %s167 = sshll.u32 [#allocation2], 4
          %s168 = int_to_ptr.vmem [resolvable:$true] %s167
          %173 = dma.hbm_to_vmem [thread:$0]  %s166, 256, %s168, [#allocation3], 128, 128, 8
        $region16: #{ffno_conv2d_forward.2} parent=11 // pred_fallthru
          _
        // Predicated region
        $region17: #{ffno_conv2d_forward.2} parent=11 // pred_check
          %p174 = pneg %p96
        $region18: #{ffno_conv2d_forward.2} parent=11 // pred_check_branch
          %176 = sbr.rel (%p174) target = $region20
        $region19: #{ffno_conv2d_forward.2} parent=11 // pred_region
          _
        $region20: #{ffno_conv2d_forward.2} parent=11 // pred_fallthru
          _
        // Predicated region
        $region21: #{ffno_conv2d_forward.2} parent=11 // pred_check
          %p177 = pneg %p117
        $region22: #{ffno_conv2d_forward.2} parent=11 // pred_check_branch
          %179 = sbr.rel (%p177) target = $region24
        $region23: #{ffno_conv2d_forward.2} parent=11 // pred_region
          _
        $region24: #{ffno_conv2d_forward.2} parent=11 // pred_fallthru
          _
      $region12: #{ffno_conv2d_forward.2} parent=5 // pred_fallthru
        _
      %p180 = scmp.lt.s32.totalorder %s14, 2
      // Predicated region
      $region25: #{ffno_conv2d_forward.2} parent=5 // pred_check
        %p181 = pneg %p180
      $region26: #{ffno_conv2d_forward.2} parent=5 // pred_check_branch
        %183 = sbr.rel (%p181) target = $region28
      $region27: #{ffno_conv2d_forward.2} parent=5 // pred_region
        // Predicated region
        $region29: #{ffno_conv2d_forward.2} parent=27 // pred_check
          %p184 = pneg %p48
        $region30: #{ffno_conv2d_forward.2} parent=27 // pred_check_branch
          %186 = sbr.rel (%p184) target = $region32
        $region31: #{ffno_conv2d_forward.2} parent=27 // pred_region
          %s187 = smul.u32 2, %s22
          %p188 = scmp.lt.s32.totalorder %s21, 1
          %s189 = scalar_select %p188, %s21, 1
          %p190 = scmp.lt.s32.totalorder %s187, 1
          %s191 = scalar_select %p190, %s187, 1
          %s192 = smul.addr %s189, 8
          %s193 = sadd.s32 %s191, %s192
          %s194 = smul.addr %s193, 8
          %s195 = scalar_lea.vmem %s0, %s194
          %s196 = smul.u32 2, %s22
        $region32: #{ffno_conv2d_forward.2} parent=27 // pred_fallthru
          _
      $region28: #{ffno_conv2d_forward.2} parent=5 // pred_fallthru
        _
      %p197 = scmp.le.s32.totalorder 1, %s14
      %p198 = scmp.lt.s32.totalorder %s14, 3
      %p199 = pnand %p197, %p198
      %p200 = pneg %p199
      // Predicated region
      $region33: #{ffno_conv2d_forward.2} parent=5 // pred_check
        _
      $region34: #{ffno_conv2d_forward.2} parent=5 // pred_check_branch
        %202 = sbr.rel (%p199) target = $region36
      $region35: #{ffno_conv2d_forward.2} parent=5 // pred_region
        %s203 = ssub.s32 %s14, 1
        // Predicated region
        $region37: #{ffno_conv2d_forward.2} parent=35 // pred_check
          %p204 = pneg %p75
        $region38: #{ffno_conv2d_forward.2} parent=35 // pred_check_branch
          %206 = sbr.rel (%p204) target = $region40
        $region39: #{ffno_conv2d_forward.2} parent=35 // pred_region
          %208 = dma.done [#allocation3], 256
        $region40: #{ffno_conv2d_forward.2} parent=35 // pred_fallthru
          _
        %s209 = smul.u32 2, %s24
        %p210 = scmp.lt.s32.totalorder %s23, 1
        %s211 = scalar_select %p210, %s23, 1
        %p212 = scmp.lt.s32.totalorder %s209, 1
        %s213 = scalar_select %p212, %s209, 1
        %s214 = smul.addr %s211, 8
        %s215 = sadd.s32 %s213, %s214
        %s216 = smul.addr %s215, 8
        %s217 = scalar_lea.vmem %s0, %s216
        %p218 = pneg %p54
        %p219 = pneg %p51
        %p220 = pneg %p75
        %p221 = pneg %p72
        %p222 = pneg %p96
        %p223 = pneg %p93
        %p224 = pneg %p117
        %p225 = pneg %p114
        %p226 = pneg %p145
        %p227 = pneg %p142
        %s228 = sand.u32 %s132, 1
        %s229 = scalar_lea.sflag [#allocation4], %s228
        %s230 = sand.u32 %s132, 1
        %s231 = smul.addr %s230, 32
        %s232 = scalar_lea.vmem [#allocation5], %s231
        %s233 = smul.u32 2, %s24
        %p234 = scmp.lt.s32.totalorder %s23, 1
        %s235 = scalar_select %p234, %s23, 1
        %p236 = scmp.lt.s32.totalorder %s233, 1
        %s237 = scalar_select %p236, %s233, 1
        %s238 = smul.addr %s235, 8
        %s239 = sadd.s32 %s237, %s238
        %s240 = smul.addr %s239, 8
        %s241 = scalar_lea.vmem %s0, %s240
        %s242 = smul.u32 2, %s24
        %s243 = smul.u32 2, %s24
        %v244 = vld [vmem:[#allocation2] sm:$0xff]
        %v245 = vld [vmem:[#allocation2 + $0x8] sm:$0xf]
        %v246 = vld [vmem:[%s3] sm:$0xff]
        %v247 = vld [vmem:[%s3 + $0x8] sm:$0xf]
        %v248 = vld [vmem:[%s241] sm:$0xff]
        %v249 = vld [vmem:[%s241 + $0x8] sm:$0xff]
        %vm250 = vcmask 130048
        %v252 = vsel %vm250, %v244, 0
        %v255 = vsel %vm250, %v245, 0
        %v258 = vsel %vm250, %v248, 0
        %v261 = vsel %vm250, %v249, 0
        %263 = vmatpush.xpose.msra.mxu0 0.0
        %264 = vmatpush.xpose.msra.mxu0 0.0
        %265 = vmatpush.xpose.msra.mxu0 0.0
        %266 = vmatpush.xpose.msra.mxu0 0.0
        %267 = vmatpush.xpose.msra.mxu0 0.0
        %268 = vmatpush.xpose.msra.mxu0 0.0
        %269 = vmatpush.xpose.msra.mxu0 0.0
        %270 = vmatpush.xpose.msra.mxu0 0.0
        %271 = vmatpush.xpose.msra.mxu0 0.0
        %272 = vmatpush.xpose.msra.mxu0 0.0
        %273 = vmatpush.xpose.msra.mxu0 0.0
        %274 = vmatpush.xpose.msra.mxu0 0.0
        %275 = vmatpush.xpose.msra.mxu0 0.0
        %276 = vmatpush.xpose.msra.mxu0 0.0
        %277 = vmatpush.xpose.msra.mxu0 %v261
        %278 = vmatpush.xpose.msra.mxu0 %v258
        %279 = vmatmul.f32.gmra.mxu0 %v252
        %v280 = vpop.f32.mrf.mxu0
        %v281 = vadd.f32 0.0, %v280
        %282 = vmatmul.f32.gmra.mxu0 %v255
        %v283 = vpop.f32.mrf.mxu0
        %v284 = vadd.f32 0.0, %v283
        %285 = vdwg.mxu0
        %s286 = scalar_lea.vmem %s241, 16
        %v287 = vld [vmem:[%s286] sm:$0xff]
        %v288 = vld [vmem:[%s286 + $0x8] sm:$0xff]
        %v290 = vsel %vm250, %v287, 0
        %v293 = vsel %vm250, %v288, 0
        %295 = vmatpush.xpose.msra.mxu0 0.0
        %296 = vmatpush.xpose.msra.mxu0 0.0
        %297 = vmatpush.xpose.msra.mxu0 0.0
        %298 = vmatpush.xpose.msra.mxu0 0.0
        %299 = vmatpush.xpose.msra.mxu0 0.0
        %300 = vmatpush.xpose.msra.mxu0 0.0
        %301 = vmatpush.xpose.msra.mxu0 0.0
        %302 = vmatpush.xpose.msra.mxu0 0.0
        %303 = vmatpush.xpose.msra.mxu0 0.0
        %304 = vmatpush.xpose.msra.mxu0 0.0
        %305 = vmatpush.xpose.msra.mxu0 0.0
        %306 = vmatpush.xpose.msra.mxu0 0.0
        %307 = vmatpush.xpose.msra.mxu0 0.0
        %308 = vmatpush.xpose.msra.mxu0 0.0
        %309 = vmatpush.xpose.msra.mxu0 %v293
        %310 = vmatpush.xpose.msra.mxu0 %v290
        %311 = vmatmul.f32.gmra.mxu0 %v252
        %v312 = vpop.f32.mrf.mxu0
        %v313 = vadd.f32 0.0, %v312
        %314 = vmatmul.f32.gmra.mxu0 %v255
        %v315 = vpop.f32.mrf.mxu0
        %v316 = vadd.f32 0.0, %v315
        %317 = vdwg.mxu0
        %v320 = vrot.slane %v281, 1
        %v321 = vrot.slane %v281, 2
        %v322 = vrot.slane %v281, 3
        %v323 = vrot.slane %v281, 4
        %v324 = vrot.slane %v281, 5
        %v325 = vrot.slane %v281, 6
        %v326 = vrot.slane %v281, 7
        %v327 = vrot.slane %v284, 1
        %v328 = vrot.slane %v284, 2
        %v329 = vrot.slane %v284, 3
        %v342 = vrot.slane %v313, 1
        %v343 = vrot.slane %v313, 2
        %v344 = vrot.slane %v313, 3
        %v345 = vrot.slane %v313, 4
        %v346 = vrot.slane %v313, 5
        %v347 = vrot.slane %v313, 6
        %v348 = vrot.slane %v313, 7
        %v349 = vrot.slane %v316, 1
        %v350 = vrot.slane %v316, 2
        %v351 = vrot.slane %v316, 3
        %v352 = vperm.slane %v313, 0
        %v353 = vperm.slane %v342, 0
        %v354 = vperm.slane %v343, 0
        %v355 = vperm.slane %v344, 0
        %v356 = vperm.slane %v345, 0
        %v357 = vperm.slane %v346, 0
        %v358 = vperm.slane %v347, 0
        %v359 = vperm.slane %v348, 0
        %v360 = vperm.slane %v316, 0
        %v361 = vperm.slane %v349, 0
        %v362 = vperm.slane %v350, 0
        %v363 = vperm.slane %v351, 0
        %vm376 = vcmask 1040384
        %v377 = vsel %vm376, %v281, %v352
        %v378 = vsel %vm376, %v320, %v353
        %v379 = vsel %vm376, %v321, %v354
        %v380 = vsel %vm376, %v322, %v355
        %v381 = vsel %vm376, %v323, %v356
        %v382 = vsel %vm376, %v324, %v357
        %v383 = vsel %vm376, %v325, %v358
        %v384 = vsel %vm376, %v326, %v359
        %v385 = vsel %vm376, %v284, %v360
        %v386 = vsel %vm376, %v327, %v361
        %v387 = vsel %vm376, %v328, %v362
        %v388 = vsel %vm376, %v329, %v363
        %v389 = vld [vmem:[%s2] sm:$0xf]
        %v390 = vld [vmem:[%s2 + $0x4] sm:$0xf]
        %v391 = vld [vmem:[%s2 + $0x8] sm:$0xf]
        %v392 = vld [vmem:[%s2 + $0xc] sm:$0xf]
        %v393 = vld [vmem:[%s2 + $0x10] sm:$0xf]
        %v394 = vld [vmem:[%s2 + $0x14] sm:$0xf]
        %v395 = vld [vmem:[%s2 + $0x18] sm:$0xf]
        %v396 = vld [vmem:[%s2 + $0x1c] sm:$0xf]
        %v397 = vld [vmem:[%s2 + $0x20] sm:$0xf]
        %v398 = vld [vmem:[%s2 + $0x24] sm:$0xf]
        %v399 = vld [vmem:[%s2 + $0x28] sm:$0xf]
        %v400 = vld [vmem:[%s2 + $0x2c] sm:$0xf]
        %vm401 = vcmask 15360
        %v403 = vsel %vm401, %v389, 0
        %vm405 = vcmask 1041408
        %v407 = vsel %vm405, %v377, 0
        %409 = vmatpush.msra.mxu0 0.0
        %410 = vmatpush.msra.mxu0 0.0
        %411 = vmatpush.msra.mxu0 0.0
        %412 = vmatpush.msra.mxu0 0.0
        %413 = vmatpush.msra.mxu0 0.0
        %414 = vmatpush.msra.mxu0 0.0
        %415 = vmatpush.msra.mxu0 0.0
        %416 = vmatpush.msra.mxu0 0.0
        %417 = vmatpush.msra.mxu0 0.0
        %418 = vmatpush.msra.mxu0 0.0
        %419 = vmatpush.msra.mxu0 0.0
        %420 = vmatpush.msra.mxu0 0.0
        %421 = vmatpush.msra.mxu0 0.0
        %422 = vmatpush.msra.mxu0 0.0
        %423 = vmatpush.msra.mxu0 0.0
        %424 = vmatpush.msra.mxu0 %v407
        %425 = vmatmul.f32.gmra.mxu0 %v403
        %v426 = vpop.f32.mrf.mxu0
        %v427 = vadd.f32 0.0, %v426
        %428 = vdwg.mxu0
        %v430 = vsel %vm401, %v390, 0
        %v433 = vsel %vm405, %v378, 0
        %435 = vmatpush.msra.mxu0 0.0
        %436 = vmatpush.msra.mxu0 0.0
        %437 = vmatpush.msra.mxu0 0.0
        %438 = vmatpush.msra.mxu0 0.0
        %439 = vmatpush.msra.mxu0 0.0
        %440 = vmatpush.msra.mxu0 0.0
        %441 = vmatpush.msra.mxu0 0.0
        %442 = vmatpush.msra.mxu0 0.0
        %443 = vmatpush.msra.mxu0 0.0
        %444 = vmatpush.msra.mxu0 0.0
        %445 = vmatpush.msra.mxu0 0.0
        %446 = vmatpush.msra.mxu0 0.0
        %447 = vmatpush.msra.mxu0 0.0
        %448 = vmatpush.msra.mxu0 0.0
        %449 = vmatpush.msra.mxu0 0.0
        %450 = vmatpush.msra.mxu0 %v433
        %451 = vmatmul.f32.gmra.mxu0 %v430
        %v452 = vpop.f32.mrf.mxu0
        %v453 = vadd.f32 0.0, %v452
        %454 = vdwg.mxu0
        %v456 = vsel %vm401, %v391, 0
        %v459 = vsel %vm405, %v379, 0
        %461 = vmatpush.msra.mxu0 0.0
        %462 = vmatpush.msra.mxu0 0.0
        %463 = vmatpush.msra.mxu0 0.0
        %464 = vmatpush.msra.mxu0 0.0
        %465 = vmatpush.msra.mxu0 0.0
        %466 = vmatpush.msra.mxu0 0.0
        %467 = vmatpush.msra.mxu0 0.0
        %468 = vmatpush.msra.mxu0 0.0
        %469 = vmatpush.msra.mxu0 0.0
        %470 = vmatpush.msra.mxu0 0.0
        %471 = vmatpush.msra.mxu0 0.0
        %472 = vmatpush.msra.mxu0 0.0
        %473 = vmatpush.msra.mxu0 0.0
        %474 = vmatpush.msra.mxu0 0.0
        %475 = vmatpush.msra.mxu0 0.0
        %476 = vmatpush.msra.mxu0 %v459
        %477 = vmatmul.f32.gmra.mxu0 %v456
        %v478 = vpop.f32.mrf.mxu0
        %v479 = vadd.f32 0.0, %v478
        %480 = vdwg.mxu0
        %v482 = vsel %vm401, %v392, 0
        %v485 = vsel %vm405, %v380, 0
        %487 = vmatpush.msra.mxu0 0.0
        %488 = vmatpush.msra.mxu0 0.0
        %489 = vmatpush.msra.mxu0 0.0
        %490 = vmatpush.msra.mxu0 0.0
        %491 = vmatpush.msra.mxu0 0.0
        %492 = vmatpush.msra.mxu0 0.0
        %493 = vmatpush.msra.mxu0 0.0
        %494 = vmatpush.msra.mxu0 0.0
        %495 = vmatpush.msra.mxu0 0.0
        %496 = vmatpush.msra.mxu0 0.0
        %497 = vmatpush.msra.mxu0 0.0
        %498 = vmatpush.msra.mxu0 0.0
        %499 = vmatpush.msra.mxu0 0.0
        %500 = vmatpush.msra.mxu0 0.0
        %501 = vmatpush.msra.mxu0 0.0
        %502 = vmatpush.msra.mxu0 %v485
        %503 = vmatmul.f32.gmra.mxu0 %v482
        %v504 = vpop.f32.mrf.mxu0
        %v505 = vadd.f32 0.0, %v504
        %506 = vdwg.mxu0
        %v508 = vsel %vm401, %v393, 0
        %v511 = vsel %vm405, %v381, 0
        %513 = vmatpush.msra.mxu0 0.0
        %514 = vmatpush.msra.mxu0 0.0
        %515 = vmatpush.msra.mxu0 0.0
        %516 = vmatpush.msra.mxu0 0.0
        %517 = vmatpush.msra.mxu0 0.0
        %518 = vmatpush.msra.mxu0 0.0
        %519 = vmatpush.msra.mxu0 0.0
        %520 = vmatpush.msra.mxu0 0.0
        %521 = vmatpush.msra.mxu0 0.0
        %522 = vmatpush.msra.mxu0 0.0
        %523 = vmatpush.msra.mxu0 0.0
        %524 = vmatpush.msra.mxu0 0.0
        %525 = vmatpush.msra.mxu0 0.0
        %526 = vmatpush.msra.mxu0 0.0
        %527 = vmatpush.msra.mxu0 0.0
        %528 = vmatpush.msra.mxu0 %v511
        %529 = vmatmul.f32.gmra.mxu0 %v508
        %v530 = vpop.f32.mrf.mxu0
        %v531 = vadd.f32 0.0, %v530
        %532 = vdwg.mxu0
        %v534 = vsel %vm401, %v394, 0
        %v537 = vsel %vm405, %v382, 0
        %539 = vmatpush.msra.mxu0 0.0
        %540 = vmatpush.msra.mxu0 0.0
        %541 = vmatpush.msra.mxu0 0.0
        %542 = vmatpush.msra.mxu0 0.0
        %543 = vmatpush.msra.mxu0 0.0
        %544 = vmatpush.msra.mxu0 0.0
        %545 = vmatpush.msra.mxu0 0.0
        %546 = vmatpush.msra.mxu0 0.0
        %547 = vmatpush.msra.mxu0 0.0
        %548 = vmatpush.msra.mxu0 0.0
        %549 = vmatpush.msra.mxu0 0.0
        %550 = vmatpush.msra.mxu0 0.0
        %551 = vmatpush.msra.mxu0 0.0
        %552 = vmatpush.msra.mxu0 0.0
        %553 = vmatpush.msra.mxu0 0.0
        %554 = vmatpush.msra.mxu0 %v537
        %555 = vmatmul.f32.gmra.mxu0 %v534
        %v556 = vpop.f32.mrf.mxu0
        %v557 = vadd.f32 0.0, %v556
        %558 = vdwg.mxu0
        %v560 = vsel %vm401, %v395, 0
        %v563 = vsel %vm405, %v383, 0
        %565 = vmatpush.msra.mxu0 0.0
        %566 = vmatpush.msra.mxu0 0.0
        %567 = vmatpush.msra.mxu0 0.0
        %568 = vmatpush.msra.mxu0 0.0
        %569 = vmatpush.msra.mxu0 0.0
        %570 = vmatpush.msra.mxu0 0.0
        %571 = vmatpush.msra.mxu0 0.0
        %572 = vmatpush.msra.mxu0 0.0
        %573 = vmatpush.msra.mxu0 0.0
        %574 = vmatpush.msra.mxu0 0.0
        %575 = vmatpush.msra.mxu0 0.0
        %576 = vmatpush.msra.mxu0 0.0
        %577 = vmatpush.msra.mxu0 0.0
        %578 = vmatpush.msra.mxu0 0.0
        %579 = vmatpush.msra.mxu0 0.0
        %580 = vmatpush.msra.mxu0 %v563
        %581 = vmatmul.f32.gmra.mxu0 %v560
        %v582 = vpop.f32.mrf.mxu0
        %v583 = vadd.f32 0.0, %v582
        %584 = vdwg.mxu0
        %v586 = vsel %vm401, %v396, 0
        %v589 = vsel %vm405, %v384, 0
        %591 = vmatpush.msra.mxu0 0.0
        %592 = vmatpush.msra.mxu0 0.0
        %593 = vmatpush.msra.mxu0 0.0
        %594 = vmatpush.msra.mxu0 0.0
        %595 = vmatpush.msra.mxu0 0.0
        %596 = vmatpush.msra.mxu0 0.0
        %597 = vmatpush.msra.mxu0 0.0
        %598 = vmatpush.msra.mxu0 0.0
        %599 = vmatpush.msra.mxu0 0.0
        %600 = vmatpush.msra.mxu0 0.0
        %601 = vmatpush.msra.mxu0 0.0
        %602 = vmatpush.msra.mxu0 0.0
        %603 = vmatpush.msra.mxu0 0.0
        %604 = vmatpush.msra.mxu0 0.0
        %605 = vmatpush.msra.mxu0 0.0
        %606 = vmatpush.msra.mxu0 %v589
        %607 = vmatmul.f32.gmra.mxu0 %v586
        %v608 = vpop.f32.mrf.mxu0
        %v609 = vadd.f32 0.0, %v608
        %610 = vdwg.mxu0
        %v612 = vsel %vm401, %v397, 0
        %v615 = vsel %vm405, %v385, 0
        %617 = vmatpush.msra.mxu0 0.0
        %618 = vmatpush.msra.mxu0 0.0
        %619 = vmatpush.msra.mxu0 0.0
        %620 = vmatpush.msra.mxu0 0.0
        %621 = vmatpush.msra.mxu0 0.0
        %622 = vmatpush.msra.mxu0 0.0
        %623 = vmatpush.msra.mxu0 0.0
        %624 = vmatpush.msra.mxu0 0.0
        %625 = vmatpush.msra.mxu0 0.0
        %626 = vmatpush.msra.mxu0 0.0
        %627 = vmatpush.msra.mxu0 0.0
        %628 = vmatpush.msra.mxu0 0.0
        %629 = vmatpush.msra.mxu0 0.0
        %630 = vmatpush.msra.mxu0 0.0
        %631 = vmatpush.msra.mxu0 0.0
        %632 = vmatpush.msra.mxu0 %v615
        %633 = vmatmul.f32.gmra.mxu0 %v612
        %v634 = vpop.f32.mrf.mxu0
        %v635 = vadd.f32 0.0, %v634
        %636 = vdwg.mxu0
        %v638 = vsel %vm401, %v398, 0
        %v641 = vsel %vm405, %v386, 0
        %643 = vmatpush.msra.mxu0 0.0
        %644 = vmatpush.msra.mxu0 0.0
        %645 = vmatpush.msra.mxu0 0.0
        %646 = vmatpush.msra.mxu0 0.0
        %647 = vmatpush.msra.mxu0 0.0
        %648 = vmatpush.msra.mxu0 0.0
        %649 = vmatpush.msra.mxu0 0.0
        %650 = vmatpush.msra.mxu0 0.0
        %651 = vmatpush.msra.mxu0 0.0
        %652 = vmatpush.msra.mxu0 0.0
        %653 = vmatpush.msra.mxu0 0.0
        %654 = vmatpush.msra.mxu0 0.0
        %655 = vmatpush.msra.mxu0 0.0
        %656 = vmatpush.msra.mxu0 0.0
        %657 = vmatpush.msra.mxu0 0.0
        %658 = vmatpush.msra.mxu0 %v641
        %659 = vmatmul.f32.gmra.mxu0 %v638
        %v660 = vpop.f32.mrf.mxu0
        %v661 = vadd.f32 0.0, %v660
        %662 = vdwg.mxu0
        %v664 = vsel %vm401, %v399, 0
        %v667 = vsel %vm405, %v387, 0
        %669 = vmatpush.msra.mxu0 0.0
        %670 = vmatpush.msra.mxu0 0.0
        %671 = vmatpush.msra.mxu0 0.0
        %672 = vmatpush.msra.mxu0 0.0
        %673 = vmatpush.msra.mxu0 0.0
        %674 = vmatpush.msra.mxu0 0.0
        %675 = vmatpush.msra.mxu0 0.0
        %676 = vmatpush.msra.mxu0 0.0
        %677 = vmatpush.msra.mxu0 0.0
        %678 = vmatpush.msra.mxu0 0.0
        %679 = vmatpush.msra.mxu0 0.0
        %680 = vmatpush.msra.mxu0 0.0
        %681 = vmatpush.msra.mxu0 0.0
        %682 = vmatpush.msra.mxu0 0.0
        %683 = vmatpush.msra.mxu0 0.0
        %684 = vmatpush.msra.mxu0 %v667
        %685 = vmatmul.f32.gmra.mxu0 %v664
        %v686 = vpop.f32.mrf.mxu0
        %v687 = vadd.f32 0.0, %v686
        %688 = vdwg.mxu0
        %v690 = vsel %vm401, %v400, 0
        %v693 = vsel %vm405, %v388, 0
        %695 = vmatpush.msra.mxu0 0.0
        %696 = vmatpush.msra.mxu0 0.0
        %697 = vmatpush.msra.mxu0 0.0
        %698 = vmatpush.msra.mxu0 0.0
        %699 = vmatpush.msra.mxu0 0.0
        %700 = vmatpush.msra.mxu0 0.0
        %701 = vmatpush.msra.mxu0 0.0
        %702 = vmatpush.msra.mxu0 0.0
        %703 = vmatpush.msra.mxu0 0.0
        %704 = vmatpush.msra.mxu0 0.0
        %705 = vmatpush.msra.mxu0 0.0
        %706 = vmatpush.msra.mxu0 0.0
        %707 = vmatpush.msra.mxu0 0.0
        %708 = vmatpush.msra.mxu0 0.0
        %709 = vmatpush.msra.mxu0 0.0
        %710 = vmatpush.msra.mxu0 %v693
        %711 = vmatmul.f32.gmra.mxu0 %v690
        %v712 = vpop.f32.mrf.mxu0
        %v713 = vadd.f32 0.0, %v712
        %714 = vdwg.mxu0
        %v715 = vadd.f32 %v427, %v583
        %v716 = vadd.f32 %v453, %v609
        %v717 = vadd.f32 %v479, %v635
        %v718 = vadd.f32 %v505, %v661
        %v719 = vadd.f32 %v531, %v687
        %v720 = vadd.f32 %v557, %v713
        %v727 = vrot.slane %v716, 7
        %vm728 = vcmask 1041409
        %v729 = vsel %vm728, %v727, %v715
        %v730 = vrot.slane %v717, 6
        %vm731 = vcmask 1042434
        %v732 = vsel %vm731, %v730, %v729
        %v733 = vrot.slane %v718, 5
        %vm734 = vcmask 1043459
        %v735 = vsel %vm734, %v733, %v732
        %v736 = vrot.slane %v719, 4
        %vm737 = vcmask 1044484
        %v738 = vsel %vm737, %v736, %v735
        %v739 = vrot.slane %v720, 3
        %vm740 = vcmask 1045509
        %v741 = vsel %vm740, %v739, %v738
        %v743 = vrot.slane %v715, 4
        %v744 = vrot.slane %v716, 3
        %vm745 = vcmask 1047559
        %v746 = vsel %vm745, %v744, %v743
        %v747 = vrot.slane %v717, 2
        %v748 = vrot.slane %v718, 1
        %v749 = vsel %vm728, %v748, %v747
        %v750 = vsel %vm731, %v719, %v749
        %v751 = vrot.slane %v720, 7
        %v752 = vsel %vm734, %v751, %v750
        %vm755 = vcmask 1045504
        %v756 = vsel %vm755, %v741, %v746
        %757 = vxpose.xlu0.b32.start [1/16] %v756, 128
        %758 = vxpose.xlu0.b32.cont [2/16] %v752, 128
        %759 = vxpose.xlu0.b32.cont [3/16] 0.0, 128
        %760 = vxpose.xlu0.b32.cont [4/16] 0.0, 128
        %761 = vxpose.xlu0.b32.cont [5/16] 0.0, 128
        %762 = vxpose.xlu0.b32.cont [6/16] 0.0, 128
        %763 = vxpose.xlu0.b32.cont [7/16] 0.0, 128
        %764 = vxpose.xlu0.b32.cont [8/16] 0.0, 128
        %765 = vxpose.xlu0.b32.cont [9/16] 0.0, 128
        %766 = vxpose.xlu0.b32.cont [10/16] 0.0, 128
        %767 = vxpose.xlu0.b32.cont [11/16] 0.0, 128
        %768 = vxpose.xlu0.b32.cont [12/16] 0.0, 128
        %769 = vxpose.xlu0.b32.cont [13/16] 0.0, 128
        %770 = vxpose.xlu0.b32.cont [14/16] 0.0, 128
        %771 = vxpose.xlu0.b32.cont [15/16] 0.0, 128
        %772 = vxpose.xlu0.b32.end [16/16] 0.0, 128
        %v773 = vpop.trf.xlu0
        %v774 = vpop.trf.xlu0
        %v775 = vpop.trf.xlu0
        %v776 = vpop.trf.xlu0
        %v777 = vpop.trf.xlu0
        %v778 = vpop.trf.xlu0
        %v779 = vpop.trf.xlu0
        %v780 = vpop.trf.xlu0
        %v781 = vpop.trf.xlu0
        %v782 = vpop.trf.xlu0
        %v783 = vpop.trf.xlu0
        %v784 = vpop.trf.xlu0
        %v785 = vpop.trf.xlu0
        %v786 = vpop.trf.xlu0
        %v787 = vpop.trf.xlu0
        %v788 = vpop.trf.xlu0
        %vm789 = vcmask 97280
        %v791 = vsel %vm789, %v773, 0
        %v794 = vsel %vm789, %v774, 0
        %vm796 = vcmask 1043456
        %v798 = vsel %vm796, %v247, 0
        %800 = vmatpush.msra.mxu0 0.0
        %801 = vmatpush.msra.mxu0 0.0
        %802 = vmatpush.msra.mxu0 0.0
        %803 = vmatpush.msra.mxu0 0.0
        %804 = vmatpush.msra.mxu0 0.0
        %805 = vmatpush.msra.mxu0 0.0
        %806 = vmatpush.msra.mxu0 0.0
        %807 = vmatpush.msra.mxu0 0.0
        %808 = vmatpush.msra.mxu0 0.0
        %809 = vmatpush.msra.mxu0 0.0
        %810 = vmatpush.msra.mxu0 0.0
        %811 = vmatpush.msra.mxu0 0.0
        %812 = vmatpush.msra.mxu0 0.0
        %813 = vmatpush.msra.mxu0 0.0
        %814 = vmatpush.msra.mxu0 %v798
        %815 = vmatpush.msra.mxu0 %v246
        %816 = vmatmul.f32.gmra.mxu0 %v791
        %v817 = vpop.f32.mrf.mxu0
        %v818 = vadd.f32 0.0, %v817
        %819 = vmatmul.f32.gmra.mxu0 %v794
        %v820 = vpop.f32.mrf.mxu0
        %v821 = vadd.f32 0.0, %v820
        %822 = vdwg.mxu0
        %823 = vst.msk [vmem:[%s232] sm:$0xff] %vm250, %v818
        %824 = vst.msk [vmem:[%s232 + $0x8] sm:$0xff] %vm250, %v821
        %v825 = vrot.slane %v715, 1
        %v826 = vsel %vm728, %v716, %v825
        %v827 = vrot.slane %v717, 7
        %v828 = vsel %vm731, %v827, %v826
        %v829 = vrot.slane %v718, 6
        %v830 = vsel %vm734, %v829, %v828
        %v831 = vrot.slane %v719, 5
        %v832 = vsel %vm737, %v831, %v830
        %v833 = vrot.slane %v720, 4
        %v834 = vsel %vm740, %v833, %v832
        %v836 = vrot.slane %v715, 5
        %v837 = vrot.slane %v716, 4
        %v838 = vsel %vm745, %v837, %v836
        %v839 = vrot.slane %v717, 3
        %v840 = vrot.slane %v718, 2
        %v841 = vsel %vm728, %v840, %v839
        %v842 = vrot.slane %v719, 1
        %v843 = vsel %vm731, %v842, %v841
        %v844 = vsel %vm734, %v720, %v843
        %v847 = vsel %vm755, %v834, %v838
        %848 = vxpose.xlu0.b32.start [1/16] %v847, 128
        %849 = vxpose.xlu0.b32.cont [2/16] %v844, 128
        %850 = vxpose.xlu0.b32.cont [3/16] 0.0, 128
        %851 = vxpose.xlu0.b32.cont [4/16] 0.0, 128
        %852 = vxpose.xlu0.b32.cont [5/16] 0.0, 128
        %853 = vxpose.xlu0.b32.cont [6/16] 0.0, 128
        %854 = vxpose.xlu0.b32.cont [7/16] 0.0, 128
        %855 = vxpose.xlu0.b32.cont [8/16] 0.0, 128
        %856 = vxpose.xlu0.b32.cont [9/16] 0.0, 128
        %857 = vxpose.xlu0.b32.cont [10/16] 0.0, 128
        %858 = vxpose.xlu0.b32.cont [11/16] 0.0, 128
        %859 = vxpose.xlu0.b32.cont [12/16] 0.0, 128
        %860 = vxpose.xlu0.b32.cont [13/16] 0.0, 128
        %861 = vxpose.xlu0.b32.cont [14/16] 0.0, 128
        %862 = vxpose.xlu0.b32.cont [15/16] 0.0, 128
        %863 = vxpose.xlu0.b32.end [16/16] 0.0, 128
        %v864 = vpop.trf.xlu0
        %v865 = vpop.trf.xlu0
        %v866 = vpop.trf.xlu0
        %v867 = vpop.trf.xlu0
        %v868 = vpop.trf.xlu0
        %v869 = vpop.trf.xlu0
        %v870 = vpop.trf.xlu0
        %v871 = vpop.trf.xlu0
        %v872 = vpop.trf.xlu0
        %v873 = vpop.trf.xlu0
        %v874 = vpop.trf.xlu0
        %v875 = vpop.trf.xlu0
        %v876 = vpop.trf.xlu0
        %v877 = vpop.trf.xlu0
        %v878 = vpop.trf.xlu0
        %v879 = vpop.trf.xlu0
        %v881 = vsel %vm789, %v864, 0
        %v884 = vsel %vm789, %v865, 0
        %886 = vmatpush.msra.mxu0 0.0
        %887 = vmatpush.msra.mxu0 0.0
        %888 = vmatpush.msra.mxu0 0.0
        %889 = vmatpush.msra.mxu0 0.0
        %890 = vmatpush.msra.mxu0 0.0
        %891 = vmatpush.msra.mxu0 0.0
        %892 = vmatpush.msra.mxu0 0.0
        %893 = vmatpush.msra.mxu0 0.0
        %894 = vmatpush.msra.mxu0 0.0
        %895 = vmatpush.msra.mxu0 0.0
        %896 = vmatpush.msra.mxu0 0.0
        %897 = vmatpush.msra.mxu0 0.0
        %898 = vmatpush.msra.mxu0 0.0
        %899 = vmatpush.msra.mxu0 0.0
        %900 = vmatpush.msra.mxu0 %v798
        %901 = vmatpush.msra.mxu0 %v246
        %902 = vmatmul.f32.gmra.mxu0 %v881
        %v903 = vpop.f32.mrf.mxu0
        %v904 = vadd.f32 0.0, %v903
        %905 = vmatmul.f32.gmra.mxu0 %v884
        %v906 = vpop.f32.mrf.mxu0
        %v907 = vadd.f32 0.0, %v906
        %908 = vdwg.mxu0
        %s909 = scalar_lea.vmem %s232, 16 [#allocation5]
        %910 = vst.msk [vmem:[%s909] sm:$0xff] %vm250, %v904
        %911 = vst.msk [vmem:[%s909 + $0x8] sm:$0xff] %vm250, %v907
        %s912 = sand.u32 %s132, 1
        %s913 = scalar_lea.sflag [#allocation4], %s912
        %s914 = sand.u32 %s132, 1
        %s915 = smul.addr %s914, 32
        %s916 = scalar_lea.vmem [#allocation5], %s915
        // Predicated region
        $region41: #{ffno_conv2d_forward.2} parent=35 // pred_check
          %p917 = pneg %p142
        $region42: #{ffno_conv2d_forward.2} parent=35 // pred_check_branch
          %919 = sbr.rel (%p917) target = $region44
        $region43: #{ffno_conv2d_forward.2} parent=35 // pred_region
          %s920 = smul.u32 2, %s24
          %922 = vsyncadd %s913, 0
          %s923 = smul.addr %s23, 8
          %s924 = sadd.s32 %s920, %s923
          %s925 = smul.addr %s924, 8
          %s926 = scalar_lea.hbm %s4, %s925
          %s927 = sshll.u32 %s916, 4
          %s928 = int_to_ptr.vmem [resolvable:$true] %s927
          %s929 = sshll.u32 %s926, 4
          %s930 = int_to_ptr.hbm [resolvable:$true] %s929
          %935 = dma.vmem_to_hbm [thread:$0]  %s928, 512, %s930, %s913, 128, 128, 8
        $region44: #{ffno_conv2d_forward.2} parent=35 // pred_fallthru
          _
      $region36: #{ffno_conv2d_forward.2} parent=5 // pred_fallthru
        _
      %p936 = scmp.le.s32.totalorder 2, %s14
      // Predicated region
      $region45: #{ffno_conv2d_forward.2} parent=5 // pred_check
        %p937 = pneg %p936
      $region46: #{ffno_conv2d_forward.2} parent=5 // pred_check_branch
        %939 = sbr.rel (%p937) target = $region48
      $region47: #{ffno_conv2d_forward.2} parent=5 // pred_region
        %s940 = ssub.s32 %s14, 2
        // Predicated region
        $region49: #{ffno_conv2d_forward.2} parent=47 // pred_check
          %p941 = pneg %p148
        $region50: #{ffno_conv2d_forward.2} parent=47 // pred_check_branch
          %943 = sbr.rel (%p941) target = $region52
        $region51: #{ffno_conv2d_forward.2} parent=47 // pred_region
          %s944 = sand.u32 %s133, 1
          %s945 = scalar_lea.sflag [#allocation4], %s944
          %s946 = sand.u32 %s133, 1
          %s947 = smul.addr %s946, 32
          %s948 = scalar_lea.vmem [#allocation5], %s947
          %950 = dma.done %s945, 512
        $region52: #{ffno_conv2d_forward.2} parent=47 // pred_fallthru
          _
      $region48: #{ffno_conv2d_forward.2} parent=5 // pred_fallthru
        _
    $region6: #{ffno_conv2d_forward.2} parent=1 // loop_footer
      %s18 = sadd.s32 1, %s14
    $region7: #{ffno_conv2d_forward.2} parent=1 // loop_footer_branch
      %13 = sbr.rel target = $region3
    $region8: #{ffno_conv2d_forward.2} parent=1 // loop_exit
      _
    %951 = vsyncpa [#allocation3], 1
    %s952 = scalar_lea.sflag [#allocation3], 1
    %953 = vsyncpa %s952, 1
    %954 = vsyncpa [#allocation4], 1
    %s955 = scalar_lea.sflag [#allocation4], 1
    %956 = vsyncpa %s955, 1

// kernel: ffno_conv2d_forward.3
$region0: #{ffno_conv2d_forward.3}
  #allocation0 [shape = 'u32[]', space=smem, size = 0x4, offset = 0x4, fixed_abs, tag = 'smem constant byte address 0x4 - core index']
  #allocation1 [shape = 'u32[72,128]{1,0:T(1,128)}', space=vmem, size = 0x9000, scoped, tag = 'internal scratch']
  %s0 = inlined_call_operand.vmem [shape: f32[2,2,16,16], index: 0, kind: input, shape index: {}]
  %s1 = inlined_call_operand.vmem [shape: f32[10,16], index: 1, kind: input, shape index: {}]
  %s2 = inlined_call_operand.vmem [shape: f32[10,4,2], index: 2, kind: input, shape index: {}]
  %s3 = inlined_call_operand.vmem [shape: f32[16,10], index: 3, kind: input, shape index: {}]
  %s4 = inlined_call_operand.vmem [shape: f32[2,2,16,16], index: 4, kind: output, shape index: {}]
  %s5 = sld [smem:[#allocation0]]
  $region49: #{ffno_conv2d_forward.3} parent=0
    _
  %s7 = ssub.s32 1, %s5
  %s8 = scalar_select 0, %s7, %s5
  loop: start=0, step=1, limit=4
  $region2: #{ffno_conv2d_forward.3} parent=0 // loop_pre_header
    _
  $region3: #{ffno_conv2d_forward.3} parent=0 // loop_header
    %s10 = sphi 0, %s14
    %p11 = scmp.ge.s32.totalorder %s10, 4
    %s17 = sphi 0, %s29
    %s18 = sphi 0, %s25
    %s19 = sphi 0, %s17
    %s20 = sphi 0, %s18
    %s21 = sphi 0, %s19
    %s22 = sphi 0, %s20
    %s34 = sphi 0, %s36
    %s37 = sphi 0, %s34
    %s38 = sphi 0, %s37
    %s54 = sphi 0, %s38
    %s58 = sphi 0, %s58
    %s60 = sphi 0, %s58
    %s61 = sphi 0, %s60
    %s75 = sphi 0, %s61
    %s79 = sphi 0, %s79
    %s81 = sphi 0, %s79
    %s82 = sphi 0, %s81
    %s96 = sphi 0, %s82
    %s100 = sphi 0, %s100
    %s102 = sphi 0, %s100
    %s103 = sphi 0, %s102
    %s117 = sphi 0, %s103
    %s125 = sphi 0, %s127
    %s128 = sphi 0, %s125
    %s129 = sphi 0, %s128
    %s145 = sphi 0, %s129
  $region4: #{ffno_conv2d_forward.3} parent=0 // loop_header_branch
    %13 = sbr.rel (%p11) target = $region8
  $region5: #{ffno_conv2d_forward.3} parent=0 // loop_body
    %s15 = ssub.s32 %s10, 1
    %s16 = ssub.s32 %s10, 2
    %s23 = sadd.s32 1, %s18
    %p24 = scmp.ge.s32.totalorder %s23, 1
    %s25 = scalar_select %p24, 0, %s23
    %s26 = sadd.s32 1, %s17
    %s27 = scalar_select %p24, %s26, %s17
    %p28 = scmp.ge.s32.totalorder %s27, 2
    %s29 = scalar_select %p28, 0, %s27
    %s30 = ssub.s32 %s17, %s29
    %s31 = ssub.s32 %s18, %s25
    %s32 = sor.u32 %s30, %s31
    %p33 = scmp.eq.s32.totalorder %s32, 0
    %s35 = sadd.s32 %s34, 1
    %s36 = scalar_select %p33, %s34, %s35
    %p39 = pneg %p33
    %p40 = scmp.eq.s32.totalorder %s10, 1
    %p41 = por %p39, %p40
    %p42 = scmp.ne.s32.totalorder %s34, %s37
    %p43 = scmp.eq.s32.totalorder %s10, 0
    %p44 = por %p42, %p43
    %p45 = scmp.ne.s32.totalorder %s34, %s37
    %p46 = scmp.eq.s32.totalorder %s15, 1
    %p47 = por %p45, %p46
    %p48 = scmp.ne.s32.totalorder %s37, %s38
    %p49 = scmp.eq.s32.totalorder %s15, 0
    %p50 = por %p48, %p49
    %p51 = scmp.ne.s32.totalorder %s37, %s38
    %p52 = scmp.eq.s32.totalorder %s16, 1
    %p53 = por %p51, %p52
    %p55 = scmp.ne.s32.totalorder %s38, %s54
    %p56 = scmp.eq.s32.totalorder %s16, 0
    %p57 = por %p55, %p56
    %s59 = sadd.s32 %s58, 1
    %p62 = scmp.eq.s32.totalorder %s10, 1
    %p63 = scmp.ne.s32.totalorder %s58, %s60
    %p64 = scmp.eq.s32.totalorder %s10, 0
    %p65 = por %p63, %p64
    %p66 = scmp.ne.s32.totalorder %s58, %s60
    %p67 = scmp.eq.s32.totalorder %s15, 1
    %p68 = por %p66, %p67
    %p69 = scmp.ne.s32.totalorder %s60, %s61
    %p70 = scmp.eq.s32.totalorder %s15, 0
    %p71 = por %p69, %p70
    %p72 = scmp.ne.s32.totalorder %s60, %s61
    %p73 = scmp.eq.s32.totalorder %s16, 1
    %p74 = por %p72, %p73
    %p76 = scmp.ne.s32.totalorder %s61, %s75
    %p77 = scmp.eq.s32.totalorder %s16, 0
    %p78 = por %p76, %p77
    %s80 = sadd.s32 %s79, 1
    %p83 = scmp.eq.s32.totalorder %s10, 1
    %p84 = scmp.ne.s32.totalorder %s79, %s81
    %p85 = scmp.eq.s32.totalorder %s10, 0
    %p86 = por %p84, %p85
    %p87 = scmp.ne.s32.totalorder %s79, %s81
    %p88 = scmp.eq.s32.totalorder %s15, 1
    %p89 = por %p87, %p88
    %p90 = scmp.ne.s32.totalorder %s81, %s82
    %p91 = scmp.eq.s32.totalorder %s15, 0
    %p92 = por %p90, %p91
    %p93 = scmp.ne.s32.totalorder %s81, %s82
    %p94 = scmp.eq.s32.totalorder %s16, 1
    %p95 = por %p93, %p94
    %p97 = scmp.ne.s32.totalorder %s82, %s96
    %p98 = scmp.eq.s32.totalorder %s16, 0
    %p99 = por %p97, %p98
    %s101 = sadd.s32 %s100, 1
    %p104 = scmp.eq.s32.totalorder %s10, 1
    %p105 = scmp.ne.s32.totalorder %s100, %s102
    %p106 = scmp.eq.s32.totalorder %s10, 0
    %p107 = por %p105, %p106
    %p108 = scmp.ne.s32.totalorder %s100, %s102
    %p109 = scmp.eq.s32.totalorder %s15, 1
    %p110 = por %p108, %p109
    %p111 = scmp.ne.s32.totalorder %s102, %s103
    %p112 = scmp.eq.s32.totalorder %s15, 0
    %p113 = por %p111, %p112
    %p114 = scmp.ne.s32.totalorder %s102, %s103
    %p115 = scmp.eq.s32.totalorder %s16, 1
    %p116 = por %p114, %p115
    %p118 = scmp.ne.s32.totalorder %s103, %s117
    %p119 = scmp.eq.s32.totalorder %s16, 0
    %p120 = por %p118, %p119
    %s121 = ssub.s32 %s17, %s29
    %s122 = ssub.s32 %s18, %s25
    %s123 = sor.u32 %s121, %s122
    %p124 = scmp.eq.s32.totalorder %s123, 0
    %s126 = sadd.s32 %s125, 1
    %s127 = scalar_select %p124, %s125, %s126
    %p130 = pneg %p124
    %p131 = scmp.eq.s32.totalorder %s10, 1
    %p132 = por %p130, %p131
    %p133 = scmp.ne.s32.totalorder %s125, %s128
    %p134 = scmp.eq.s32.totalorder %s10, 0
    %p135 = por %p133, %p134
    %p136 = scmp.ne.s32.totalorder %s125, %s128
    %p137 = scmp.eq.s32.totalorder %s15, 1
    %p138 = por %p136, %p137
    %p139 = scmp.ne.s32.totalorder %s128, %s129
    %p140 = scmp.eq.s32.totalorder %s15, 0
    %p141 = por %p139, %p140
    %p142 = scmp.ne.s32.totalorder %s128, %s129
    %p143 = scmp.eq.s32.totalorder %s16, 1
    %p144 = por %p142, %p143
    %p146 = scmp.ne.s32.totalorder %s129, %s145
    %p147 = scmp.eq.s32.totalorder %s16, 0
    %p148 = por %p146, %p147
    %p149 = scmp.le.s32.totalorder 1, %s10
    %p150 = scmp.lt.s32.totalorder %s10, 3
    %p151 = pnand %p149, %p150
    %p152 = pneg %p151
    // Predicated region
    $region9: #{ffno_conv2d_forward.3} parent=5 // pred_check
      _
    $region10: #{ffno_conv2d_forward.3} parent=5 // pred_check_branch
      %154 = sbr.rel (%p151) target = $region12
    $region11: #{ffno_conv2d_forward.3} parent=5 // pred_region
      %s155 = ssub.s32 %s10, 1
      // Predicated region
      $region13: #{ffno_conv2d_forward.3} parent=11 // pred_check
        %p156 = pneg %p71
      $region14: #{ffno_conv2d_forward.3} parent=11 // pred_check_branch
        %158 = sbr.rel (%p156) target = $region16
      $region15: #{ffno_conv2d_forward.3} parent=11 // pred_region
        _
      $region16: #{ffno_conv2d_forward.3} parent=11 // pred_fallthru
        _
      // Predicated region
      $region17: #{ffno_conv2d_forward.3} parent=11 // pred_check
        %p159 = pneg %p92
      $region18: #{ffno_conv2d_forward.3} parent=11 // pred_check_branch
        %161 = sbr.rel (%p159) target = $region20
      $region19: #{ffno_conv2d_forward.3} parent=11 // pred_region
        _
      $region20: #{ffno_conv2d_forward.3} parent=11 // pred_fallthru
        _
      // Predicated region
      $region21: #{ffno_conv2d_forward.3} parent=11 // pred_check
        %p162 = pneg %p113
      $region22: #{ffno_conv2d_forward.3} parent=11 // pred_check_branch
        %164 = sbr.rel (%p162) target = $region24
      $region23: #{ffno_conv2d_forward.3} parent=11 // pred_region
        _
      $region24: #{ffno_conv2d_forward.3} parent=11 // pred_fallthru
        _
    $region12: #{ffno_conv2d_forward.3} parent=5 // pred_fallthru
      _
    %p165 = scmp.lt.s32.totalorder %s10, 2
    // Predicated region
    $region25: #{ffno_conv2d_forward.3} parent=5 // pred_check
      %p166 = pneg %p165
    $region26: #{ffno_conv2d_forward.3} parent=5 // pred_check_branch
      %168 = sbr.rel (%p166) target = $region28
    $region27: #{ffno_conv2d_forward.3} parent=5 // pred_region
      // Predicated region
      $region29: #{ffno_conv2d_forward.3} parent=27 // pred_check
        %p169 = pneg %p44
      $region30: #{ffno_conv2d_forward.3} parent=27 // pred_check_branch
        %171 = sbr.rel (%p169) target = $region32
      $region31: #{ffno_conv2d_forward.3} parent=27 // pred_region
        %p172 = scmp.lt.s32.totalorder %s17, 1
        %s173 = scalar_select %p172, %s17, 1
        %p174 = scmp.lt.s32.totalorder %s18, 0
        %s175 = scalar_select %p174, %s18, 0
        %s176 = smul.addr %s173, 4
        %s177 = sadd.s32 %s175, %s176
        %s178 = smul.addr %s177, 8
        %s179 = scalar_lea.vmem %s0, %s178
      $region32: #{ffno_conv2d_forward.3} parent=27 // pred_fallthru
        _
    $region28: #{ffno_conv2d_forward.3} parent=5 // pred_fallthru
      _
    %p180 = scmp.le.s32.totalorder 1, %s10
    %p181 = scmp.lt.s32.totalorder %s10, 3
    %p182 = pnand %p180, %p181
    %p183 = pneg %p182
    // Predicated region
    $region33: #{ffno_conv2d_forward.3} parent=5 // pred_check
      _
    $region34: #{ffno_conv2d_forward.3} parent=5 // pred_check_branch
      %185 = sbr.rel (%p182) target = $region36
    $region35: #{ffno_conv2d_forward.3} parent=5 // pred_region
      %s186 = ssub.s32 %s10, 1
      %p187 = scmp.lt.s32.totalorder %s19, 1
      %s188 = scalar_select %p187, %s19, 1
      %p189 = scmp.lt.s32.totalorder %s20, 0
      %s190 = scalar_select %p189, %s20, 0
      %s191 = smul.addr %s188, 4
      %s192 = sadd.s32 %s190, %s191
      %s193 = smul.addr %s192, 8
      %s194 = scalar_lea.vmem %s0, %s193
      %p195 = pneg %p50
      %p196 = pneg %p47
      %p197 = pneg %p71
      %p198 = pneg %p68
      %p199 = pneg %p92
      %p200 = pneg %p89
      %p201 = pneg %p113
      %p202 = pneg %p110
      %p203 = pneg %p141
      %p204 = pneg %p138
      %p205 = scmp.lt.s32.totalorder %s19, 1
      %s206 = scalar_select %p205, %s19, 1
      %p207 = scmp.lt.s32.totalorder %s20, 0
      %s208 = scalar_select %p207, %s20, 0
      %s209 = smul.addr %s206, 4
      %s210 = sadd.s32 %s208, %s209
      %s211 = smul.addr %s210, 8
      %s212 = scalar_lea.vmem %s4, %s211
      %p213 = scmp.lt.s32.totalorder %s19, 1
      %s214 = scalar_select %p213, %s19, 1
      %p215 = scmp.lt.s32.totalorder %s20, 0
      %s216 = scalar_select %p215, %s20, 0
      %s217 = smul.addr %s214, 4
      %s218 = sadd.s32 %s216, %s217
      %s219 = smul.addr %s218, 8
      %s220 = scalar_lea.vmem %s0, %s219
      %p221 = scmp.lt.s32.totalorder %s19, 1
      %s222 = scalar_select %p221, %s19, 1
      %p223 = scmp.lt.s32.totalorder %s20, 0
      %s224 = scalar_select %p223, %s20, 0
      %s225 = smul.addr %s222, 4
      %s226 = sadd.s32 %s224, %s225
      %s227 = smul.addr %s226, 8
      %s228 = scalar_lea.vmem %s4, %s227
      %v229 = vld [vmem:[%s1] sm:$0xff]
      %v230 = vld [vmem:[%s1 + $0x8] sm:$0x3]
      %v231 = vld [vmem:[%s3] sm:$0xff]
      %v232 = vld [vmem:[%s3 + $0x8] sm:$0xff]
      %v233 = vld [vmem:[%s220] sm:$0xff]
      %v234 = vld [vmem:[%s220 + $0x8] sm:$0xff]
      %vm235 = vcmask 130048
      %v237 = vsel %vm235, %v229, 0
      %v240 = vsel %vm235, %v230, 0
      %242 = vmatpush.msra.mxu0 0.0
      %243 = vmatpush.msra.mxu0 0.0
      %244 = vmatpush.msra.mxu0 0.0
      %245 = vmatpush.msra.mxu0 0.0
      %246 = vmatpush.msra.mxu0 0.0
      %247 = vmatpush.msra.mxu0 0.0
      %248 = vmatpush.msra.mxu0 0.0
      %249 = vmatpush.msra.mxu0 0.0
      %250 = vmatpush.msra.mxu0 0.0
      %251 = vmatpush.msra.mxu0 0.0
      %252 = vmatpush.msra.mxu0 0.0
      %253 = vmatpush.msra.mxu0 0.0
      %254 = vmatpush.msra.mxu0 0.0
      %255 = vmatpush.msra.mxu0 0.0
      %256 = vmatpush.msra.mxu0 %v234
      %257 = vmatpush.msra.mxu0 %v233
      %258 = vmatmul.f32.gmra.mxu0 %v237
      %v259 = vpop.f32.mrf.mxu0
      %v260 = vadd.f32 0.0, %v259
      %261 = vmatmul.f32.gmra.mxu0 %v240
      %v262 = vpop.f32.mrf.mxu0
      %v263 = vadd.f32 0.0, %v262
      %264 = vdwg.mxu0
      %s265 = scalar_lea.vmem %s220, 16
      %v266 = vld [vmem:[%s265] sm:$0xff]
      %v267 = vld [vmem:[%s265 + $0x8] sm:$0xff]
      %268 = vmatpush.msra.mxu0 0.0
      %269 = vmatpush.msra.mxu0 0.0
      %270 = vmatpush.msra.mxu0 0.0
      %271 = vmatpush.msra.mxu0 0.0
      %272 = vmatpush.msra.mxu0 0.0
      %273 = vmatpush.msra.mxu0 0.0
      %274 = vmatpush.msra.mxu0 0.0
      %275 = vmatpush.msra.mxu0 0.0
      %276 = vmatpush.msra.mxu0 0.0
      %277 = vmatpush.msra.mxu0 0.0
      %278 = vmatpush.msra.mxu0 0.0
      %279 = vmatpush.msra.mxu0 0.0
      %280 = vmatpush.msra.mxu0 0.0
      %281 = vmatpush.msra.mxu0 0.0
      %282 = vmatpush.msra.mxu0 %v267
      %283 = vmatpush.msra.mxu0 %v266
      %284 = vmatmul.f32.gmra.mxu0 %v237
      %v285 = vpop.f32.mrf.mxu0
      %v286 = vadd.f32 0.0, %v285
      %287 = vmatmul.f32.gmra.mxu0 %v240
      %v288 = vpop.f32.mrf.mxu0
      %v289 = vadd.f32 0.0, %v288
      %290 = vdwg.mxu0
      %v293 = vrot.slane %v260, 1
      %v294 = vrot.slane %v260, 2
      %v295 = vrot.slane %v260, 3
      %v296 = vrot.slane %v260, 4
      %v297 = vrot.slane %v260, 5
      %v298 = vrot.slane %v260, 6
      %v299 = vrot.slane %v260, 7
      %v300 = vrot.slane %v263, 1
      %v311 = vrot.slane %v286, 1
      %v312 = vrot.slane %v286, 2
      %v313 = vrot.slane %v286, 3
      %v314 = vrot.slane %v286, 4
      %v315 = vrot.slane %v286, 5
      %v316 = vrot.slane %v286, 6
      %v317 = vrot.slane %v286, 7
      %v318 = vrot.slane %v289, 1
      %v319 = vperm.slane %v286, 0
      %v320 = vperm.slane %v311, 0
      %v321 = vperm.slane %v312, 0
      %v322 = vperm.slane %v313, 0
      %v323 = vperm.slane %v314, 0
      %v324 = vperm.slane %v315, 0
      %v325 = vperm.slane %v316, 0
      %v326 = vperm.slane %v317, 0
      %v327 = vperm.slane %v289, 0
      %v328 = vperm.slane %v318, 0
      %vm339 = vcmask 1040384
      %v340 = vsel %vm339, %v260, %v319
      %v341 = vsel %vm339, %v293, %v320
      %v342 = vsel %vm339, %v294, %v321
      %v343 = vsel %vm339, %v295, %v322
      %v344 = vsel %vm339, %v296, %v323
      %v345 = vsel %vm339, %v297, %v324
      %v346 = vsel %vm339, %v298, %v325
      %v347 = vsel %vm339, %v299, %v326
      %v348 = vsel %vm339, %v263, %v327
      %v349 = vsel %vm339, %v300, %v328
      %v350 = vld [vmem:[%s2] sm:$0xf]
      %v351 = vld [vmem:[%s2 + $0x4] sm:$0xf]
      %v352 = vld [vmem:[%s2 + $0x8] sm:$0xf]
      %v353 = vld [vmem:[%s2 + $0xc] sm:$0xf]
      %v354 = vld [vmem:[%s2 + $0x10] sm:$0xf]
      %v355 = vld [vmem:[%s2 + $0x14] sm:$0xf]
      %v356 = vld [vmem:[%s2 + $0x18] sm:$0xf]
      %v357 = vld [vmem:[%s2 + $0x1c] sm:$0xf]
      %v358 = vld [vmem:[%s2 + $0x20] sm:$0xf]
      %v359 = vld [vmem:[%s2 + $0x24] sm:$0xf]
      %vm360 = vcmask 15360
      %v362 = vsel %vm360, %v350, 0
      %vm364 = vcmask 1041408
      %v366 = vsel %vm364, %v340, 0
      %368 = vmatpush.msra.mxu0 0.0
      %369 = vmatpush.msra.mxu0 0.0
      %370 = vmatpush.msra.mxu0 0.0
      %371 = vmatpush.msra.mxu0 0.0
      %372 = vmatpush.msra.mxu0 0.0
      %373 = vmatpush.msra.mxu0 0.0
      %374 = vmatpush.msra.mxu0 0.0
      %375 = vmatpush.msra.mxu0 0.0
      %376 = vmatpush.msra.mxu0 0.0
      %377 = vmatpush.msra.mxu0 0.0
      %378 = vmatpush.msra.mxu0 0.0
      %379 = vmatpush.msra.mxu0 0.0
      %380 = vmatpush.msra.mxu0 0.0
      %381 = vmatpush.msra.mxu0 0.0
      %382 = vmatpush.msra.mxu0 0.0
      %383 = vmatpush.msra.mxu0 %v366
      %384 = vmatmul.f32.gmra.mxu0 %v362
      %v385 = vpop.f32.mrf.mxu0
      %v386 = vadd.f32 0.0, %v385
      %387 = vdwg.mxu0
      %v389 = vsel %vm360, %v351, 0
      %v392 = vsel %vm364, %v341, 0
      %394 = vmatpush.msra.mxu0 0.0
      %395 = vmatpush.msra.mxu0 0.0
      %396 = vmatpush.msra.mxu0 0.0
      %397 = vmatpush.msra.mxu0 0.0
      %398 = vmatpush.msra.mxu0 0.0
      %399 = vmatpush.msra.mxu0 0.0
      %400 = vmatpush.msra.mxu0 0.0
      %401 = vmatpush.msra.mxu0 0.0
      %402 = vmatpush.msra.mxu0 0.0
      %403 = vmatpush.msra.mxu0 0.0
      %404 = vmatpush.msra.mxu0 0.0
      %405 = vmatpush.msra.mxu0 0.0
      %406 = vmatpush.msra.mxu0 0.0
      %407 = vmatpush.msra.mxu0 0.0
      %408 = vmatpush.msra.mxu0 0.0
      %409 = vmatpush.msra.mxu0 %v392
      %410 = vmatmul.f32.gmra.mxu0 %v389
      %v411 = vpop.f32.mrf.mxu0
      %v412 = vadd.f32 0.0, %v411
      %413 = vdwg.mxu0
      %v415 = vsel %vm360, %v352, 0
      %v418 = vsel %vm364, %v342, 0
      %420 = vmatpush.msra.mxu0 0.0
      %421 = vmatpush.msra.mxu0 0.0
      %422 = vmatpush.msra.mxu0 0.0
      %423 = vmatpush.msra.mxu0 0.0
      %424 = vmatpush.msra.mxu0 0.0
      %425 = vmatpush.msra.mxu0 0.0
      %426 = vmatpush.msra.mxu0 0.0
      %427 = vmatpush.msra.mxu0 0.0
      %428 = vmatpush.msra.mxu0 0.0
      %429 = vmatpush.msra.mxu0 0.0
      %430 = vmatpush.msra.mxu0 0.0
      %431 = vmatpush.msra.mxu0 0.0
      %432 = vmatpush.msra.mxu0 0.0
      %433 = vmatpush.msra.mxu0 0.0
      %434 = vmatpush.msra.mxu0 0.0
      %435 = vmatpush.msra.mxu0 %v418
      %436 = vmatmul.f32.gmra.mxu0 %v415
      %v437 = vpop.f32.mrf.mxu0
      %v438 = vadd.f32 0.0, %v437
      %439 = vdwg.mxu0
      %v441 = vsel %vm360, %v353, 0
      %v444 = vsel %vm364, %v343, 0
      %446 = vmatpush.msra.mxu0 0.0
      %447 = vmatpush.msra.mxu0 0.0
      %448 = vmatpush.msra.mxu0 0.0
      %449 = vmatpush.msra.mxu0 0.0
      %450 = vmatpush.msra.mxu0 0.0
      %451 = vmatpush.msra.mxu0 0.0
      %452 = vmatpush.msra.mxu0 0.0
      %453 = vmatpush.msra.mxu0 0.0
      %454 = vmatpush.msra.mxu0 0.0
      %455 = vmatpush.msra.mxu0 0.0
      %456 = vmatpush.msra.mxu0 0.0
      %457 = vmatpush.msra.mxu0 0.0
      %458 = vmatpush.msra.mxu0 0.0
      %459 = vmatpush.msra.mxu0 0.0
      %460 = vmatpush.msra.mxu0 0.0
      %461 = vmatpush.msra.mxu0 %v444
      %462 = vmatmul.f32.gmra.mxu0 %v441
      %v463 = vpop.f32.mrf.mxu0
      %v464 = vadd.f32 0.0, %v463
      %465 = vdwg.mxu0
      %v467 = vsel %vm360, %v354, 0
      %v470 = vsel %vm364, %v344, 0
      %472 = vmatpush.msra.mxu0 0.0
      %473 = vmatpush.msra.mxu0 0.0
      %474 = vmatpush.msra.mxu0 0.0
      %475 = vmatpush.msra.mxu0 0.0
      %476 = vmatpush.msra.mxu0 0.0
      %477 = vmatpush.msra.mxu0 0.0
      %478 = vmatpush.msra.mxu0 0.0
      %479 = vmatpush.msra.mxu0 0.0
      %480 = vmatpush.msra.mxu0 0.0
      %481 = vmatpush.msra.mxu0 0.0
      %482 = vmatpush.msra.mxu0 0.0
      %483 = vmatpush.msra.mxu0 0.0
      %484 = vmatpush.msra.mxu0 0.0
      %485 = vmatpush.msra.mxu0 0.0
      %486 = vmatpush.msra.mxu0 0.0
      %487 = vmatpush.msra.mxu0 %v470
      %488 = vmatmul.f32.gmra.mxu0 %v467
      %v489 = vpop.f32.mrf.mxu0
      %v490 = vadd.f32 0.0, %v489
      %491 = vdwg.mxu0
      %v493 = vsel %vm360, %v355, 0
      %v496 = vsel %vm364, %v345, 0
      %498 = vmatpush.msra.mxu0 0.0
      %499 = vmatpush.msra.mxu0 0.0
      %500 = vmatpush.msra.mxu0 0.0
      %501 = vmatpush.msra.mxu0 0.0
      %502 = vmatpush.msra.mxu0 0.0
      %503 = vmatpush.msra.mxu0 0.0
      %504 = vmatpush.msra.mxu0 0.0
      %505 = vmatpush.msra.mxu0 0.0
      %506 = vmatpush.msra.mxu0 0.0
      %507 = vmatpush.msra.mxu0 0.0
      %508 = vmatpush.msra.mxu0 0.0
      %509 = vmatpush.msra.mxu0 0.0
      %510 = vmatpush.msra.mxu0 0.0
      %511 = vmatpush.msra.mxu0 0.0
      %512 = vmatpush.msra.mxu0 0.0
      %513 = vmatpush.msra.mxu0 %v496
      %514 = vmatmul.f32.gmra.mxu0 %v493
      %v515 = vpop.f32.mrf.mxu0
      %v516 = vadd.f32 0.0, %v515
      %517 = vdwg.mxu0
      %v519 = vsel %vm360, %v356, 0
      %v522 = vsel %vm364, %v346, 0
      %524 = vmatpush.msra.mxu0 0.0
      %525 = vmatpush.msra.mxu0 0.0
      %526 = vmatpush.msra.mxu0 0.0
      %527 = vmatpush.msra.mxu0 0.0
      %528 = vmatpush.msra.mxu0 0.0
      %529 = vmatpush.msra.mxu0 0.0
      %530 = vmatpush.msra.mxu0 0.0
      %531 = vmatpush.msra.mxu0 0.0
      %532 = vmatpush.msra.mxu0 0.0
      %533 = vmatpush.msra.mxu0 0.0
      %534 = vmatpush.msra.mxu0 0.0
      %535 = vmatpush.msra.mxu0 0.0
      %536 = vmatpush.msra.mxu0 0.0
      %537 = vmatpush.msra.mxu0 0.0
      %538 = vmatpush.msra.mxu0 0.0
      %539 = vmatpush.msra.mxu0 %v522
      %540 = vmatmul.f32.gmra.mxu0 %v519
      %v541 = vpop.f32.mrf.mxu0
      %v542 = vadd.f32 0.0, %v541
      %543 = vdwg.mxu0
      %v545 = vsel %vm360, %v357, 0
      %v548 = vsel %vm364, %v347, 0
      %550 = vmatpush.msra.mxu0 0.0
      %551 = vmatpush.msra.mxu0 0.0
      %552 = vmatpush.msra.mxu0 0.0
      %553 = vmatpush.msra.mxu0 0.0
      %554 = vmatpush.msra.mxu0 0.0
      %555 = vmatpush.msra.mxu0 0.0
      %556 = vmatpush.msra.mxu0 0.0
      %557 = vmatpush.msra.mxu0 0.0
      %558 = vmatpush.msra.mxu0 0.0
      %559 = vmatpush.msra.mxu0 0.0
      %560 = vmatpush.msra.mxu0 0.0
      %561 = vmatpush.msra.mxu0 0.0
      %562 = vmatpush.msra.mxu0 0.0
      %563 = vmatpush.msra.mxu0 0.0
      %564 = vmatpush.msra.mxu0 0.0
      %565 = vmatpush.msra.mxu0 %v548
      %566 = vmatmul.f32.gmra.mxu0 %v545
      %v567 = vpop.f32.mrf.mxu0
      %v568 = vadd.f32 0.0, %v567
      %569 = vdwg.mxu0
      %v571 = vsel %vm360, %v358, 0
      %v574 = vsel %vm364, %v348, 0
      %576 = vmatpush.msra.mxu0 0.0
      %577 = vmatpush.msra.mxu0 0.0
      %578 = vmatpush.msra.mxu0 0.0
      %579 = vmatpush.msra.mxu0 0.0
      %580 = vmatpush.msra.mxu0 0.0
      %581 = vmatpush.msra.mxu0 0.0
      %582 = vmatpush.msra.mxu0 0.0
      %583 = vmatpush.msra.mxu0 0.0
      %584 = vmatpush.msra.mxu0 0.0
      %585 = vmatpush.msra.mxu0 0.0
      %586 = vmatpush.msra.mxu0 0.0
      %587 = vmatpush.msra.mxu0 0.0
      %588 = vmatpush.msra.mxu0 0.0
      %589 = vmatpush.msra.mxu0 0.0
      %590 = vmatpush.msra.mxu0 0.0
      %591 = vmatpush.msra.mxu0 %v574
      %592 = vmatmul.f32.gmra.mxu0 %v571
      %v593 = vpop.f32.mrf.mxu0
      %v594 = vadd.f32 0.0, %v593
      %595 = vdwg.mxu0
      %v597 = vsel %vm360, %v359, 0
      %v600 = vsel %vm364, %v349, 0
      %602 = vmatpush.msra.mxu0 0.0
      %603 = vmatpush.msra.mxu0 0.0
      %604 = vmatpush.msra.mxu0 0.0
      %605 = vmatpush.msra.mxu0 0.0
      %606 = vmatpush.msra.mxu0 0.0
      %607 = vmatpush.msra.mxu0 0.0
      %608 = vmatpush.msra.mxu0 0.0
      %609 = vmatpush.msra.mxu0 0.0
      %610 = vmatpush.msra.mxu0 0.0
      %611 = vmatpush.msra.mxu0 0.0
      %612 = vmatpush.msra.mxu0 0.0
      %613 = vmatpush.msra.mxu0 0.0
      %614 = vmatpush.msra.mxu0 0.0
      %615 = vmatpush.msra.mxu0 0.0
      %616 = vmatpush.msra.mxu0 0.0
      %617 = vmatpush.msra.mxu0 %v600
      %618 = vmatmul.f32.gmra.mxu0 %v597
      %v619 = vpop.f32.mrf.mxu0
      %v620 = vadd.f32 0.0, %v619
      %621 = vdwg.mxu0
      %v622 = vadd.f32 %v386, %v516
      %v623 = vadd.f32 %v412, %v542
      %v624 = vadd.f32 %v438, %v568
      %v625 = vadd.f32 %v464, %v594
      %v626 = vadd.f32 %v490, %v620
      %v632 = vrot.slane %v623, 7
      %vm633 = vcmask 1041409
      %v634 = vsel %vm633, %v632, %v622
      %v635 = vrot.slane %v624, 6
      %vm636 = vcmask 1042434
      %v637 = vsel %vm636, %v635, %v634
      %v638 = vrot.slane %v625, 5
      %vm639 = vcmask 1043459
      %v640 = vsel %vm639, %v638, %v637
      %v641 = vrot.slane %v626, 4
      %vm642 = vcmask 1044484
      %v643 = vsel %vm642, %v641, %v640
      %v645 = vrot.slane %v622, 5
      %v646 = vrot.slane %v623, 4
      %vm647 = vcmask 1046534
      %v648 = vsel %vm647, %v646, %v645
      %v649 = vrot.slane %v624, 3
      %vm650 = vcmask 1047559
      %v651 = vsel %vm650, %v649, %v648
      %v652 = vrot.slane %v625, 2
      %v653 = vrot.slane %v626, 1
      %v654 = vsel %vm633, %v653, %v652
      %vm656 = vcmask 1044480
      %v657 = vsel %vm656, %v643, %v651
      %vm658 = vcmask 80896
      %v660 = vsel %vm658, %v231, 0
      %v663 = vsel %vm658, %v232, 0
      %v665 = vsel %vm364, %v654, 0
      %667 = vmatpush.msra.mxu0 0.0
      %668 = vmatpush.msra.mxu0 0.0
      %669 = vmatpush.msra.mxu0 0.0
      %670 = vmatpush.msra.mxu0 0.0
      %671 = vmatpush.msra.mxu0 0.0
      %672 = vmatpush.msra.mxu0 0.0
      %673 = vmatpush.msra.mxu0 0.0
      %674 = vmatpush.msra.mxu0 0.0
      %675 = vmatpush.msra.mxu0 0.0
      %676 = vmatpush.msra.mxu0 0.0
      %677 = vmatpush.msra.mxu0 0.0
      %678 = vmatpush.msra.mxu0 0.0
      %679 = vmatpush.msra.mxu0 0.0
      %680 = vmatpush.msra.mxu0 0.0
      %681 = vmatpush.msra.mxu0 %v665
      %682 = vmatpush.msra.mxu0 %v657
      %683 = vmatmul.f32.gmra.mxu0 %v660
      %v684 = vpop.f32.mrf.mxu0
      %v685 = vadd.f32 0.0, %v684
      %686 = vmatmul.f32.gmra.mxu0 %v663
      %v687 = vpop.f32.mrf.mxu0
      %v688 = vadd.f32 0.0, %v687
      %689 = vdwg.mxu0
      %690 = vst.msk [vmem:[%s228] sm:$0xff] %vm235, %v685
      %691 = vst.msk [vmem:[%s228 + $0x8] sm:$0xff] %vm235, %v688
      %v692 = vrot.slane %v622, 1
      %v693 = vsel %vm633, %v623, %v692
      %v694 = vrot.slane %v624, 7
      %v695 = vsel %vm636, %v694, %v693
      %v696 = vrot.slane %v625, 6
      %v697 = vsel %vm639, %v696, %v695
      %v698 = vrot.slane %v626, 5
      %v699 = vsel %vm642, %v698, %v697
      %v701 = vrot.slane %v622, 6
      %v702 = vrot.slane %v623, 5
      %v703 = vsel %vm647, %v702, %v701
      %v704 = vrot.slane %v624, 4
      %v705 = vsel %vm650, %v704, %v703
      %v706 = vrot.slane %v625, 3
      %v707 = vrot.slane %v626, 2
      %v708 = vsel %vm633, %v707, %v706
      %v710 = vsel %vm656, %v699, %v705
      %v711 = vsel %vm364, %v708, 0
      %713 = vmatpush.msra.mxu0 0.0
      %714 = vmatpush.msra.mxu0 0.0
      %715 = vmatpush.msra.mxu0 0.0
      %716 = vmatpush.msra.mxu0 0.0
      %717 = vmatpush.msra.mxu0 0.0
      %718 = vmatpush.msra.mxu0 0.0
      %719 = vmatpush.msra.mxu0 0.0
      %720 = vmatpush.msra.mxu0 0.0
      %721 = vmatpush.msra.mxu0 0.0
      %722 = vmatpush.msra.mxu0 0.0
      %723 = vmatpush.msra.mxu0 0.0
      %724 = vmatpush.msra.mxu0 0.0
      %725 = vmatpush.msra.mxu0 0.0
      %726 = vmatpush.msra.mxu0 0.0
      %727 = vmatpush.msra.mxu0 %v711
      %728 = vmatpush.msra.mxu0 %v710
      %729 = vmatmul.f32.gmra.mxu0 %v660
      %v730 = vpop.f32.mrf.mxu0
      %v731 = vadd.f32 0.0, %v730
      %732 = vmatmul.f32.gmra.mxu0 %v663
      %v733 = vpop.f32.mrf.mxu0
      %v734 = vadd.f32 0.0, %v733
      %735 = vdwg.mxu0
      %s736 = scalar_lea.vmem %s228, 16
      %737 = vst.msk [vmem:[%s736] sm:$0xff] %vm235, %v731
      %738 = vst.msk [vmem:[%s736 + $0x8] sm:$0xff] %vm235, %v734
      %p739 = scmp.lt.s32.totalorder %s19, 1
      %s740 = scalar_select %p739, %s19, 1
      %p741 = scmp.lt.s32.totalorder %s20, 0
      %s742 = scalar_select %p741, %s20, 0
      %s743 = smul.addr %s740, 4
      %s744 = sadd.s32 %s742, %s743
      %s745 = smul.addr %s744, 8
      %s746 = scalar_lea.vmem %s4, %s745
      // Predicated region
      $region37: #{ffno_conv2d_forward.3} parent=35 // pred_check
        %p747 = pneg %p138
      $region38: #{ffno_conv2d_forward.3} parent=35 // pred_check_branch
        %749 = sbr.rel (%p747) target = $region40
      $region39: #{ffno_conv2d_forward.3} parent=35 // pred_region
        _
      $region40: #{ffno_conv2d_forward.3} parent=35 // pred_fallthru
        _
    $region36: #{ffno_conv2d_forward.3} parent=5 // pred_fallthru
      _
    %p750 = scmp.le.s32.totalorder 2, %s10
    // Predicated region
    $region41: #{ffno_conv2d_forward.3} parent=5 // pred_check
      %p751 = pneg %p750
    $region42: #{ffno_conv2d_forward.3} parent=5 // pred_check_branch
      %753 = sbr.rel (%p751) target = $region44
    $region43: #{ffno_conv2d_forward.3} parent=5 // pred_region
      %s754 = ssub.s32 %s10, 2
      // Predicated region
      $region45: #{ffno_conv2d_forward.3} parent=43 // pred_check
        %p755 = pneg %p144
      $region46: #{ffno_conv2d_forward.3} parent=43 // pred_check_branch
        %757 = sbr.rel (%p755) target = $region48
      $region47: #{ffno_conv2d_forward.3} parent=43 // pred_region
        %p758 = scmp.lt.s32.totalorder %s21, 1
        %s759 = scalar_select %p758, %s21, 1
        %p760 = scmp.lt.s32.totalorder %s22, 0
        %s761 = scalar_select %p760, %s22, 0
        %s762 = smul.addr %s759, 4
        %s763 = sadd.s32 %s761, %s762
        %s764 = smul.addr %s763, 8
        %s765 = scalar_lea.vmem %s4, %s764
      $region48: #{ffno_conv2d_forward.3} parent=43 // pred_fallthru
        _
    $region44: #{ffno_conv2d_forward.3} parent=5 // pred_fallthru
      _
  $region6: #{ffno_conv2d_forward.3} parent=0 // loop_footer
    %s14 = sadd.s32 1, %s10
  $region7: #{ffno_conv2d_forward.3} parent=0 // loop_footer_branch
    %9 = sbr.rel target = $region3
  $region8: #{ffno_conv2d_forward.3} parent=0 // loop_exit
    _

// kernel: ffno_conv2d_forward.2
$region0: #{ffno_conv2d_forward.2}
  #allocation0 [shape = 'u32[]', space=smem, size = 0x4, offset = 0x4, fixed_abs, tag = 'smem constant byte address 0x4 - core index']
  #allocation1 [shape = 'u32[72,128]{1,0:T(1,128)}', space=vmem, size = 0x9000, scoped, tag = 'internal scratch']
  %s0 = inlined_call_operand.vmem [shape: f32[2,2,16,16], index: 0, kind: input, shape index: {}]
  %s1 = inlined_call_operand.vmem [shape: f32[12,16], index: 1, kind: input, shape index: {}]
  %s2 = inlined_call_operand.vmem [shape: f32[12,4,2], index: 2, kind: input, shape index: {}]
  %s3 = inlined_call_operand.vmem [shape: f32[12,16], index: 3, kind: input, shape index: {}]
  %s4 = inlined_call_operand.vmem [shape: f32[2,2,16,16], index: 4, kind: output, shape index: {}]
  %s5 = sld [smem:[#allocation0]]
  $region49: #{ffno_conv2d_forward.2} parent=0
    _
  %s7 = ssub.s32 1, %s5
  %s8 = scalar_select 0, %s7, %s5
  loop: start=0, step=1, limit=4
  $region2: #{ffno_conv2d_forward.2} parent=0 // loop_pre_header
    _
  $region3: #{ffno_conv2d_forward.2} parent=0 // loop_header
    %s10 = sphi 0, %s14
    %p11 = scmp.ge.s32.totalorder %s10, 4
    %s17 = sphi 0, %s29
    %s18 = sphi 0, %s25
    %s19 = sphi 0, %s17
    %s20 = sphi 0, %s18
    %s21 = sphi 0, %s19
    %s22 = sphi 0, %s20
    %s34 = sphi 0, %s36
    %s37 = sphi 0, %s34
    %s38 = sphi 0, %s37
    %s54 = sphi 0, %s38
    %s58 = sphi 0, %s58
    %s60 = sphi 0, %s58
    %s61 = sphi 0, %s60
    %s75 = sphi 0, %s61
    %s79 = sphi 0, %s79
    %s81 = sphi 0, %s79
    %s82 = sphi 0, %s81
    %s96 = sphi 0, %s82
    %s100 = sphi 0, %s100
    %s102 = sphi 0, %s100
    %s103 = sphi 0, %s102
    %s117 = sphi 0, %s103
    %s125 = sphi 0, %s127
    %s128 = sphi 0, %s125
    %s129 = sphi 0, %s128
    %s145 = sphi 0, %s129
  $region4: #{ffno_conv2d_forward.2} parent=0 // loop_header_branch
    %13 = sbr.rel (%p11) target = $region8
  $region5: #{ffno_conv2d_forward.2} parent=0 // loop_body
    %s15 = ssub.s32 %s10, 1
    %s16 = ssub.s32 %s10, 2
    %s23 = sadd.s32 1, %s18
    %p24 = scmp.ge.s32.totalorder %s23, 1
    %s25 = scalar_select %p24, 0, %s23
    %s26 = sadd.s32 1, %s17
    %s27 = scalar_select %p24, %s26, %s17
    %p28 = scmp.ge.s32.totalorder %s27, 2
    %s29 = scalar_select %p28, 0, %s27
    %s30 = ssub.s32 %s17, %s29
    %s31 = ssub.s32 %s18, %s25
    %s32 = sor.u32 %s30, %s31
    %p33 = scmp.eq.s32.totalorder %s32, 0
    %s35 = sadd.s32 %s34, 1
    %s36 = scalar_select %p33, %s34, %s35
    %p39 = pneg %p33
    %p40 = scmp.eq.s32.totalorder %s10, 1
    %p41 = por %p39, %p40
    %p42 = scmp.ne.s32.totalorder %s34, %s37
    %p43 = scmp.eq.s32.totalorder %s10, 0
    %p44 = por %p42, %p43
    %p45 = scmp.ne.s32.totalorder %s34, %s37
    %p46 = scmp.eq.s32.totalorder %s15, 1
    %p47 = por %p45, %p46
    %p48 = scmp.ne.s32.totalorder %s37, %s38
    %p49 = scmp.eq.s32.totalorder %s15, 0
    %p50 = por %p48, %p49
    %p51 = scmp.ne.s32.totalorder %s37, %s38
    %p52 = scmp.eq.s32.totalorder %s16, 1
    %p53 = por %p51, %p52
    %p55 = scmp.ne.s32.totalorder %s38, %s54
    %p56 = scmp.eq.s32.totalorder %s16, 0
    %p57 = por %p55, %p56
    %s59 = sadd.s32 %s58, 1
    %p62 = scmp.eq.s32.totalorder %s10, 1
    %p63 = scmp.ne.s32.totalorder %s58, %s60
    %p64 = scmp.eq.s32.totalorder %s10, 0
    %p65 = por %p63, %p64
    %p66 = scmp.ne.s32.totalorder %s58, %s60
    %p67 = scmp.eq.s32.totalorder %s15, 1
    %p68 = por %p66, %p67
    %p69 = scmp.ne.s32.totalorder %s60, %s61
    %p70 = scmp.eq.s32.totalorder %s15, 0
    %p71 = por %p69, %p70
    %p72 = scmp.ne.s32.totalorder %s60, %s61
    %p73 = scmp.eq.s32.totalorder %s16, 1
    %p74 = por %p72, %p73
    %p76 = scmp.ne.s32.totalorder %s61, %s75
    %p77 = scmp.eq.s32.totalorder %s16, 0
    %p78 = por %p76, %p77
    %s80 = sadd.s32 %s79, 1
    %p83 = scmp.eq.s32.totalorder %s10, 1
    %p84 = scmp.ne.s32.totalorder %s79, %s81
    %p85 = scmp.eq.s32.totalorder %s10, 0
    %p86 = por %p84, %p85
    %p87 = scmp.ne.s32.totalorder %s79, %s81
    %p88 = scmp.eq.s32.totalorder %s15, 1
    %p89 = por %p87, %p88
    %p90 = scmp.ne.s32.totalorder %s81, %s82
    %p91 = scmp.eq.s32.totalorder %s15, 0
    %p92 = por %p90, %p91
    %p93 = scmp.ne.s32.totalorder %s81, %s82
    %p94 = scmp.eq.s32.totalorder %s16, 1
    %p95 = por %p93, %p94
    %p97 = scmp.ne.s32.totalorder %s82, %s96
    %p98 = scmp.eq.s32.totalorder %s16, 0
    %p99 = por %p97, %p98
    %s101 = sadd.s32 %s100, 1
    %p104 = scmp.eq.s32.totalorder %s10, 1
    %p105 = scmp.ne.s32.totalorder %s100, %s102
    %p106 = scmp.eq.s32.totalorder %s10, 0
    %p107 = por %p105, %p106
    %p108 = scmp.ne.s32.totalorder %s100, %s102
    %p109 = scmp.eq.s32.totalorder %s15, 1
    %p110 = por %p108, %p109
    %p111 = scmp.ne.s32.totalorder %s102, %s103
    %p112 = scmp.eq.s32.totalorder %s15, 0
    %p113 = por %p111, %p112
    %p114 = scmp.ne.s32.totalorder %s102, %s103
    %p115 = scmp.eq.s32.totalorder %s16, 1
    %p116 = por %p114, %p115
    %p118 = scmp.ne.s32.totalorder %s103, %s117
    %p119 = scmp.eq.s32.totalorder %s16, 0
    %p120 = por %p118, %p119
    %s121 = ssub.s32 %s17, %s29
    %s122 = ssub.s32 %s18, %s25
    %s123 = sor.u32 %s121, %s122
    %p124 = scmp.eq.s32.totalorder %s123, 0
    %s126 = sadd.s32 %s125, 1
    %s127 = scalar_select %p124, %s125, %s126
    %p130 = pneg %p124
    %p131 = scmp.eq.s32.totalorder %s10, 1
    %p132 = por %p130, %p131
    %p133 = scmp.ne.s32.totalorder %s125, %s128
    %p134 = scmp.eq.s32.totalorder %s10, 0
    %p135 = por %p133, %p134
    %p136 = scmp.ne.s32.totalorder %s125, %s128
    %p137 = scmp.eq.s32.totalorder %s15, 1
    %p138 = por %p136, %p137
    %p139 = scmp.ne.s32.totalorder %s128, %s129
    %p140 = scmp.eq.s32.totalorder %s15, 0
    %p141 = por %p139, %p140
    %p142 = scmp.ne.s32.totalorder %s128, %s129
    %p143 = scmp.eq.s32.totalorder %s16, 1
    %p144 = por %p142, %p143
    %p146 = scmp.ne.s32.totalorder %s129, %s145
    %p147 = scmp.eq.s32.totalorder %s16, 0
    %p148 = por %p146, %p147
    %p149 = scmp.le.s32.totalorder 1, %s10
    %p150 = scmp.lt.s32.totalorder %s10, 3
    %p151 = pnand %p149, %p150
    %p152 = pneg %p151
    // Predicated region
    $region9: #{ffno_conv2d_forward.2} parent=5 // pred_check
      _
    $region10: #{ffno_conv2d_forward.2} parent=5 // pred_check_branch
      %154 = sbr.rel (%p151) target = $region12
    $region11: #{ffno_conv2d_forward.2} parent=5 // pred_region
      %s155 = ssub.s32 %s10, 1
      // Predicated region
      $region13: #{ffno_conv2d_forward.2} parent=11 // pred_check
        %p156 = pneg %p71
      $region14: #{ffno_conv2d_forward.2} parent=11 // pred_check_branch
        %158 = sbr.rel (%p156) target = $region16
      $region15: #{ffno_conv2d_forward.2} parent=11 // pred_region
        _
      $region16: #{ffno_conv2d_forward.2} parent=11 // pred_fallthru
        _
      // Predicated region
      $region17: #{ffno_conv2d_forward.2} parent=11 // pred_check
        %p159 = pneg %p92
      $region18: #{ffno_conv2d_forward.2} parent=11 // pred_check_branch
        %161 = sbr.rel (%p159) target = $region20
      $region19: #{ffno_conv2d_forward.2} parent=11 // pred_region
        _
      $region20: #{ffno_conv2d_forward.2} parent=11 // pred_fallthru
        _
      // Predicated region
      $region21: #{ffno_conv2d_forward.2} parent=11 // pred_check
        %p162 = pneg %p113
      $region22: #{ffno_conv2d_forward.2} parent=11 // pred_check_branch
        %164 = sbr.rel (%p162) target = $region24
      $region23: #{ffno_conv2d_forward.2} parent=11 // pred_region
        _
      $region24: #{ffno_conv2d_forward.2} parent=11 // pred_fallthru
        _
    $region12: #{ffno_conv2d_forward.2} parent=5 // pred_fallthru
      _
    %p165 = scmp.lt.s32.totalorder %s10, 2
    // Predicated region
    $region25: #{ffno_conv2d_forward.2} parent=5 // pred_check
      %p166 = pneg %p165
    $region26: #{ffno_conv2d_forward.2} parent=5 // pred_check_branch
      %168 = sbr.rel (%p166) target = $region28
    $region27: #{ffno_conv2d_forward.2} parent=5 // pred_region
      // Predicated region
      $region29: #{ffno_conv2d_forward.2} parent=27 // pred_check
        %p169 = pneg %p44
      $region30: #{ffno_conv2d_forward.2} parent=27 // pred_check_branch
        %171 = sbr.rel (%p169) target = $region32
      $region31: #{ffno_conv2d_forward.2} parent=27 // pred_region
        %s172 = smul.u32 2, %s18
        %p173 = scmp.lt.s32.totalorder %s17, 1
        %s174 = scalar_select %p173, %s17, 1
        %p175 = scmp.lt.s32.totalorder %s172, 1
        %s176 = scalar_select %p175, %s172, 1
        %s177 = smul.addr %s174, 4
        %s178 = sadd.s32 %s176, %s177
        %s179 = smul.addr %s178, 8
        %s180 = scalar_lea.vmem %s0, %s179
        %s181 = smul.u32 2, %s18
      $region32: #{ffno_conv2d_forward.2} parent=27 // pred_fallthru
        _
    $region28: #{ffno_conv2d_forward.2} parent=5 // pred_fallthru
      _
    %p182 = scmp.le.s32.totalorder 1, %s10
    %p183 = scmp.lt.s32.totalorder %s10, 3
    %p184 = pnand %p182, %p183
    %p185 = pneg %p184
    // Predicated region
    $region33: #{ffno_conv2d_forward.2} parent=5 // pred_check
      _
    $region34: #{ffno_conv2d_forward.2} parent=5 // pred_check_branch
      %187 = sbr.rel (%p184) target = $region36
    $region35: #{ffno_conv2d_forward.2} parent=5 // pred_region
      %s188 = ssub.s32 %s10, 1
      %s189 = smul.u32 2, %s20
      %p190 = scmp.lt.s32.totalorder %s19, 1
      %s191 = scalar_select %p190, %s19, 1
      %p192 = scmp.lt.s32.totalorder %s189, 1
      %s193 = scalar_select %p192, %s189, 1
      %s194 = smul.addr %s191, 4
      %s195 = sadd.s32 %s193, %s194
      %s196 = smul.addr %s195, 8
      %s197 = scalar_lea.vmem %s0, %s196
      %p198 = pneg %p50
      %p199 = pneg %p47
      %p200 = pneg %p71
      %p201 = pneg %p68
      %p202 = pneg %p92
      %p203 = pneg %p89
      %p204 = pneg %p113
      %p205 = pneg %p110
      %p206 = pneg %p141
      %p207 = pneg %p138
      %s208 = smul.u32 2, %s20
      %p209 = scmp.lt.s32.totalorder %s19, 1
      %s210 = scalar_select %p209, %s19, 1
      %p211 = scmp.lt.s32.totalorder %s208, 1
      %s212 = scalar_select %p211, %s208, 1
      %s213 = smul.addr %s210, 4
      %s214 = sadd.s32 %s212, %s213
      %s215 = smul.addr %s214, 8
      %s216 = scalar_lea.vmem %s4, %s215
      %s217 = smul.u32 2, %s20
      %p218 = scmp.lt.s32.totalorder %s19, 1
      %s219 = scalar_select %p218, %s19, 1
      %p220 = scmp.lt.s32.totalorder %s217, 1
      %s221 = scalar_select %p220, %s217, 1
      %s222 = smul.addr %s219, 4
      %s223 = sadd.s32 %s221, %s222
      %s224 = smul.addr %s223, 8
      %s225 = scalar_lea.vmem %s0, %s224
      %s226 = smul.u32 2, %s20
      %s227 = smul.u32 2, %s20
      %p228 = scmp.lt.s32.totalorder %s19, 1
      %s229 = scalar_select %p228, %s19, 1
      %p230 = scmp.lt.s32.totalorder %s227, 1
      %s231 = scalar_select %p230, %s227, 1
      %s232 = smul.addr %s229, 4
      %s233 = sadd.s32 %s231, %s232
      %s234 = smul.addr %s233, 8
      %s235 = scalar_lea.vmem %s4, %s234
      %s236 = smul.u32 2, %s20
      %v237 = vld [vmem:[%s1] sm:$0xff]
      %v238 = vld [vmem:[%s1 + $0x8] sm:$0xf]
      %v239 = vld [vmem:[%s3] sm:$0xff]
      %v240 = vld [vmem:[%s3 + $0x8] sm:$0xf]
      %v241 = vld [vmem:[%s225] sm:$0xff]
      %v242 = vld [vmem:[%s225 + $0x8] sm:$0xff]
      %vm243 = vcmask 130048
      %v245 = vsel %vm243, %v237, 0
      %v248 = vsel %vm243, %v238, 0
      %v251 = vsel %vm243, %v241, 0
      %v254 = vsel %vm243, %v242, 0
      %256 = vmatpush.xpose.msra.mxu0 0.0
      %257 = vmatpush.xpose.msra.mxu0 0.0
      %258 = vmatpush.xpose.msra.mxu0 0.0
      %259 = vmatpush.xpose.msra.mxu0 0.0
      %260 = vmatpush.xpose.msra.mxu0 0.0
      %261 = vmatpush.xpose.msra.mxu0 0.0
      %262 = vmatpush.xpose.msra.mxu0 0.0
      %263 = vmatpush.xpose.msra.mxu0 0.0
      %264 = vmatpush.xpose.msra.mxu0 0.0
      %265 = vmatpush.xpose.msra.mxu0 0.0
      %266 = vmatpush.xpose.msra.mxu0 0.0
      %267 = vmatpush.xpose.msra.mxu0 0.0
      %268 = vmatpush.xpose.msra.mxu0 0.0
      %269 = vmatpush.xpose.msra.mxu0 0.0
      %270 = vmatpush.xpose.msra.mxu0 %v254
      %271 = vmatpush.xpose.msra.mxu0 %v251
      %272 = vmatmul.f32.gmra.mxu0 %v245
      %v273 = vpop.f32.mrf.mxu0
      %v274 = vadd.f32 0.0, %v273
      %275 = vmatmul.f32.gmra.mxu0 %v248
      %v276 = vpop.f32.mrf.mxu0
      %v277 = vadd.f32 0.0, %v276
      %278 = vdwg.mxu0
      %s279 = scalar_lea.vmem %s225, 16
      %v280 = vld [vmem:[%s279] sm:$0xff]
      %v281 = vld [vmem:[%s279 + $0x8] sm:$0xff]
      %v283 = vsel %vm243, %v280, 0
      %v286 = vsel %vm243, %v281, 0
      %288 = vmatpush.xpose.msra.mxu0 0.0
      %289 = vmatpush.xpose.msra.mxu0 0.0
      %290 = vmatpush.xpose.msra.mxu0 0.0
      %291 = vmatpush.xpose.msra.mxu0 0.0
      %292 = vmatpush.xpose.msra.mxu0 0.0
      %293 = vmatpush.xpose.msra.mxu0 0.0
      %294 = vmatpush.xpose.msra.mxu0 0.0
      %295 = vmatpush.xpose.msra.mxu0 0.0
      %296 = vmatpush.xpose.msra.mxu0 0.0
      %297 = vmatpush.xpose.msra.mxu0 0.0
      %298 = vmatpush.xpose.msra.mxu0 0.0
      %299 = vmatpush.xpose.msra.mxu0 0.0
      %300 = vmatpush.xpose.msra.mxu0 0.0
      %301 = vmatpush.xpose.msra.mxu0 0.0
      %302 = vmatpush.xpose.msra.mxu0 %v286
      %303 = vmatpush.xpose.msra.mxu0 %v283
      %304 = vmatmul.f32.gmra.mxu0 %v245
      %v305 = vpop.f32.mrf.mxu0
      %v306 = vadd.f32 0.0, %v305
      %307 = vmatmul.f32.gmra.mxu0 %v248
      %v308 = vpop.f32.mrf.mxu0
      %v309 = vadd.f32 0.0, %v308
      %310 = vdwg.mxu0
      %v313 = vrot.slane %v274, 1
      %v314 = vrot.slane %v274, 2
      %v315 = vrot.slane %v274, 3
      %v316 = vrot.slane %v274, 4
      %v317 = vrot.slane %v274, 5
      %v318 = vrot.slane %v274, 6
      %v319 = vrot.slane %v274, 7
      %v320 = vrot.slane %v277, 1
      %v321 = vrot.slane %v277, 2
      %v322 = vrot.slane %v277, 3
      %v335 = vrot.slane %v306, 1
      %v336 = vrot.slane %v306, 2
      %v337 = vrot.slane %v306, 3
      %v338 = vrot.slane %v306, 4
      %v339 = vrot.slane %v306, 5
      %v340 = vrot.slane %v306, 6
      %v341 = vrot.slane %v306, 7
      %v342 = vrot.slane %v309, 1
      %v343 = vrot.slane %v309, 2
      %v344 = vrot.slane %v309, 3
      %v345 = vperm.slane %v306, 0
      %v346 = vperm.slane %v335, 0
      %v347 = vperm.slane %v336, 0
      %v348 = vperm.slane %v337, 0
      %v349 = vperm.slane %v338, 0
      %v350 = vperm.slane %v339, 0
      %v351 = vperm.slane %v340, 0
      %v352 = vperm.slane %v341, 0
      %v353 = vperm.slane %v309, 0
      %v354 = vperm.slane %v342, 0
      %v355 = vperm.slane %v343, 0
      %v356 = vperm.slane %v344, 0
      %vm369 = vcmask 1040384
      %v370 = vsel %vm369, %v274, %v345
      %v371 = vsel %vm369, %v313, %v346
      %v372 = vsel %vm369, %v314, %v347
      %v373 = vsel %vm369, %v315, %v348
      %v374 = vsel %vm369, %v316, %v349
      %v375 = vsel %vm369, %v317, %v350
      %v376 = vsel %vm369, %v318, %v351
      %v377 = vsel %vm369, %v319, %v352
      %v378 = vsel %vm369, %v277, %v353
      %v379 = vsel %vm369, %v320, %v354
      %v380 = vsel %vm369, %v321, %v355
      %v381 = vsel %vm369, %v322, %v356
      %v382 = vld [vmem:[%s2] sm:$0xf]
      %v383 = vld [vmem:[%s2 + $0x4] sm:$0xf]
      %v384 = vld [vmem:[%s2 + $0x8] sm:$0xf]
      %v385 = vld [vmem:[%s2 + $0xc] sm:$0xf]
      %v386 = vld [vmem:[%s2 + $0x10] sm:$0xf]
      %v387 = vld [vmem:[%s2 + $0x14] sm:$0xf]
      %v388 = vld [vmem:[%s2 + $0x18] sm:$0xf]
      %v389 = vld [vmem:[%s2 + $0x1c] sm:$0xf]
      %v390 = vld [vmem:[%s2 + $0x20] sm:$0xf]
      %v391 = vld [vmem:[%s2 + $0x24] sm:$0xf]
      %v392 = vld [vmem:[%s2 + $0x28] sm:$0xf]
      %v393 = vld [vmem:[%s2 + $0x2c] sm:$0xf]
      %vm394 = vcmask 15360
      %v396 = vsel %vm394, %v382, 0
      %vm398 = vcmask 1041408
      %v400 = vsel %vm398, %v370, 0
      %402 = vmatpush.msra.mxu0 0.0
      %403 = vmatpush.msra.mxu0 0.0
      %404 = vmatpush.msra.mxu0 0.0
      %405 = vmatpush.msra.mxu0 0.0
      %406 = vmatpush.msra.mxu0 0.0
      %407 = vmatpush.msra.mxu0 0.0
      %408 = vmatpush.msra.mxu0 0.0
      %409 = vmatpush.msra.mxu0 0.0
      %410 = vmatpush.msra.mxu0 0.0
      %411 = vmatpush.msra.mxu0 0.0
      %412 = vmatpush.msra.mxu0 0.0
      %413 = vmatpush.msra.mxu0 0.0
      %414 = vmatpush.msra.mxu0 0.0
      %415 = vmatpush.msra.mxu0 0.0
      %416 = vmatpush.msra.mxu0 0.0
      %417 = vmatpush.msra.mxu0 %v400
      %418 = vmatmul.f32.gmra.mxu0 %v396
      %v419 = vpop.f32.mrf.mxu0
      %v420 = vadd.f32 0.0, %v419
      %421 = vdwg.mxu0
      %v423 = vsel %vm394, %v383, 0
      %v426 = vsel %vm398, %v371, 0
      %428 = vmatpush.msra.mxu0 0.0
      %429 = vmatpush.msra.mxu0 0.0
      %430 = vmatpush.msra.mxu0 0.0
      %431 = vmatpush.msra.mxu0 0.0
      %432 = vmatpush.msra.mxu0 0.0
      %433 = vmatpush.msra.mxu0 0.0
      %434 = vmatpush.msra.mxu0 0.0
      %435 = vmatpush.msra.mxu0 0.0
      %436 = vmatpush.msra.mxu0 0.0
      %437 = vmatpush.msra.mxu0 0.0
      %438 = vmatpush.msra.mxu0 0.0
      %439 = vmatpush.msra.mxu0 0.0
      %440 = vmatpush.msra.mxu0 0.0
      %441 = vmatpush.msra.mxu0 0.0
      %442 = vmatpush.msra.mxu0 0.0
      %443 = vmatpush.msra.mxu0 %v426
      %444 = vmatmul.f32.gmra.mxu0 %v423
      %v445 = vpop.f32.mrf.mxu0
      %v446 = vadd.f32 0.0, %v445
      %447 = vdwg.mxu0
      %v449 = vsel %vm394, %v384, 0
      %v452 = vsel %vm398, %v372, 0
      %454 = vmatpush.msra.mxu0 0.0
      %455 = vmatpush.msra.mxu0 0.0
      %456 = vmatpush.msra.mxu0 0.0
      %457 = vmatpush.msra.mxu0 0.0
      %458 = vmatpush.msra.mxu0 0.0
      %459 = vmatpush.msra.mxu0 0.0
      %460 = vmatpush.msra.mxu0 0.0
      %461 = vmatpush.msra.mxu0 0.0
      %462 = vmatpush.msra.mxu0 0.0
      %463 = vmatpush.msra.mxu0 0.0
      %464 = vmatpush.msra.mxu0 0.0
      %465 = vmatpush.msra.mxu0 0.0
      %466 = vmatpush.msra.mxu0 0.0
      %467 = vmatpush.msra.mxu0 0.0
      %468 = vmatpush.msra.mxu0 0.0
      %469 = vmatpush.msra.mxu0 %v452
      %470 = vmatmul.f32.gmra.mxu0 %v449
      %v471 = vpop.f32.mrf.mxu0
      %v472 = vadd.f32 0.0, %v471
      %473 = vdwg.mxu0
      %v475 = vsel %vm394, %v385, 0
      %v478 = vsel %vm398, %v373, 0
      %480 = vmatpush.msra.mxu0 0.0
      %481 = vmatpush.msra.mxu0 0.0
      %482 = vmatpush.msra.mxu0 0.0
      %483 = vmatpush.msra.mxu0 0.0
      %484 = vmatpush.msra.mxu0 0.0
      %485 = vmatpush.msra.mxu0 0.0
      %486 = vmatpush.msra.mxu0 0.0
      %487 = vmatpush.msra.mxu0 0.0
      %488 = vmatpush.msra.mxu0 0.0
      %489 = vmatpush.msra.mxu0 0.0
      %490 = vmatpush.msra.mxu0 0.0
      %491 = vmatpush.msra.mxu0 0.0
      %492 = vmatpush.msra.mxu0 0.0
      %493 = vmatpush.msra.mxu0 0.0
      %494 = vmatpush.msra.mxu0 0.0
      %495 = vmatpush.msra.mxu0 %v478
      %496 = vmatmul.f32.gmra.mxu0 %v475
      %v497 = vpop.f32.mrf.mxu0
      %v498 = vadd.f32 0.0, %v497
      %499 = vdwg.mxu0
      %v501 = vsel %vm394, %v386, 0
      %v504 = vsel %vm398, %v374, 0
      %506 = vmatpush.msra.mxu0 0.0
      %507 = vmatpush.msra.mxu0 0.0
      %508 = vmatpush.msra.mxu0 0.0
      %509 = vmatpush.msra.mxu0 0.0
      %510 = vmatpush.msra.mxu0 0.0
      %511 = vmatpush.msra.mxu0 0.0
      %512 = vmatpush.msra.mxu0 0.0
      %513 = vmatpush.msra.mxu0 0.0
      %514 = vmatpush.msra.mxu0 0.0
      %515 = vmatpush.msra.mxu0 0.0
      %516 = vmatpush.msra.mxu0 0.0
      %517 = vmatpush.msra.mxu0 0.0
      %518 = vmatpush.msra.mxu0 0.0
      %519 = vmatpush.msra.mxu0 0.0
      %520 = vmatpush.msra.mxu0 0.0
      %521 = vmatpush.msra.mxu0 %v504
      %522 = vmatmul.f32.gmra.mxu0 %v501
      %v523 = vpop.f32.mrf.mxu0
      %v524 = vadd.f32 0.0, %v523
      %525 = vdwg.mxu0
      %v527 = vsel %vm394, %v387, 0
      %v530 = vsel %vm398, %v375, 0
      %532 = vmatpush.msra.mxu0 0.0
      %533 = vmatpush.msra.mxu0 0.0
      %534 = vmatpush.msra.mxu0 0.0
      %535 = vmatpush.msra.mxu0 0.0
      %536 = vmatpush.msra.mxu0 0.0
      %537 = vmatpush.msra.mxu0 0.0
      %538 = vmatpush.msra.mxu0 0.0
      %539 = vmatpush.msra.mxu0 0.0
      %540 = vmatpush.msra.mxu0 0.0
      %541 = vmatpush.msra.mxu0 0.0
      %542 = vmatpush.msra.mxu0 0.0
      %543 = vmatpush.msra.mxu0 0.0
      %544 = vmatpush.msra.mxu0 0.0
      %545 = vmatpush.msra.mxu0 0.0
      %546 = vmatpush.msra.mxu0 0.0
      %547 = vmatpush.msra.mxu0 %v530
      %548 = vmatmul.f32.gmra.mxu0 %v527
      %v549 = vpop.f32.mrf.mxu0
      %v550 = vadd.f32 0.0, %v549
      %551 = vdwg.mxu0
      %v553 = vsel %vm394, %v388, 0
      %v556 = vsel %vm398, %v376, 0
      %558 = vmatpush.msra.mxu0 0.0
      %559 = vmatpush.msra.mxu0 0.0
      %560 = vmatpush.msra.mxu0 0.0
      %561 = vmatpush.msra.mxu0 0.0
      %562 = vmatpush.msra.mxu0 0.0
      %563 = vmatpush.msra.mxu0 0.0
      %564 = vmatpush.msra.mxu0 0.0
      %565 = vmatpush.msra.mxu0 0.0
      %566 = vmatpush.msra.mxu0 0.0
      %567 = vmatpush.msra.mxu0 0.0
      %568 = vmatpush.msra.mxu0 0.0
      %569 = vmatpush.msra.mxu0 0.0
      %570 = vmatpush.msra.mxu0 0.0
      %571 = vmatpush.msra.mxu0 0.0
      %572 = vmatpush.msra.mxu0 0.0
      %573 = vmatpush.msra.mxu0 %v556
      %574 = vmatmul.f32.gmra.mxu0 %v553
      %v575 = vpop.f32.mrf.mxu0
      %v576 = vadd.f32 0.0, %v575
      %577 = vdwg.mxu0
      %v579 = vsel %vm394, %v389, 0
      %v582 = vsel %vm398, %v377, 0
      %584 = vmatpush.msra.mxu0 0.0
      %585 = vmatpush.msra.mxu0 0.0
      %586 = vmatpush.msra.mxu0 0.0
      %587 = vmatpush.msra.mxu0 0.0
      %588 = vmatpush.msra.mxu0 0.0
      %589 = vmatpush.msra.mxu0 0.0
      %590 = vmatpush.msra.mxu0 0.0
      %591 = vmatpush.msra.mxu0 0.0
      %592 = vmatpush.msra.mxu0 0.0
      %593 = vmatpush.msra.mxu0 0.0
      %594 = vmatpush.msra.mxu0 0.0
      %595 = vmatpush.msra.mxu0 0.0
      %596 = vmatpush.msra.mxu0 0.0
      %597 = vmatpush.msra.mxu0 0.0
      %598 = vmatpush.msra.mxu0 0.0
      %599 = vmatpush.msra.mxu0 %v582
      %600 = vmatmul.f32.gmra.mxu0 %v579
      %v601 = vpop.f32.mrf.mxu0
      %v602 = vadd.f32 0.0, %v601
      %603 = vdwg.mxu0
      %v605 = vsel %vm394, %v390, 0
      %v608 = vsel %vm398, %v378, 0
      %610 = vmatpush.msra.mxu0 0.0
      %611 = vmatpush.msra.mxu0 0.0
      %612 = vmatpush.msra.mxu0 0.0
      %613 = vmatpush.msra.mxu0 0.0
      %614 = vmatpush.msra.mxu0 0.0
      %615 = vmatpush.msra.mxu0 0.0
      %616 = vmatpush.msra.mxu0 0.0
      %617 = vmatpush.msra.mxu0 0.0
      %618 = vmatpush.msra.mxu0 0.0
      %619 = vmatpush.msra.mxu0 0.0
      %620 = vmatpush.msra.mxu0 0.0
      %621 = vmatpush.msra.mxu0 0.0
      %622 = vmatpush.msra.mxu0 0.0
      %623 = vmatpush.msra.mxu0 0.0
      %624 = vmatpush.msra.mxu0 0.0
      %625 = vmatpush.msra.mxu0 %v608
      %626 = vmatmul.f32.gmra.mxu0 %v605
      %v627 = vpop.f32.mrf.mxu0
      %v628 = vadd.f32 0.0, %v627
      %629 = vdwg.mxu0
      %v631 = vsel %vm394, %v391, 0
      %v634 = vsel %vm398, %v379, 0
      %636 = vmatpush.msra.mxu0 0.0
      %637 = vmatpush.msra.mxu0 0.0
      %638 = vmatpush.msra.mxu0 0.0
      %639 = vmatpush.msra.mxu0 0.0
      %640 = vmatpush.msra.mxu0 0.0
      %641 = vmatpush.msra.mxu0 0.0
      %642 = vmatpush.msra.mxu0 0.0
      %643 = vmatpush.msra.mxu0 0.0
      %644 = vmatpush.msra.mxu0 0.0
      %645 = vmatpush.msra.mxu0 0.0
      %646 = vmatpush.msra.mxu0 0.0
      %647 = vmatpush.msra.mxu0 0.0
      %648 = vmatpush.msra.mxu0 0.0
      %649 = vmatpush.msra.mxu0 0.0
      %650 = vmatpush.msra.mxu0 0.0
      %651 = vmatpush.msra.mxu0 %v634
      %652 = vmatmul.f32.gmra.mxu0 %v631
      %v653 = vpop.f32.mrf.mxu0
      %v654 = vadd.f32 0.0, %v653
      %655 = vdwg.mxu0
      %v657 = vsel %vm394, %v392, 0
      %v660 = vsel %vm398, %v380, 0
      %662 = vmatpush.msra.mxu0 0.0
      %663 = vmatpush.msra.mxu0 0.0
      %664 = vmatpush.msra.mxu0 0.0
      %665 = vmatpush.msra.mxu0 0.0
      %666 = vmatpush.msra.mxu0 0.0
      %667 = vmatpush.msra.mxu0 0.0
      %668 = vmatpush.msra.mxu0 0.0
      %669 = vmatpush.msra.mxu0 0.0
      %670 = vmatpush.msra.mxu0 0.0
      %671 = vmatpush.msra.mxu0 0.0
      %672 = vmatpush.msra.mxu0 0.0
      %673 = vmatpush.msra.mxu0 0.0
      %674 = vmatpush.msra.mxu0 0.0
      %675 = vmatpush.msra.mxu0 0.0
      %676 = vmatpush.msra.mxu0 0.0
      %677 = vmatpush.msra.mxu0 %v660
      %678 = vmatmul.f32.gmra.mxu0 %v657
      %v679 = vpop.f32.mrf.mxu0
      %v680 = vadd.f32 0.0, %v679
      %681 = vdwg.mxu0
      %v683 = vsel %vm394, %v393, 0
      %v686 = vsel %vm398, %v381, 0
      %688 = vmatpush.msra.mxu0 0.0
      %689 = vmatpush.msra.mxu0 0.0
      %690 = vmatpush.msra.mxu0 0.0
      %691 = vmatpush.msra.mxu0 0.0
      %692 = vmatpush.msra.mxu0 0.0
      %693 = vmatpush.msra.mxu0 0.0
      %694 = vmatpush.msra.mxu0 0.0
      %695 = vmatpush.msra.mxu0 0.0
      %696 = vmatpush.msra.mxu0 0.0
      %697 = vmatpush.msra.mxu0 0.0
      %698 = vmatpush.msra.mxu0 0.0
      %699 = vmatpush.msra.mxu0 0.0
      %700 = vmatpush.msra.mxu0 0.0
      %701 = vmatpush.msra.mxu0 0.0
      %702 = vmatpush.msra.mxu0 0.0
      %703 = vmatpush.msra.mxu0 %v686
      %704 = vmatmul.f32.gmra.mxu0 %v683
      %v705 = vpop.f32.mrf.mxu0
      %v706 = vadd.f32 0.0, %v705
      %707 = vdwg.mxu0
      %v708 = vadd.f32 %v420, %v576
      %v709 = vadd.f32 %v446, %v602
      %v710 = vadd.f32 %v472, %v628
      %v711 = vadd.f32 %v498, %v654
      %v712 = vadd.f32 %v524, %v680
      %v713 = vadd.f32 %v550, %v706
      %v720 = vrot.slane %v709, 7
      %vm721 = vcmask 1041409
      %v722 = vsel %vm721, %v720, %v708
      %v723 = vrot.slane %v710, 6
      %vm724 = vcmask 1042434
      %v725 = vsel %vm724, %v723, %v722
      %v726 = vrot.slane %v711, 5
      %vm727 = vcmask 1043459
      %v728 = vsel %vm727, %v726, %v725
      %v729 = vrot.slane %v712, 4
      %vm730 = vcmask 1044484
      %v731 = vsel %vm730, %v729, %v728
      %v732 = vrot.slane %v713, 3
      %vm733 = vcmask 1045509
      %v734 = vsel %vm733, %v732, %v731
      %v736 = vrot.slane %v708, 4
      %v737 = vrot.slane %v709, 3
      %vm738 = vcmask 1047559
      %v739 = vsel %vm738, %v737, %v736
      %v740 = vrot.slane %v710, 2
      %v741 = vrot.slane %v711, 1
      %v742 = vsel %vm721, %v741, %v740
      %v743 = vsel %vm724, %v712, %v742
      %v744 = vrot.slane %v713, 7
      %v745 = vsel %vm727, %v744, %v743
      %vm748 = vcmask 1045504
      %v749 = vsel %vm748, %v734, %v739
      %750 = vxpose.xlu0.b32.start [1/16] %v749, 128
      %751 = vxpose.xlu0.b32.cont [2/16] %v745, 128
      %752 = vxpose.xlu0.b32.cont [3/16] 0.0, 128
      %753 = vxpose.xlu0.b32.cont [4/16] 0.0, 128
      %754 = vxpose.xlu0.b32.cont [5/16] 0.0, 128
      %755 = vxpose.xlu0.b32.cont [6/16] 0.0, 128
      %756 = vxpose.xlu0.b32.cont [7/16] 0.0, 128
      %757 = vxpose.xlu0.b32.cont [8/16] 0.0, 128
      %758 = vxpose.xlu0.b32.cont [9/16] 0.0, 128
      %759 = vxpose.xlu0.b32.cont [10/16] 0.0, 128
      %760 = vxpose.xlu0.b32.cont [11/16] 0.0, 128
      %761 = vxpose.xlu0.b32.cont [12/16] 0.0, 128
      %762 = vxpose.xlu0.b32.cont [13/16] 0.0, 128
      %763 = vxpose.xlu0.b32.cont [14/16] 0.0, 128
      %764 = vxpose.xlu0.b32.cont [15/16] 0.0, 128
      %765 = vxpose.xlu0.b32.end [16/16] 0.0, 128
      %v766 = vpop.trf.xlu0
      %v767 = vpop.trf.xlu0
      %v768 = vpop.trf.xlu0
      %v769 = vpop.trf.xlu0
      %v770 = vpop.trf.xlu0
      %v771 = vpop.trf.xlu0
      %v772 = vpop.trf.xlu0
      %v773 = vpop.trf.xlu0
      %v774 = vpop.trf.xlu0
      %v775 = vpop.trf.xlu0
      %v776 = vpop.trf.xlu0
      %v777 = vpop.trf.xlu0
      %v778 = vpop.trf.xlu0
      %v779 = vpop.trf.xlu0
      %v780 = vpop.trf.xlu0
      %v781 = vpop.trf.xlu0
      %vm782 = vcmask 97280
      %v784 = vsel %vm782, %v766, 0
      %v787 = vsel %vm782, %v767, 0
      %vm789 = vcmask 1043456
      %v791 = vsel %vm789, %v240, 0
      %793 = vmatpush.msra.mxu0 0.0
      %794 = vmatpush.msra.mxu0 0.0
      %795 = vmatpush.msra.mxu0 0.0
      %796 = vmatpush.msra.mxu0 0.0
      %797 = vmatpush.msra.mxu0 0.0
      %798 = vmatpush.msra.mxu0 0.0
      %799 = vmatpush.msra.mxu0 0.0
      %800 = vmatpush.msra.mxu0 0.0
      %801 = vmatpush.msra.mxu0 0.0
      %802 = vmatpush.msra.mxu0 0.0
      %803 = vmatpush.msra.mxu0 0.0
      %804 = vmatpush.msra.mxu0 0.0
      %805 = vmatpush.msra.mxu0 0.0
      %806 = vmatpush.msra.mxu0 0.0
      %807 = vmatpush.msra.mxu0 %v791
      %808 = vmatpush.msra.mxu0 %v239
      %809 = vmatmul.f32.gmra.mxu0 %v784
      %v810 = vpop.f32.mrf.mxu0
      %v811 = vadd.f32 0.0, %v810
      %812 = vmatmul.f32.gmra.mxu0 %v787
      %v813 = vpop.f32.mrf.mxu0
      %v814 = vadd.f32 0.0, %v813
      %815 = vdwg.mxu0
      %816 = vst.msk [vmem:[%s235] sm:$0xff] %vm243, %v811
      %817 = vst.msk [vmem:[%s235 + $0x8] sm:$0xff] %vm243, %v814
      %v818 = vrot.slane %v708, 1
      %v819 = vsel %vm721, %v709, %v818
      %v820 = vrot.slane %v710, 7
      %v821 = vsel %vm724, %v820, %v819
      %v822 = vrot.slane %v711, 6
      %v823 = vsel %vm727, %v822, %v821
      %v824 = vrot.slane %v712, 5
      %v825 = vsel %vm730, %v824, %v823
      %v826 = vrot.slane %v713, 4
      %v827 = vsel %vm733, %v826, %v825
      %v829 = vrot.slane %v708, 5
      %v830 = vrot.slane %v709, 4
      %v831 = vsel %vm738, %v830, %v829
      %v832 = vrot.slane %v710, 3
      %v833 = vrot.slane %v711, 2
      %v834 = vsel %vm721, %v833, %v832
      %v835 = vrot.slane %v712, 1
      %v836 = vsel %vm724, %v835, %v834
      %v837 = vsel %vm727, %v713, %v836
      %v840 = vsel %vm748, %v827, %v831
      %841 = vxpose.xlu0.b32.start [1/16] %v840, 128
      %842 = vxpose.xlu0.b32.cont [2/16] %v837, 128
      %843 = vxpose.xlu0.b32.cont [3/16] 0.0, 128
      %844 = vxpose.xlu0.b32.cont [4/16] 0.0, 128
      %845 = vxpose.xlu0.b32.cont [5/16] 0.0, 128
      %846 = vxpose.xlu0.b32.cont [6/16] 0.0, 128
      %847 = vxpose.xlu0.b32.cont [7/16] 0.0, 128
      %848 = vxpose.xlu0.b32.cont [8/16] 0.0, 128
      %849 = vxpose.xlu0.b32.cont [9/16] 0.0, 128
      %850 = vxpose.xlu0.b32.cont [10/16] 0.0, 128
      %851 = vxpose.xlu0.b32.cont [11/16] 0.0, 128
      %852 = vxpose.xlu0.b32.cont [12/16] 0.0, 128
      %853 = vxpose.xlu0.b32.cont [13/16] 0.0, 128
      %854 = vxpose.xlu0.b32.cont [14/16] 0.0, 128
      %855 = vxpose.xlu0.b32.cont [15/16] 0.0, 128
      %856 = vxpose.xlu0.b32.end [16/16] 0.0, 128
      %v857 = vpop.trf.xlu0
      %v858 = vpop.trf.xlu0
      %v859 = vpop.trf.xlu0
      %v860 = vpop.trf.xlu0
      %v861 = vpop.trf.xlu0
      %v862 = vpop.trf.xlu0
      %v863 = vpop.trf.xlu0
      %v864 = vpop.trf.xlu0
      %v865 = vpop.trf.xlu0
      %v866 = vpop.trf.xlu0
      %v867 = vpop.trf.xlu0
      %v868 = vpop.trf.xlu0
      %v869 = vpop.trf.xlu0
      %v870 = vpop.trf.xlu0
      %v871 = vpop.trf.xlu0
      %v872 = vpop.trf.xlu0
      %v874 = vsel %vm782, %v857, 0
      %v877 = vsel %vm782, %v858, 0
      %879 = vmatpush.msra.mxu0 0.0
      %880 = vmatpush.msra.mxu0 0.0
      %881 = vmatpush.msra.mxu0 0.0
      %882 = vmatpush.msra.mxu0 0.0
      %883 = vmatpush.msra.mxu0 0.0
      %884 = vmatpush.msra.mxu0 0.0
      %885 = vmatpush.msra.mxu0 0.0
      %886 = vmatpush.msra.mxu0 0.0
      %887 = vmatpush.msra.mxu0 0.0
      %888 = vmatpush.msra.mxu0 0.0
      %889 = vmatpush.msra.mxu0 0.0
      %890 = vmatpush.msra.mxu0 0.0
      %891 = vmatpush.msra.mxu0 0.0
      %892 = vmatpush.msra.mxu0 0.0
      %893 = vmatpush.msra.mxu0 %v791
      %894 = vmatpush.msra.mxu0 %v239
      %895 = vmatmul.f32.gmra.mxu0 %v874
      %v896 = vpop.f32.mrf.mxu0
      %v897 = vadd.f32 0.0, %v896
      %898 = vmatmul.f32.gmra.mxu0 %v877
      %v899 = vpop.f32.mrf.mxu0
      %v900 = vadd.f32 0.0, %v899
      %901 = vdwg.mxu0
      %s902 = scalar_lea.vmem %s235, 16
      %903 = vst.msk [vmem:[%s902] sm:$0xff] %vm243, %v897
      %904 = vst.msk [vmem:[%s902 + $0x8] sm:$0xff] %vm243, %v900
      %s905 = smul.u32 2, %s20
      %p906 = scmp.lt.s32.totalorder %s19, 1
      %s907 = scalar_select %p906, %s19, 1
      %p908 = scmp.lt.s32.totalorder %s905, 1
      %s909 = scalar_select %p908, %s905, 1
      %s910 = smul.addr %s907, 4
      %s911 = sadd.s32 %s909, %s910
      %s912 = smul.addr %s911, 8
      %s913 = scalar_lea.vmem %s4, %s912
      // Predicated region
      $region37: #{ffno_conv2d_forward.2} parent=35 // pred_check
        %p914 = pneg %p138
      $region38: #{ffno_conv2d_forward.2} parent=35 // pred_check_branch
        %916 = sbr.rel (%p914) target = $region40
      $region39: #{ffno_conv2d_forward.2} parent=35 // pred_region
        %s917 = smul.u32 2, %s20
      $region40: #{ffno_conv2d_forward.2} parent=35 // pred_fallthru
        _
    $region36: #{ffno_conv2d_forward.2} parent=5 // pred_fallthru
      _
    %p918 = scmp.le.s32.totalorder 2, %s10
    // Predicated region
    $region41: #{ffno_conv2d_forward.2} parent=5 // pred_check
      %p919 = pneg %p918
    $region42: #{ffno_conv2d_forward.2} parent=5 // pred_check_branch
      %921 = sbr.rel (%p919) target = $region44
    $region43: #{ffno_conv2d_forward.2} parent=5 // pred_region
      %s922 = ssub.s32 %s10, 2
      // Predicated region
      $region45: #{ffno_conv2d_forward.2} parent=43 // pred_check
        %p923 = pneg %p144
      $region46: #{ffno_conv2d_forward.2} parent=43 // pred_check_branch
        %925 = sbr.rel (%p923) target = $region48
      $region47: #{ffno_conv2d_forward.2} parent=43 // pred_region
        %s926 = smul.u32 2, %s22
        %p927 = scmp.lt.s32.totalorder %s21, 1
        %s928 = scalar_select %p927, %s21, 1
        %p929 = scmp.lt.s32.totalorder %s926, 1
        %s930 = scalar_select %p929, %s926, 1
        %s931 = smul.addr %s928, 4
        %s932 = sadd.s32 %s930, %s931
        %s933 = smul.addr %s932, 8
        %s934 = scalar_lea.vmem %s4, %s933
      $region48: #{ffno_conv2d_forward.2} parent=43 // pred_fallthru
        _
    $region44: #{ffno_conv2d_forward.2} parent=5 // pred_fallthru
      _
  $region6: #{ffno_conv2d_forward.2} parent=0 // loop_footer
    %s14 = sadd.s32 1, %s10
  $region7: #{ffno_conv2d_forward.2} parent=0 // loop_footer_branch
    %9 = sbr.rel target = $region3
  $region8: #{ffno_conv2d_forward.2} parent=0 // loop_exit
    _

</llo_original>
